<compile_context>
chip_gen: v7x
topology: tpu7x:2x2x1
jax: 0.10.0
libtpu: 0.0.40
codegen_flags: <defaults>
</compile_context>

<pallas_src>
import functools
import math

import jax
import jax.numpy as jnp
from jax.experimental import pallas as pl
from jax.experimental.pallas import tpu as pltpu

# ---------------- config (scaled-down bert-base) ----------------
HIDDEN = 32          # bert-base: 768
NUM_HEADS = 4        # bert-base: 12
HEAD_DIM = HIDDEN // NUM_HEADS
INTER = 64           # bert-base: 3072
NUM_LAYERS = 2       # bert-base: 12
VOCAB = 100
MAX_POS = 16
TYPE_VOCAB = 2
CLASS_NUM = 10
LN_EPS = 1e-12

ACT_DTYPE = jnp.bfloat16              # storage dtype (activations / big weights)
VMEM = pltpu.MemorySpace.VMEM


def _full_spec(shape):
    """Whole-array block, same block every grid step (weights / small params)."""
    zeros = (0,) * len(shape)
    return pl.BlockSpec(shape, lambda *_: zeros)


def _layernorm_f32(h, g, b, eps):
    mu = jnp.mean(h, axis=-1, keepdims=True)
    d = h - mu
    var = jnp.mean(d * d, axis=-1, keepdims=True)
    return d * jax.lax.rsqrt(var + eps) * g + b


def _gelu(y):
    # tanh-approx GELU. TODO(synk): HF bert-base default is the exact erf GELU (~1e-3 diff).
    c = math.sqrt(2.0 / math.pi)
    return 0.5 * y * (1.0 + jnp.tanh(c * (y + 0.044715 * y * y * y)))


# ---------------- kernel 1: embeddings sum + LayerNorm ----------------

def _embed_ln_kernel(we_ref, te_ref, pe_ref, g_ref, b_ref, o_ref, *, eps):
    h = we_ref[0] + te_ref[0] + pe_ref[0]                  # [S, H] f32
    o_ref[0] = _layernorm_f32(h, g_ref[...], b_ref[...], eps).astype(o_ref.dtype)


def embed_layernorm(we, te, pe, gamma, beta):
    B, S, H = we.shape
    return pl.pallas_call(
        functools.partial(_embed_ln_kernel, eps=LN_EPS),
        grid=(B,),
        out_shape=jax.ShapeDtypeStruct((B, S, H), ACT_DTYPE),
        in_specs=[
            pl.BlockSpec((1, S, H), lambda b: (b, 0, 0)),
            pl.BlockSpec((1, S, H), lambda b: (b, 0, 0)),
            _full_spec((1, S, H)),      # position embeddings (shared across batch)
            _full_spec((1, H)),         # LN gamma
            _full_spec((1, H)),         # LN beta
        ],
        out_specs=pl.BlockSpec((1, S, H), lambda b: (b, 0, 0)),
        compiler_params=pltpu.CompilerParams(dimension_semantics=("parallel",)),
    )(we, te, pe, gamma, beta)


# ---------------- kernel 2: one fused BERT encoder layer ----------------

def _bert_layer_kernel(x_ref, bias_ref,
                       wqkv_ref, bqkv_ref, wo_ref, bo_ref, ln1g_ref, ln1b_ref,
                       w1_ref, b1_ref, w2_ref, b2_ref, ln2g_ref, ln2b_ref,
                       o_ref, *, num_heads, head_dim, eps):
    H = num_heads * head_dim
    scale = 1.0 / math.sqrt(head_dim)

    xb = x_ref[0]                                          # [S, H] bf16
    bias = bias_ref[0]                                     # [1, S] f32 additive mask

    # ---- fused QKV projection: one lane-dense bf16 matmul, f32 accumulation ----
    qkv = jnp.dot(xb, wqkv_ref[...],
                  preferred_element_type=jnp.float32) + bqkv_ref[...]   # [S, 3H] f32
    # Transpose once so per-head slices are sublane-aligned (row offsets % 8 == 0).
    qkv_t = qkv.T                                          # [3H, S] f32

    S = xb.shape[0]
    attn = jnp.zeros((S, H), jnp.float32)
    for h in range(num_heads):                             # unrolled, all heads in VMEM
        off = h * head_dim
        q_t = qkv_t[off:off + head_dim, :]                 # [dH, S]
        k_t = qkv_t[H + off:H + off + head_dim, :]         # [dH, S]
        v_t = qkv_t[2 * H + off:2 * H + off + head_dim, :]

        s = jnp.dot(q_t.T, k_t, preferred_element_type=jnp.float32) * scale + bias
        m = jnp.max(s, axis=-1, keepdims=True)
        p = jnp.exp(s - m)
        l = jnp.sum(p, axis=-1, keepdims=True)
        p = p * pl.reciprocal(l, approx=True)              # divide on the EUP slot
        ctx = jnp.dot(p, v_t.T, preferred_element_type=jnp.float32)     # [S, dH]
        # Fold the per-head output projection into the accumulator (no concat needed).
        attn = attn + jnp.dot(ctx, wo_ref[off:off + head_dim, :],
                              preferred_element_type=jnp.float32)

    # ---- output projection bias + residual + LayerNorm (fused) ----
    x1 = _layernorm_f32(attn + bo_ref[...] + xb.astype(jnp.float32),
                        ln1g_ref[...], ln1b_ref[...], eps)

    # ---- FFN (bf16 matmuls, f32 math) + residual + LayerNorm (fused) ----
    ff = jnp.dot(x1.astype(ACT_DTYPE), w1_ref[...],
                 preferred_element_type=jnp.float32) + b1_ref[...]
    ff = _gelu(ff)
    y = jnp.dot(ff.astype(ACT_DTYPE), w2_ref[...],
                preferred_element_type=jnp.float32) + b2_ref[...]
    x2 = _layernorm_f32(y + x1, ln2g_ref[...], ln2b_ref[...], eps)

    o_ref[0] = x2.astype(o_ref.dtype)


def bert_layer(x, bias, lp):
    B, S, H = x.shape
    I = INTER
    kernel = functools.partial(_bert_layer_kernel, num_heads=NUM_HEADS,
                               head_dim=HEAD_DIM, eps=LN_EPS)
    return pl.pallas_call(
        kernel,
        grid=(B,),
        out_shape=jax.ShapeDtypeStruct((B, S, H), ACT_DTYPE),
        in_specs=[
            pl.BlockSpec((1, S, H), lambda b: (b, 0, 0)),   # activations
            pl.BlockSpec((1, 1, S), lambda b: (b, 0, 0)),   # mask bias
            _full_spec((H, 3 * H)),   # wqkv (bf16)
            _full_spec((1, 3 * H)),   # bqkv
            _full_spec((H, H)),       # wo (f32: sliced per-head on sublanes)
            _full_spec((1, H)),       # bo
            _full_spec((1, H)),       # ln1_g
            _full_spec((1, H)),       # ln1_b
            _full_spec((H, I)),       # w1 (bf16)
            _full_spec((1, I)),       # b1
            _full_spec((I, H)),       # w2 (bf16)
            _full_spec((1, H)),       # b2
            _full_spec((1, H)),       # ln2_g
            _full_spec((1, H)),       # ln2_b
        ],
        out_specs=pl.BlockSpec((1, S, H), lambda b: (b, 0, 0)),
        compiler_params=pltpu.CompilerParams(dimension_semantics=("parallel",)),
    )(x, bias, lp["wqkv"], lp["bqkv"], lp["wo"], lp["bo"], lp["ln1_g"], lp["ln1_b"],
      lp["w1"], lp["b1"], lp["w2"], lp["b2"], lp["ln2_g"], lp["ln2_b"])


# ---------------- kernel 3: pooler (tanh on CLS) + final classifier ----------------

def _head_kernel(x_ref, pw_ref, pb_ref, fw_ref, fb_ref, o_ref):
    cls = x_ref[0][0:1, :]                                 # [1, H] bf16 (CLS token)
    pooled = jnp.tanh(jnp.dot(cls, pw_ref[...],
                              preferred_element_type=jnp.float32) + pb_ref[...])
    logits = jnp.dot(pooled.astype(ACT_DTYPE), fw_ref[...],
                     preferred_element_type=jnp.float32) + fb_ref[...]
    o_ref[0] = logits


def pooler_classifier(x, pool_w, pool_b, fc_w, fc_b):
    B, S, H = x.shape
    out = pl.pallas_call(
        _head_kernel,
        grid=(B,),
        out_shape=jax.ShapeDtypeStruct((B, 1, CLASS_NUM), jnp.float32),
        in_specs=[
            pl.BlockSpec((1, S, H), lambda b: (b, 0, 0)),
            _full_spec((H, H)),
            _full_spec((1, H)),
            _full_spec((H, CLASS_NUM)),
            _full_spec((1, CLASS_NUM)),
        ],
        out_specs=pl.BlockSpec((1, 1, CLASS_NUM), lambda b: (b, 0, 0)),
        compiler_params=pltpu.CompilerParams(dimension_semantics=("parallel",)),
    )(x, pool_w, pool_b, fc_w, fc_b)
    return out.reshape(B, CLASS_NUM)


# ---------------- forward (glue is only gathers + scalar prep) ----------------

def servenet_forward(params, input_ids, token_type_ids, attention_mask):
    B, S = input_ids.shape

    # Embedding-table row gathers stay in XLA glue (data-dependent gather).
    # TODO(synk): could move to scalar-prefetch + pl.Element row blocks at real scale.
    we = params["word_emb"][input_ids]                     # [B, S, H] f32
    te = params["type_emb"][token_type_ids]                # [B, S, H] f32
    pe = params["pos_emb"][:S][None]                       # [1, S, H] f32
    x = embed_layernorm(we, te, pe, params["emb_ln_g"], params["emb_ln_b"])

    # BERT-style additive mask bias, computed once for all layers / heads.
    bias = ((1.0 - attention_mask.astype(jnp.float32)) * -10000.0).reshape(B, 1, S)

    for lp in params["layers"]:
        x = bert_layer(x, bias, lp)

    # pooled = tanh(W * hidden[CLS] + b) (== bert_output[1]); logits = final_linear(pooled)
    return pooler_classifier(x, params["pool_w"], params["pool_b"],
                             params["fc_w"], params["fc_b"])


# ---------------- deterministic parameter init ----------------

def init_params(key):
    keys = iter(jax.random.split(key, 8 + NUM_LAYERS * 4))

    def nrm(shape, dtype=jnp.float32):
        return (0.02 * jax.random.normal(next(keys), shape, jnp.float32)).astype(dtype)

    H, I = HIDDEN, INTER
    p = dict(
        word_emb=nrm((VOCAB, H)),
        pos_emb=nrm((MAX_POS, H)),
        type_emb=nrm((TYPE_VOCAB, H)),
        emb_ln_g=jnp.ones((1, H), jnp.float32),
        emb_ln_b=jnp.zeros((1, H), jnp.float32),
        pool_w=nrm((H, H), ACT_DTYPE),
        pool_b=jnp.zeros((1, H), jnp.float32),
        fc_w=nrm((H, CLASS_NUM), ACT_DTYPE),
        fc_b=jnp.zeros((1, CLASS_NUM), jnp.float32),
        layers=[],
    )
    for _ in range(NUM_LAYERS):
        lp = dict(
            wqkv=nrm((H, 3 * H), ACT_DTYPE),
            bqkv=jnp.zeros((1, 3 * H), jnp.float32),
            wo=nrm((H, H)),                       # f32: sliced per-head inside kernel
            bo=jnp.zeros((1, H), jnp.float32),
            ln1_g=jnp.ones((1, H), jnp.float32),
            ln1_b=jnp.zeros((1, H), jnp.float32),
            w1=nrm((H, I), ACT_DTYPE),
            b1=jnp.zeros((1, I), jnp.float32),
            w2=nrm((I, H), ACT_DTYPE),
            b2=jnp.zeros((1, H), jnp.float32),
            ln2_g=jnp.ones((1, H), jnp.float32),
            ln2_b=jnp.zeros((1, H), jnp.float32),
        )
        p["layers"].append(lp)
    return p


if __name__ == "__main__":
    B, S = 2, 8
    key = jax.random.PRNGKey(0)
    kp, kid = jax.random.split(key)

    params = init_params(kp)
    input_ids = jax.random.randint(kid, (B, S), 0, VOCAB, dtype=jnp.int32)
    token_type_ids = jnp.zeros((B, S), jnp.int32)
    attention_mask = jnp.ones((B, S), jnp.int32).at[1, 6:].set(0)   # pad tail of seq 1

    fwd = jax.jit(servenet_forward)
    logits = fwd(params, input_ids, token_type_ids, attention_mask)
    jax.block_until_ready(logits)
    assert logits.shape == (B, CLASS_NUM), logits.shape
    assert bool(jnp.all(jnp.isfinite(logits)))
    print("KERNEL_OK")
</pallas_src>

<mosaic_0001>
module attributes {stable_mosaic.version = 11 : i64} {
  func.func @_embed_ln_kernel(%arg0: i32, %arg1: memref<1x8x32xf32, #tpu.memory_space<vmem>>, %arg2: memref<1x8x32xf32, #tpu.memory_space<vmem>>, %arg3: memref<1x8x32xf32, #tpu.memory_space<vmem>>, %arg4: memref<1x32xf32, #tpu.memory_space<vmem>>, %arg5: memref<1x32xf32, #tpu.memory_space<vmem>>, %arg6: memref<1x8x32xbf16, #tpu.memory_space<vmem>>) attributes {dimension_semantics = [#tpu.dimension_semantics<parallel>], iteration_bounds = array<i64: 2>, scalar_prefetch = 0 : i64, scratch_operands = 0 : i64, tpu.core_type = #tpu.core_type<tc>, window_params = [{transform_indices = @transform_0, window_bounds = array<i64: 1, 8, 32>}, {transform_indices = @transform_1, window_bounds = array<i64: 1, 8, 32>}, {pipeline_mode = #tpu.pipeline_mode<synchronous>, transform_indices = @transform_2, window_bounds = array<i64: 1, 8, 32>}, {pipeline_mode = #tpu.pipeline_mode<synchronous>, transform_indices = @transform_3, window_bounds = array<i64: 1, 32>}, {pipeline_mode = #tpu.pipeline_mode<synchronous>, transform_indices = @transform_4, window_bounds = array<i64: 1, 32>}, {transform_indices = @transform_5, window_bounds = array<i64: 1, 8, 32>}]} {
    %c0 = arith.constant 0 : index
    %c0_0 = arith.constant 0 : index
    %c0_1 = arith.constant 0 : index
    %0 = vector.load %arg1[%c0, %c0_0, %c0_1] : memref<1x8x32xf32, #tpu.memory_space<vmem>>, vector<1x8x32xf32>
    %1 = vector.shape_cast %0 : vector<1x8x32xf32> to vector<8x32xf32>
    %c0_2 = arith.constant 0 : index
    %c0_3 = arith.constant 0 : index
    %c0_4 = arith.constant 0 : index
    %2 = vector.load %arg2[%c0_2, %c0_3, %c0_4] : memref<1x8x32xf32, #tpu.memory_space<vmem>>, vector<1x8x32xf32>
    %3 = vector.shape_cast %2 : vector<1x8x32xf32> to vector<8x32xf32>
    %4 = arith.addf %1, %3 : vector<8x32xf32>
    %c0_5 = arith.constant 0 : index
    %c0_6 = arith.constant 0 : index
    %c0_7 = arith.constant 0 : index
    %5 = vector.load %arg3[%c0_5, %c0_6, %c0_7] : memref<1x8x32xf32, #tpu.memory_space<vmem>>, vector<1x8x32xf32>
    %6 = vector.shape_cast %5 : vector<1x8x32xf32> to vector<8x32xf32>
    %7 = arith.addf %4, %6 : vector<8x32xf32>
    %c0_8 = arith.constant 0 : index
    %c0_9 = arith.constant 0 : index
    %8 = vector.load %arg4[%c0_8, %c0_9] : memref<1x32xf32, #tpu.memory_space<vmem>>, vector<1x32xf32>
    %c0_10 = arith.constant 0 : index
    %c0_11 = arith.constant 0 : index
    %9 = vector.load %arg5[%c0_10, %c0_11] : memref<1x32xf32, #tpu.memory_space<vmem>>, vector<1x32xf32>
    %cst = arith.constant dense<0.000000e+00> : vector<8xf32>
    %10 = vector.multi_reduction <add>, %7, %cst [1] : vector<8x32xf32> to vector<8xf32>
    %11 = vector.shape_cast %10 : vector<8xf32> to vector<8x1xf32>
    %cst_12 = arith.constant 3.200000e+01 : f32
    %12 = vector.broadcast %cst_12 : f32 to vector<8x1xf32>
    %13 = arith.divf %11, %12 : vector<8x1xf32>
    %14 = vector.broadcast %13 : vector<8x1xf32> to vector<8x32xf32>
    %15 = arith.subf %7, %14 : vector<8x32xf32>
    %16 = arith.mulf %15, %15 : vector<8x32xf32>
    %cst_13 = arith.constant dense<0.000000e+00> : vector<8xf32>
    %17 = vector.multi_reduction <add>, %16, %cst_13 [1] : vector<8x32xf32> to vector<8xf32>
    %18 = vector.shape_cast %17 : vector<8xf32> to vector<8x1xf32>
    %cst_14 = arith.constant 3.200000e+01 : f32
    %19 = vector.broadcast %cst_14 : f32 to vector<8x1xf32>
    %20 = arith.divf %18, %19 : vector<8x1xf32>
    %cst_15 = arith.constant 9.99999996E-13 : f32
    %21 = vector.broadcast %cst_15 : f32 to vector<8x1xf32>
    %22 = arith.addf %20, %21 : vector<8x1xf32>
    %23 = math.rsqrt %22 : vector<8x1xf32>
    %24 = vector.broadcast %23 : vector<8x1xf32> to vector<8x32xf32>
    %25 = arith.mulf %15, %24 : vector<8x32xf32>
    %26 = vector.broadcast %8 : vector<1x32xf32> to vector<8x32xf32>
    %27 = arith.mulf %25, %26 : vector<8x32xf32>
    %28 = vector.broadcast %9 : vector<1x32xf32> to vector<8x32xf32>
    %29 = arith.addf %27, %28 : vector<8x32xf32>
    %30 = arith.truncf %29 : vector<8x32xf32> to vector<8x32xbf16>
    %c0_16 = arith.constant 0 : index
    %c0_17 = arith.constant 0 : index
    %c0_18 = arith.constant 0 : index
    %31 = vector.load %arg6[%c0_16, %c0_17, %c0_18] : memref<1x8x32xbf16, #tpu.memory_space<vmem>>, vector<1x8x32xbf16>
    %32 = vector.shape_cast %31 : vector<1x8x32xbf16> to vector<8x32xbf16>
    %33 = vector.shape_cast %30 : vector<8x32xbf16> to vector<1x8x32xbf16>
    tpu.vector_store %arg6[%c0_16, %c0_17, %c0_18], %33 {strides = array<i32>} : memref<1x8x32xbf16, #tpu.memory_space<vmem>>, vector<1x8x32xbf16>,
    return
  }
  func.func @transform_0(%arg0: i32) -> (i32, i32, i32) {
    %c0_i32 = arith.constant 0 : i32
    %c0_i32_0 = arith.constant 0 : i32
    %c0_i32_1 = arith.constant 0 : i32
    return %arg0, %c0_i32, %c0_i32_0 : i32, i32, i32
  }
  func.func @transform_1(%arg0: i32) -> (i32, i32, i32) {
    %c0_i32 = arith.constant 0 : i32
    %c0_i32_0 = arith.constant 0 : i32
    %c0_i32_1 = arith.constant 0 : i32
    return %arg0, %c0_i32, %c0_i32_0 : i32, i32, i32
  }
  func.func @transform_2(%arg0: i32) -> (i32, i32, i32) {
    %c0_i32 = arith.constant 0 : i32
    %c0_i32_0 = arith.constant 0 : i32
    %c0_i32_1 = arith.constant 0 : i32
    %c0_i32_2 = arith.constant 0 : i32
    return %c0_i32, %c0_i32_0, %c0_i32_1 : i32, i32, i32
  }
  func.func @transform_3(%arg0: i32) -> (i32, i32) {
    %c0_i32 = arith.constant 0 : i32
    %c0_i32_0 = arith.constant 0 : i32
    %c0_i32_1 = arith.constant 0 : i32
    return %c0_i32, %c0_i32_0 : i32, i32
  }
  func.func @transform_4(%arg0: i32) -> (i32, i32) {
    %c0_i32 = arith.constant 0 : i32
    %c0_i32_0 = arith.constant 0 : i32
    %c0_i32_1 = arith.constant 0 : i32
    return %c0_i32, %c0_i32_0 : i32, i32
  }
  func.func @transform_5(%arg0: i32) -> (i32, i32, i32) {
    %c0_i32 = arith.constant 0 : i32
    %c0_i32_0 = arith.constant 0 : i32
    %c0_i32_1 = arith.constant 0 : i32
    return %arg0, %c0_i32, %c0_i32_0 : i32, i32, i32
  }
}

module attributes {stable_mosaic.version = 11 : i64} {
  func.func @_bert_layer_kernel(%arg0: i32, %arg1: memref<1x8x32xbf16, #tpu.memory_space<vmem>>, %arg2: memref<1x1x8xf32, #tpu.memory_space<vmem>>, %arg3: memref<32x96xbf16, #tpu.memory_space<vmem>>, %arg4: memref<1x96xf32, #tpu.memory_space<vmem>>, %arg5: memref<32x32xf32, #tpu.memory_space<vmem>>, %arg6: memref<1x32xf32, #tpu.memory_space<vmem>>, %arg7: memref<1x32xf32, #tpu.memory_space<vmem>>, %arg8: memref<1x32xf32, #tpu.memory_space<vmem>>, %arg9: memref<32x64xbf16, #tpu.memory_space<vmem>>, %arg10: memref<1x64xf32, #tpu.memory_space<vmem>>, %arg11: memref<64x32xbf16, #tpu.memory_space<vmem>>, %arg12: memref<1x32xf32, #tpu.memory_space<vmem>>, %arg13: memref<1x32xf32, #tpu.memory_space<vmem>>, %arg14: memref<1x32xf32, #tpu.memory_space<vmem>>, %arg15: memref<1x8x32xbf16, #tpu.memory_space<vmem>>) attributes {dimension_semantics = [#tpu.dimension_semantics<parallel>], iteration_bounds = array<i64: 2>, scalar_prefetch = 0 : i64, scratch_operands = 0 : i64, tpu.core_type = #tpu.core_type<tc>, window_params = [{transform_indices = @transform_0, window_bounds = array<i64: 1, 8, 32>}, {transform_indices = @transform_1, window_bounds = array<i64: 1, 1, 8>}, {pipeline_mode = #tpu.pipeline_mode<synchronous>, transform_indices = @transform_2, window_bounds = array<i64: 32, 96>}, {pipeline_mode = #tpu.pipeline_mode<synchronous>, transform_indices = @transform_3, window_bounds = array<i64: 1, 96>}, {pipeline_mode = #tpu.pipeline_mode<synchronous>, transform_indices = @transform_4, window_bounds = array<i64: 32, 32>}, {pipeline_mode = #tpu.pipeline_mode<synchronous>, transform_indices = @transform_5, window_bounds = array<i64: 1, 32>}, {pipeline_mode = #tpu.pipeline_mode<synchronous>, transform_indices = @transform_6, window_bounds = array<i64: 1, 32>}, {pipeline_mode = #tpu.pipeline_mode<synchronous>, transform_indices = @transform_7, window_bounds = array<i64: 1, 32>}, {pipeline_mode = #tpu.pipeline_mode<synchronous>, transform_indices = @transform_8, window_bounds = array<i64: 32, 64>}, {pipeline_mode = #tpu.pipeline_mode<synchronous>, transform_indices = @transform_9, window_bounds = array<i64: 1, 64>}, {pipeline_mode = #tpu.pipeline_mode<synchronous>, transform_indices = @transform_10, window_bounds = array<i64: 64, 32>}, {pipeline_mode = #tpu.pipeline_mode<synchronous>, transform_indices = @transform_11, window_bounds = array<i64: 1, 32>}, {pipeline_mode = #tpu.pipeline_mode<synchronous>, transform_indices = @transform_12, window_bounds = array<i64: 1, 32>}, {pipeline_mode = #tpu.pipeline_mode<synchronous>, transform_indices = @transform_13, window_bounds = array<i64: 1, 32>}, {transform_indices = @transform_14, window_bounds = array<i64: 1, 8, 32>}]} {
    %c0 = arith.constant 0 : index
    %c0_0 = arith.constant 0 : index
    %c0_1 = arith.constant 0 : index
    %0 = vector.load %arg1[%c0, %c0_0, %c0_1] : memref<1x8x32xbf16, #tpu.memory_space<vmem>>, vector<1x8x32xbf16>
    %1 = vector.shape_cast %0 : vector<1x8x32xbf16> to vector<8x32xbf16>
    %c0_2 = arith.constant 0 : index
    %c0_3 = arith.constant 0 : index
    %c0_4 = arith.constant 0 : index
    %2 = vector.load %arg2[%c0_2, %c0_3, %c0_4] : memref<1x1x8xf32, #tpu.memory_space<vmem>>, vector<1x1x8xf32>
    %3 = vector.shape_cast %2 : vector<1x1x8xf32> to vector<1x8xf32>
    %c0_5 = arith.constant 0 : index
    %c0_6 = arith.constant 0 : index
    %4 = vector.load %arg3[%c0_5, %c0_6] : memref<32x96xbf16, #tpu.memory_space<vmem>>, vector<32x96xbf16>
    %cst = arith.constant dense<0.000000e+00> : vector<8x96xf32>
    %5 = tpu.matmul %1, %4, %cst {dimension_numbers = #tpu.dot_dimension_numbers<[1], [0], [0], [1], [0, 0, 1, 1], [], []>} : vector<8x32xbf16>, vector<32x96xbf16>, vector<8x96xf32> -> vector<8x96xf32>
    %c0_7 = arith.constant 0 : index
    %c0_8 = arith.constant 0 : index
    %6 = vector.load %arg4[%c0_7, %c0_8] : memref<1x96xf32, #tpu.memory_space<vmem>>, vector<1x96xf32>
    %7 = vector.broadcast %6 : vector<1x96xf32> to vector<8x96xf32>
    %8 = arith.addf %5, %7 : vector<8x96xf32>
    %9 = tpu.transpose %8, [1, 0] : vector<8x96xf32> -> vector<96x8xf32>
    %cst_9 = arith.constant 0.000000e+00 : f32
    %10 = vector.broadcast %cst_9 : f32 to vector<8x32xf32>
    %11 = vector.extract_strided_slice %9 {offsets = [0, 0], sizes = [8, 8], strides = [1, 1]} : vector<96x8xf32> to vector<8x8xf32>
    %12 = vector.extract_strided_slice %9 {offsets = [32, 0], sizes = [8, 8], strides = [1, 1]} : vector<96x8xf32> to vector<8x8xf32>
    %13 = vector.extract_strided_slice %9 {offsets = [64, 0], sizes = [8, 8], strides = [1, 1]} : vector<96x8xf32> to vector<8x8xf32>
    %14 = tpu.transpose %11, [1, 0] : vector<8x8xf32> -> vector<8x8xf32>
    %cst_10 = arith.constant dense<0.000000e+00> : vector<8x8xf32>
    %15 = tpu.matmul %14, %12, %cst_10 {dimension_numbers = #tpu.dot_dimension_numbers<[1], [0], [0], [1], [0, 0, 1, 1], [], []>} : vector<8x8xf32>, vector<8x8xf32>, vector<8x8xf32> -> vector<8x8xf32>
    %cst_11 = arith.constant 0.353553385 : f32
    %16 = vector.broadcast %cst_11 : f32 to vector<8x8xf32>
    %17 = arith.mulf %15, %16 : vector<8x8xf32>
    %18 = vector.broadcast %3 : vector<1x8xf32> to vector<8x8xf32>
    %19 = arith.addf %17, %18 : vector<8x8xf32>
    %cst_12 = arith.constant dense<0xFF800000> : vector<8xf32>
    %20 = vector.multi_reduction <maximumf>, %19, %cst_12 [1] : vector<8x8xf32> to vector<8xf32>
    %21 = vector.shape_cast %20 : vector<8xf32> to vector<8x1xf32>
    %22 = vector.broadcast %21 : vector<8x1xf32> to vector<8x8xf32>
    %23 = arith.subf %19, %22 : vector<8x8xf32>
    %24 = math.exp %23 : vector<8x8xf32>
    %cst_13 = arith.constant dense<0.000000e+00> : vector<8xf32>
    %25 = vector.multi_reduction <add>, %24, %cst_13 [1] : vector<8x8xf32> to vector<8xf32>
    %26 = vector.shape_cast %25 : vector<8xf32> to vector<8x1xf32>
    %27 = tpu.reciprocal %26 {approx = true} : vector<8x1xf32> -> vector<8x1xf32>
    %28 = vector.broadcast %27 : vector<8x1xf32> to vector<8x8xf32>
    %29 = arith.mulf %24, %28 : vector<8x8xf32>
    %30 = tpu.transpose %13, [1, 0] : vector<8x8xf32> -> vector<8x8xf32>
    %cst_14 = arith.constant dense<0.000000e+00> : vector<8x8xf32>
    %31 = tpu.matmul %29, %30, %cst_14 {dimension_numbers = #tpu.dot_dimension_numbers<[1], [0], [0], [1], [0, 0, 1, 1], [], []>} : vector<8x8xf32>, vector<8x8xf32>, vector<8x8xf32> -> vector<8x8xf32>
    %c0_15 = arith.constant 0 : index
    %c0_16 = arith.constant 0 : index
    %32 = vector.load %arg5[%c0_15, %c0_16] : memref<32x32xf32, #tpu.memory_space<vmem>>, vector<8x32xf32>
    %cst_17 = arith.constant dense<0.000000e+00> : vector<8x32xf32>
    %33 = tpu.matmul %31, %32, %cst_17 {dimension_numbers = #tpu.dot_dimension_numbers<[1], [0], [0], [1], [0, 0, 1, 1], [], []>} : vector<8x8xf32>, vector<8x32xf32>, vector<8x32xf32> -> vector<8x32xf32>
    %34 = arith.addf %10, %33 : vector<8x32xf32>
    %35 = vector.extract_strided_slice %9 {offsets = [8, 0], sizes = [8, 8], strides = [1, 1]} : vector<96x8xf32> to vector<8x8xf32>
    %36 = vector.extract_strided_slice %9 {offsets = [40, 0], sizes = [8, 8], strides = [1, 1]} : vector<96x8xf32> to vector<8x8xf32>
    %37 = vector.extract_strided_slice %9 {offsets = [72, 0], sizes = [8, 8], strides = [1, 1]} : vector<96x8xf32> to vector<8x8xf32>
    %38 = tpu.transpose %35, [1, 0] : vector<8x8xf32> -> vector<8x8xf32>
    %cst_18 = arith.constant dense<0.000000e+00> : vector<8x8xf32>
    %39 = tpu.matmul %38, %36, %cst_18 {dimension_numbers = #tpu.dot_dimension_numbers<[1], [0], [0], [1], [0, 0, 1, 1], [], []>} : vector<8x8xf32>, vector<8x8xf32>, vector<8x8xf32> -> vector<8x8xf32>
    %cst_19 = arith.constant 0.353553385 : f32
    %40 = vector.broadcast %cst_19 : f32 to vector<8x8xf32>
    %41 = arith.mulf %39, %40 : vector<8x8xf32>
    %42 = vector.broadcast %3 : vector<1x8xf32> to vector<8x8xf32>
    %43 = arith.addf %41, %42 : vector<8x8xf32>
    %cst_20 = arith.constant dense<0xFF800000> : vector<8xf32>
    %44 = vector.multi_reduction <maximumf>, %43, %cst_20 [1] : vector<8x8xf32> to vector<8xf32>
    %45 = vector.shape_cast %44 : vector<8xf32> to vector<8x1xf32>
    %46 = vector.broadcast %45 : vector<8x1xf32> to vector<8x8xf32>
    %47 = arith.subf %43, %46 : vector<8x8xf32>
    %48 = math.exp %47 : vector<8x8xf32>
    %cst_21 = arith.constant dense<0.000000e+00> : vector<8xf32>
    %49 = vector.multi_reduction <add>, %48, %cst_21 [1] : vector<8x8xf32> to vector<8xf32>
    %50 = vector.shape_cast %49 : vector<8xf32> to vector<8x1xf32>
    %51 = tpu.reciprocal %50 {approx = true} : vector<8x1xf32> -> vector<8x1xf32>
    %52 = vector.broadcast %51 : vector<8x1xf32> to vector<8x8xf32>
    %53 = arith.mulf %48, %52 : vector<8x8xf32>
    %54 = tpu.transpose %37, [1, 0] : vector<8x8xf32> -> vector<8x8xf32>
    %cst_22 = arith.constant dense<0.000000e+00> : vector<8x8xf32>
    %55 = tpu.matmul %53, %54, %cst_22 {dimension_numbers = #tpu.dot_dimension_numbers<[1], [0], [0], [1], [0, 0, 1, 1], [], []>} : vector<8x8xf32>, vector<8x8xf32>, vector<8x8xf32> -> vector<8x8xf32>
    %c8 = arith.constant 8 : index
    %c0_23 = arith.constant 0 : index
    %56 = vector.load %arg5[%c8, %c0_23] : memref<32x32xf32, #tpu.memory_space<vmem>>, vector<8x32xf32>
    %cst_24 = arith.constant dense<0.000000e+00> : vector<8x32xf32>
    %57 = tpu.matmul %55, %56, %cst_24 {dimension_numbers = #tpu.dot_dimension_numbers<[1], [0], [0], [1], [0, 0, 1, 1], [], []>} : vector<8x8xf32>, vector<8x32xf32>, vector<8x32xf32> -> vector<8x32xf32>
    %58 = arith.addf %34, %57 : vector<8x32xf32>
    %59 = vector.extract_strided_slice %9 {offsets = [16, 0], sizes = [8, 8], strides = [1, 1]} : vector<96x8xf32> to vector<8x8xf32>
    %60 = vector.extract_strided_slice %9 {offsets = [48, 0], sizes = [8, 8], strides = [1, 1]} : vector<96x8xf32> to vector<8x8xf32>
    %61 = vector.extract_strided_slice %9 {offsets = [80, 0], sizes = [8, 8], strides = [1, 1]} : vector<96x8xf32> to vector<8x8xf32>
    %62 = tpu.transpose %59, [1, 0] : vector<8x8xf32> -> vector<8x8xf32>
    %cst_25 = arith.constant dense<0.000000e+00> : vector<8x8xf32>
    %63 = tpu.matmul %62, %60, %cst_25 {dimension_numbers = #tpu.dot_dimension_numbers<[1], [0], [0], [1], [0, 0, 1, 1], [], []>} : vector<8x8xf32>, vector<8x8xf32>, vector<8x8xf32> -> vector<8x8xf32>
    %cst_26 = arith.constant 0.353553385 : f32
    %64 = vector.broadcast %cst_26 : f32 to vector<8x8xf32>
    %65 = arith.mulf %63, %64 : vector<8x8xf32>
    %66 = vector.broadcast %3 : vector<1x8xf32> to vector<8x8xf32>
    %67 = arith.addf %65, %66 : vector<8x8xf32>
    %cst_27 = arith.constant dense<0xFF800000> : vector<8xf32>
    %68 = vector.multi_reduction <maximumf>, %67, %cst_27 [1] : vector<8x8xf32> to vector<8xf32>
    %69 = vector.shape_cast %68 : vector<8xf32> to vector<8x1xf32>
    %70 = vector.broadcast %69 : vector<8x1xf32> to vector<8x8xf32>
    %71 = arith.subf %67, %70 : vector<8x8xf32>
    %72 = math.exp %71 : vector<8x8xf32>
    %cst_28 = arith.constant dense<0.000000e+00> : vector<8xf32>
    %73 = vector.multi_reduction <add>, %72, %cst_28 [1] : vector<8x8xf32> to vector<8xf32>
    %74 = vector.shape_cast %73 : vector<8xf32> to vector<8x1xf32>
    %75 = tpu.reciprocal %74 {approx = true} : vector<8x1xf32> -> vector<8x1xf32>
    %76 = vector.broadcast %75 : vector<8x1xf32> to vector<8x8xf32>
    %77 = arith.mulf %72, %76 : vector<8x8xf32>
    %78 = tpu.transpose %61, [1, 0] : vector<8x8xf32> -> vector<8x8xf32>
    %cst_29 = arith.constant dense<0.000000e+00> : vector<8x8xf32>
    %79 = tpu.matmul %77, %78, %cst_29 {dimension_numbers = #tpu.dot_dimension_numbers<[1], [0], [0], [1], [0, 0, 1, 1], [], []>} : vector<8x8xf32>, vector<8x8xf32>, vector<8x8xf32> -> vector<8x8xf32>
    %c16 = arith.constant 16 : index
    %c0_30 = arith.constant 0 : index
    %80 = vector.load %arg5[%c16, %c0_30] : memref<32x32xf32, #tpu.memory_space<vmem>>, vector<8x32xf32>
    %cst_31 = arith.constant dense<0.000000e+00> : vector<8x32xf32>
    %81 = tpu.matmul %79, %80, %cst_31 {dimension_numbers = #tpu.dot_dimension_numbers<[1], [0], [0], [1], [0, 0, 1, 1], [], []>} : vector<8x8xf32>, vector<8x32xf32>, vector<8x32xf32> -> vector<8x32xf32>
    %82 = arith.addf %58, %81 : vector<8x32xf32>
    %83 = vector.extract_strided_slice %9 {offsets = [24, 0], sizes = [8, 8], strides = [1, 1]} : vector<96x8xf32> to vector<8x8xf32>
    %84 = vector.extract_strided_slice %9 {offsets = [56, 0], sizes = [8, 8], strides = [1, 1]} : vector<96x8xf32> to vector<8x8xf32>
    %85 = vector.extract_strided_slice %9 {offsets = [88, 0], sizes = [8, 8], strides = [1, 1]} : vector<96x8xf32> to vector<8x8xf32>
    %86 = tpu.transpose %83, [1, 0] : vector<8x8xf32> -> vector<8x8xf32>
    %cst_32 = arith.constant dense<0.000000e+00> : vector<8x8xf32>
    %87 = tpu.matmul %86, %84, %cst_32 {dimension_numbers = #tpu.dot_dimension_numbers<[1], [0], [0], [1], [0, 0, 1, 1], [], []>} : vector<8x8xf32>, vector<8x8xf32>, vector<8x8xf32> -> vector<8x8xf32>
    %cst_33 = arith.constant 0.353553385 : f32
    %88 = vector.broadcast %cst_33 : f32 to vector<8x8xf32>
    %89 = arith.mulf %87, %88 : vector<8x8xf32>
    %90 = vector.broadcast %3 : vector<1x8xf32> to vector<8x8xf32>
    %91 = arith.addf %89, %90 : vector<8x8xf32>
    %cst_34 = arith.constant dense<0xFF800000> : vector<8xf32>
    %92 = vector.multi_reduction <maximumf>, %91, %cst_34 [1] : vector<8x8xf32> to vector<8xf32>
    %93 = vector.shape_cast %92 : vector<8xf32> to vector<8x1xf32>
    %94 = vector.broadcast %93 : vector<8x1xf32> to vector<8x8xf32>
    %95 = arith.subf %91, %94 : vector<8x8xf32>
    %96 = math.exp %95 : vector<8x8xf32>
    %cst_35 = arith.constant dense<0.000000e+00> : vector<8xf32>
    %97 = vector.multi_reduction <add>, %96, %cst_35 [1] : vector<8x8xf32> to vector<8xf32>
    %98 = vector.shape_cast %97 : vector<8xf32> to vector<8x1xf32>
    %99 = tpu.reciprocal %98 {approx = true} : vector<8x1xf32> -> vector<8x1xf32>
    %100 = vector.broadcast %99 : vector<8x1xf32> to vector<8x8xf32>
    %101 = arith.mulf %96, %100 : vector<8x8xf32>
    %102 = tpu.transpose %85, [1, 0] : vector<8x8xf32> -> vector<8x8xf32>
    %cst_36 = arith.constant dense<0.000000e+00> : vector<8x8xf32>
    %103 = tpu.matmul %101, %102, %cst_36 {dimension_numbers = #tpu.dot_dimension_numbers<[1], [0], [0], [1], [0, 0, 1, 1], [], []>} : vector<8x8xf32>, vector<8x8xf32>, vector<8x8xf32> -> vector<8x8xf32>
    %c24 = arith.constant 24 : index
    %c0_37 = arith.constant 0 : index
    %104 = vector.load %arg5[%c24, %c0_37] : memref<32x32xf32, #tpu.memory_space<vmem>>, vector<8x32xf32>
    %cst_38 = arith.constant dense<0.000000e+00> : vector<8x32xf32>
    %105 = tpu.matmul %103, %104, %cst_38 {dimension_numbers = #tpu.dot_dimension_numbers<[1], [0], [0], [1], [0, 0, 1, 1], [], []>} : vector<8x8xf32>, vector<8x32xf32>, vector<8x32xf32> -> vector<8x32xf32>
    %106 = arith.addf %82, %105 : vector<8x32xf32>
    %c0_39 = arith.constant 0 : index
    %c0_40 = arith.constant 0 : index
    %107 = vector.load %arg6[%c0_39, %c0_40] : memref<1x32xf32, #tpu.memory_space<vmem>>, vector<1x32xf32>
    %108 = vector.broadcast %107 : vector<1x32xf32> to vector<8x32xf32>
    %109 = arith.addf %106, %108 : vector<8x32xf32>
    %110 = arith.extf %1 : vector<8x32xbf16> to vector<8x32xf32>
    %111 = arith.addf %109, %110 : vector<8x32xf32>
    %c0_41 = arith.constant 0 : index
    %c0_42 = arith.constant 0 : index
    %112 = vector.load %arg7[%c0_41, %c0_42] : memref<1x32xf32, #tpu.memory_space<vmem>>, vector<1x32xf32>
    %c0_43 = arith.constant 0 : index
    %c0_44 = arith.constant 0 : index
    %113 = vector.load %arg8[%c0_43, %c0_44] : memref<1x32xf32, #tpu.memory_space<vmem>>, vector<1x32xf32>
    %cst_45 = arith.constant dense<0.000000e+00> : vector<8xf32>
    %114 = vector.multi_reduction <add>, %111, %cst_45 [1] : vector<8x32xf32> to vector<8xf32>
    %115 = vector.shape_cast %114 : vector<8xf32> to vector<8x1xf32>
    %cst_46 = arith.constant 3.200000e+01 : f32
    %116 = vector.broadcast %cst_46 : f32 to vector<8x1xf32>
    %117 = arith.divf %115, %116 : vector<8x1xf32>
    %118 = vector.broadcast %117 : vector<8x1xf32> to vector<8x32xf32>
    %119 = arith.subf %111, %118 : vector<8x32xf32>
    %120 = arith.mulf %119, %119 : vector<8x32xf32>
    %cst_47 = arith.constant dense<0.000000e+00> : vector<8xf32>
    %121 = vector.multi_reduction <add>, %120, %cst_47 [1] : vector<8x32xf32> to vector<8xf32>
    %122 = vector.shape_cast %121 : vector<8xf32> to vector<8x1xf32>
    %cst_48 = arith.constant 3.200000e+01 : f32
    %123 = vector.broadcast %cst_48 : f32 to vector<8x1xf32>
    %124 = arith.divf %122, %123 : vector<8x1xf32>
    %cst_49 = arith.constant 9.99999996E-13 : f32
    %125 = vector.broadcast %cst_49 : f32 to vector<8x1xf32>
    %126 = arith.addf %124, %125 : vector<8x1xf32>
    %127 = math.rsqrt %126 : vector<8x1xf32>
    %128 = vector.broadcast %127 : vector<8x1xf32> to vector<8x32xf32>
    %129 = arith.mulf %119, %128 : vector<8x32xf32>
    %130 = vector.broadcast %112 : vector<1x32xf32> to vector<8x32xf32>
    %131 = arith.mulf %129, %130 : vector<8x32xf32>
    %132 = vector.broadcast %113 : vector<1x32xf32> to vector<8x32xf32>
    %133 = arith.addf %131, %132 : vector<8x32xf32>
    %134 = arith.truncf %133 : vector<8x32xf32> to vector<8x32xbf16>
    %c0_50 = arith.constant 0 : index
    %c0_51 = arith.constant 0 : index
    %135 = vector.load %arg9[%c0_50, %c0_51] : memref<32x64xbf16, #tpu.memory_space<vmem>>, vector<32x64xbf16>
    %cst_52 = arith.constant dense<0.000000e+00> : vector<8x64xf32>
    %136 = tpu.matmul %134, %135, %cst_52 {dimension_numbers = #tpu.dot_dimension_numbers<[1], [0], [0], [1], [0, 0, 1, 1], [], []>} : vector<8x32xbf16>, vector<32x64xbf16>, vector<8x64xf32> -> vector<8x64xf32>
    %c0_53 = arith.constant 0 : index
    %c0_54 = arith.constant 0 : index
    %137 = vector.load %arg10[%c0_53, %c0_54] : memref<1x64xf32, #tpu.memory_space<vmem>>, vector<1x64xf32>
    %138 = vector.broadcast %137 : vector<1x64xf32> to vector<8x64xf32>
    %139 = arith.addf %136, %138 : vector<8x64xf32>
    %cst_55 = arith.constant 5.000000e-01 : f32
    %140 = vector.broadcast %cst_55 : f32 to vector<8x64xf32>
    %141 = arith.mulf %140, %139 : vector<8x64xf32>
    %cst_56 = arith.constant 4.471500e-02 : f32
    %142 = vector.broadcast %cst_56 : f32 to vector<8x64xf32>
    %143 = arith.mulf %142, %139 : vector<8x64xf32>
    %144 = arith.mulf %143, %139 : vector<8x64xf32>
    %145 = arith.mulf %144, %139 : vector<8x64xf32>
    %146 = arith.addf %139, %145 : vector<8x64xf32>
    %cst_57 = arith.constant 0.797884583 : f32
    %147 = vector.broadcast %cst_57 : f32 to vector<8x64xf32>
    %148 = arith.mulf %147, %146 : vector<8x64xf32>
    %149 = math.tanh %148 : vector<8x64xf32>
    %cst_58 = arith.constant 1.000000e+00 : f32
    %150 = vector.broadcast %cst_58 : f32 to vector<8x64xf32>
    %151 = arith.addf %150, %149 : vector<8x64xf32>
    %152 = arith.mulf %141, %151 : vector<8x64xf32>
    %153 = arith.truncf %152 : vector<8x64xf32> to vector<8x64xbf16>
    %c0_59 = arith.constant 0 : index
    %c0_60 = arith.constant 0 : index
    %154 = vector.load %arg11[%c0_59, %c0_60] : memref<64x32xbf16, #tpu.memory_space<vmem>>, vector<64x32xbf16>
    %cst_61 = arith.constant dense<0.000000e+00> : vector<8x32xf32>
    %155 = tpu.matmul %153, %154, %cst_61 {dimension_numbers = #tpu.dot_dimension_numbers<[1], [0], [0], [1], [0, 0, 1, 1], [], []>} : vector<8x64xbf16>, vector<64x32xbf16>, vector<8x32xf32> -> vector<8x32xf32>
    %c0_62 = arith.constant 0 : index
    %c0_63 = arith.constant 0 : index
    %156 = vector.load %arg12[%c0_62, %c0_63] : memref<1x32xf32, #tpu.memory_space<vmem>>, vector<1x32xf32>
    %157 = vector.broadcast %156 : vector<1x32xf32> to vector<8x32xf32>
    %158 = arith.addf %155, %157 : vector<8x32xf32>
    %159 = arith.addf %158, %133 : vector<8x32xf32>
    %c0_64 = arith.constant 0 : index
    %c0_65 = arith.constant 0 : index
    %160 = vector.load %arg13[%c0_64, %c0_65] : memref<1x32xf32, #tpu.memory_space<vmem>>, vector<1x32xf32>
    %c0_66 = arith.constant 0 : index
    %c0_67 = arith.constant 0 : index
    %161 = vector.load %arg14[%c0_66, %c0_67] : memref<1x32xf32, #tpu.memory_space<vmem>>, vector<1x32xf32>
    %cst_68 = arith.constant dense<0.000000e+00> : vector<8xf32>
    %162 = vector.multi_reduction <add>, %159, %cst_68 [1] : vector<8x32xf32> to vector<8xf32>
    %163 = vector.shape_cast %162 : vector<8xf32> to vector<8x1xf32>
    %cst_69 = arith.constant 3.200000e+01 : f32
    %164 = vector.broadcast %cst_69 : f32 to vector<8x1xf32>
    %165 = arith.divf %163, %164 : vector<8x1xf32>
    %166 = vector.broadcast %165 : vector<8x1xf32> to vector<8x32xf32>
    %167 = arith.subf %159, %166 : vector<8x32xf32>
    %168 = arith.mulf %167, %167 : vector<8x32xf32>
    %cst_70 = arith.constant dense<0.000000e+00> : vector<8xf32>
    %169 = vector.multi_reduction <add>, %168, %cst_70 [1] : vector<8x32xf32> to vector<8xf32>
    %170 = vector.shape_cast %169 : vector<8xf32> to vector<8x1xf32>
    %cst_71 = arith.constant 3.200000e+01 : f32
    %171 = vector.broadcast %cst_71 : f32 to vector<8x1xf32>
    %172 = arith.divf %170, %171 : vector<8x1xf32>
    %cst_72 = arith.constant 9.99999996E-13 : f32
    %173 = vector.broadcast %cst_72 : f32 to vector<8x1xf32>
    %174 = arith.addf %172, %173 : vector<8x1xf32>
    %175 = math.rsqrt %174 : vector<8x1xf32>
    %176 = vector.broadcast %175 : vector<8x1xf32> to vector<8x32xf32>
    %177 = arith.mulf %167, %176 : vector<8x32xf32>
    %178 = vector.broadcast %160 : vector<1x32xf32> to vector<8x32xf32>
    %179 = arith.mulf %177, %178 : vector<8x32xf32>
    %180 = vector.broadcast %161 : vector<1x32xf32> to vector<8x32xf32>
    %181 = arith.addf %179, %180 : vector<8x32xf32>
    %182 = arith.truncf %181 : vector<8x32xf32> to vector<8x32xbf16>
    %c0_73 = arith.constant 0 : index
    %c0_74 = arith.constant 0 : index
    %c0_75 = arith.constant 0 : index
    %183 = vector.load %arg15[%c0_73, %c0_74, %c0_75] : memref<1x8x32xbf16, #tpu.memory_space<vmem>>, vector<1x8x32xbf16>
    %184 = vector.shape_cast %183 : vector<1x8x32xbf16> to vector<8x32xbf16>
    %185 = vector.shape_cast %182 : vector<8x32xbf16> to vector<1x8x32xbf16>
    tpu.vector_store %arg15[%c0_73, %c0_74, %c0_75], %185 {strides = array<i32>} : memref<1x8x32xbf16, #tpu.memory_space<vmem>>, vector<1x8x32xbf16>,
    return
  }
  func.func @transform_0(%arg0: i32) -> (i32, i32, i32) {
    %c0_i32 = arith.constant 0 : i32
    %c0_i32_0 = arith.constant 0 : i32
    %c0_i32_1 = arith.constant 0 : i32
    return %arg0, %c0_i32, %c0_i32_0 : i32, i32, i32
  }
  func.func @transform_1(%arg0: i32) -> (i32, i32, i32) {
    %c0_i32 = arith.constant 0 : i32
    %c0_i32_0 = arith.constant 0 : i32
    %c0_i32_1 = arith.constant 0 : i32
    return %arg0, %c0_i32, %c0_i32_0 : i32, i32, i32
  }
  func.func @transform_2(%arg0: i32) -> (i32, i32) {
    %c0_i32 = arith.constant 0 : i32
    %c0_i32_0 = arith.constant 0 : i32
    %c0_i32_1 = arith.constant 0 : i32
    return %c0_i32, %c0_i32_0 : i32, i32
  }
  func.func @transform_3(%arg0: i32) -> (i32, i32) {
    %c0_i32 = arith.constant 0 : i32
    %c0_i32_0 = arith.constant 0 : i32
    %c0_i32_1 = arith.constant 0 : i32
    return %c0_i32, %c0_i32_0 : i32, i32
  }
  func.func @transform_4(%arg0: i32) -> (i32, i32) {
    %c0_i32 = arith.constant 0 : i32
    %c0_i32_0 = arith.constant 0 : i32
    %c0_i32_1 = arith.constant 0 : i32
    return %c0_i32, %c0_i32_0 : i32, i32
  }
  func.func @transform_5(%arg0: i32) -> (i32, i32) {
    %c0_i32 = arith.constant 0 : i32
    %c0_i32_0 = arith.constant 0 : i32
    %c0_i32_1 = arith.constant 0 : i32
    return %c0_i32, %c0_i32_0 : i32, i32
  }
  func.func @transform_6(%arg0: i32) -> (i32, i32) {
    %c0_i32 = arith.constant 0 : i32
    %c0_i32_0 = arith.constant 0 : i32
    %c0_i32_1 = arith.constant 0 : i32
    return %c0_i32, %c0_i32_0 : i32, i32
  }
  func.func @transform_7(%arg0: i32) -> (i32, i32) {
    %c0_i32 = arith.constant 0 : i32
    %c0_i32_0 = arith.constant 0 : i32
    %c0_i32_1 = arith.constant 0 : i32
    return %c0_i32, %c0_i32_0 : i32, i32
  }
  func.func @transform_8(%arg0: i32) -> (i32, i32) {
    %c0_i32 = arith.constant 0 : i32
    %c0_i32_0 = arith.constant 0 : i32
    %c0_i32_1 = arith.constant 0 : i32
    return %c0_i32, %c0_i32_0 : i32, i32
  }
  func.func @transform_9(%arg0: i32) -> (i32, i32) {
    %c0_i32 = arith.constant 0 : i32
    %c0_i32_0 = arith.constant 0 : i32
    %c0_i32_1 = arith.constant 0 : i32
    return %c0_i32, %c0_i32_0 : i32, i32
  }
  func.func @transform_10(%arg0: i32) -> (i32, i32) {
    %c0_i32 = arith.constant 0 : i32
    %c0_i32_0 = arith.constant 0 : i32
    %c0_i32_1 = arith.constant 0 : i32
    return %c0_i32, %c0_i32_0 : i32, i32
  }
  func.func @transform_11(%arg0: i32) -> (i32, i32) {
    %c0_i32 = arith.constant 0 : i32
    %c0_i32_0 = arith.constant 0 : i32
    %c0_i32_1 = arith.constant 0 : i32
    return %c0_i32, %c0_i32_0 : i32, i32
  }
  func.func @transform_12(%arg0: i32) -> (i32, i32) {
    %c0_i32 = arith.constant 0 : i32
    %c0_i32_0 = arith.constant 0 : i32
    %c0_i32_1 = arith.constant 0 : i32
    return %c0_i32, %c0_i32_0 : i32, i32
  }
  func.func @transform_13(%arg0: i32) -> (i32, i32) {
    %c0_i32 = arith.constant 0 : i32
    %c0_i32_0 = arith.constant 0 : i32
    %c0_i32_1 = arith.constant 0 : i32
    return %c0_i32, %c0_i32_0 : i32, i32
  }
  func.func @transform_14(%arg0: i32) -> (i32, i32, i32) {
    %c0_i32 = arith.constant 0 : i32
    %c0_i32_0 = arith.constant 0 : i32
    %c0_i32_1 = arith.constant 0 : i32
    return %arg0, %c0_i32, %c0_i32_0 : i32, i32, i32
  }
}

module attributes {stable_mosaic.version = 11 : i64} {
  func.func @_head_kernel(%arg0: i32, %arg1: memref<1x8x32xbf16, #tpu.memory_space<vmem>>, %arg2: memref<32x32xbf16, #tpu.memory_space<vmem>>, %arg3: memref<1x32xf32, #tpu.memory_space<vmem>>, %arg4: memref<32x10xbf16, #tpu.memory_space<vmem>>, %arg5: memref<1x10xf32, #tpu.memory_space<vmem>>, %arg6: memref<1x1x10xf32, #tpu.memory_space<vmem>>) attributes {dimension_semantics = [#tpu.dimension_semantics<parallel>], iteration_bounds = array<i64: 2>, scalar_prefetch = 0 : i64, scratch_operands = 0 : i64, tpu.core_type = #tpu.core_type<tc>, window_params = [{transform_indices = @transform_0, window_bounds = array<i64: 1, 8, 32>}, {pipeline_mode = #tpu.pipeline_mode<synchronous>, transform_indices = @transform_1, window_bounds = array<i64: 32, 32>}, {pipeline_mode = #tpu.pipeline_mode<synchronous>, transform_indices = @transform_2, window_bounds = array<i64: 1, 32>}, {pipeline_mode = #tpu.pipeline_mode<synchronous>, transform_indices = @transform_3, window_bounds = array<i64: 32, 10>}, {pipeline_mode = #tpu.pipeline_mode<synchronous>, transform_indices = @transform_4, window_bounds = array<i64: 1, 10>}, {transform_indices = @transform_5, window_bounds = array<i64: 1, 1, 10>}]} {
    %c0 = arith.constant 0 : index
    %c0_0 = arith.constant 0 : index
    %c0_1 = arith.constant 0 : index
    %0 = vector.load %arg1[%c0, %c0_0, %c0_1] : memref<1x8x32xbf16, #tpu.memory_space<vmem>>, vector<1x8x32xbf16>
    %1 = vector.shape_cast %0 : vector<1x8x32xbf16> to vector<8x32xbf16>
    %2 = vector.extract_strided_slice %1 {offsets = [0, 0], sizes = [1, 32], strides = [1, 1]} : vector<8x32xbf16> to vector<1x32xbf16>
    %c0_2 = arith.constant 0 : index
    %c0_3 = arith.constant 0 : index
    %3 = vector.load %arg2[%c0_2, %c0_3] : memref<32x32xbf16, #tpu.memory_space<vmem>>, vector<32x32xbf16>
    %cst = arith.constant dense<0.000000e+00> : vector<1x32xf32>
    %4 = tpu.matmul %2, %3, %cst {dimension_numbers = #tpu.dot_dimension_numbers<[1], [0], [0], [1], [0, 0, 1, 1], [], []>} : vector<1x32xbf16>, vector<32x32xbf16>, vector<1x32xf32> -> vector<1x32xf32>
    %c0_4 = arith.constant 0 : index
    %c0_5 = arith.constant 0 : index
    %5 = vector.load %arg3[%c0_4, %c0_5] : memref<1x32xf32, #tpu.memory_space<vmem>>, vector<1x32xf32>
    %6 = arith.addf %4, %5 : vector<1x32xf32>
    %7 = math.tanh %6 : vector<1x32xf32>
    %8 = arith.truncf %7 : vector<1x32xf32> to vector<1x32xbf16>
    %c0_6 = arith.constant 0 : index
    %c0_7 = arith.constant 0 : index
    %9 = vector.load %arg4[%c0_6, %c0_7] : memref<32x10xbf16, #tpu.memory_space<vmem>>, vector<32x10xbf16>
    %cst_8 = arith.constant dense<0.000000e+00> : vector<1x10xf32>
    %10 = tpu.matmul %8, %9, %cst_8 {dimension_numbers = #tpu.dot_dimension_numbers<[1], [0], [0], [1], [0, 0, 1, 1], [], []>} : vector<1x32xbf16>, vector<32x10xbf16>, vector<1x10xf32> -> vector<1x10xf32>
    %c0_9 = arith.constant 0 : index
    %c0_10 = arith.constant 0 : index
    %11 = vector.load %arg5[%c0_9, %c0_10] : memref<1x10xf32, #tpu.memory_space<vmem>>, vector<1x10xf32>
    %12 = arith.addf %10, %11 : vector<1x10xf32>
    %c0_11 = arith.constant 0 : index
    %c0_12 = arith.constant 0 : index
    %c0_13 = arith.constant 0 : index
    %13 = vector.load %arg6[%c0_11, %c0_12, %c0_13] : memref<1x1x10xf32, #tpu.memory_space<vmem>>, vector<1x1x10xf32>
    %14 = vector.shape_cast %13 : vector<1x1x10xf32> to vector<1x10xf32>
    %15 = vector.shape_cast %12 : vector<1x10xf32> to vector<1x1x10xf32>
    tpu.vector_store %arg6[%c0_11, %c0_12, %c0_13], %15 {strides = array<i32>} : memref<1x1x10xf32, #tpu.memory_space<vmem>>, vector<1x1x10xf32>,
    return
  }
  func.func @transform_0(%arg0: i32) -> (i32, i32, i32) {
    %c0_i32 = arith.constant 0 : i32
    %c0_i32_0 = arith.constant 0 : i32
    %c0_i32_1 = arith.constant 0 : i32
    return %arg0, %c0_i32, %c0_i32_0 : i32, i32, i32
  }
  func.func @transform_1(%arg0: i32) -> (i32, i32) {
    %c0_i32 = arith.constant 0 : i32
    %c0_i32_0 = arith.constant 0 : i32
    %c0_i32_1 = arith.constant 0 : i32
    return %c0_i32, %c0_i32_0 : i32, i32
  }
  func.func @transform_2(%arg0: i32) -> (i32, i32) {
    %c0_i32 = arith.constant 0 : i32
    %c0_i32_0 = arith.constant 0 : i32
    %c0_i32_1 = arith.constant 0 : i32
    return %c0_i32, %c0_i32_0 : i32, i32
  }
  func.func @transform_3(%arg0: i32) -> (i32, i32) {
    %c0_i32 = arith.constant 0 : i32
    %c0_i32_0 = arith.constant 0 : i32
    %c0_i32_1 = arith.constant 0 : i32
    return %c0_i32, %c0_i32_0 : i32, i32
  }
  func.func @transform_4(%arg0: i32) -> (i32, i32) {
    %c0_i32 = arith.constant 0 : i32
    %c0_i32_0 = arith.constant 0 : i32
    %c0_i32_1 = arith.constant 0 : i32
    return %c0_i32, %c0_i32_0 : i32, i32
  }
  func.func @transform_5(%arg0: i32) -> (i32, i32, i32) {
    %c0_i32 = arith.constant 0 : i32
    %c0_i32_0 = arith.constant 0 : i32
    %c0_i32_1 = arith.constant 0 : i32
    return %arg0, %c0_i32, %c0_i32_0 : i32, i32, i32
  }
}

</mosaic_0001>

<llo_original>
// kernel: servenet_forward.7
$region0: #{servenet_forward.7}
  #allocation0 [shape = 'u32[]', space=smem, size = 0x4, offset = 0x4, fixed_abs, tag = 'smem constant byte address 0x4 - core index']
  #allocation1 [shape = 'u32[144,128]{1,0:T(1,128)}', space=vmem, size = 0x12000, scoped, tag = 'internal scratch']
  %s0 = inlined_call_operand.vmem [shape: bf16[2,8,32], index: 0, kind: input, shape index: {}]
  %s1 = inlined_call_operand.vmem [shape: bf16[32,32], index: 1, kind: input, shape index: {}]
  %s2 = inlined_call_operand.vmem [shape: f32[1,32], index: 2, kind: input, shape index: {}]
  %s3 = inlined_call_operand.vmem [shape: bf16[32,10], index: 3, kind: input, shape index: {}]
  %s4 = inlined_call_operand.vmem [shape: f32[1,10], index: 4, kind: input, shape index: {}]
  %s5 = inlined_call_operand.hbm [shape: f32[2,1,10], index: 5, kind: output, shape index: {}]
  %s6 = sld [smem:[#allocation0]]
  $region53: #{servenet_forward.7} parent=0
    _
  %s8 = ssub.s32 1, %s6
  %s9 = scalar_select 0, %s8, %s6
  $region1: #{servenet_forward.7} parent=0
    #allocation2 [shape = 'u8[1024]{0}', space=vmem, size = 0x400, scoped, tag = 'output window, operand 0']
    #allocation3 [shape = 's32[2]{0}', space=sflag, size = 0x8, scoped, tag = 'scoped memory for servenet_forward.7']
    %10 = vsyncpa [#allocation3], 0
    %s11 = scalar_lea.sflag [#allocation3], 1
    %12 = vsyncpa %s11, 0
    loop: start=0, step=1, limit=4
    $region2: #{servenet_forward.7} parent=1 // loop_pre_header
      _
    $region3: #{servenet_forward.7} parent=1 // loop_header
      %s14 = sphi 0, %s18
      %p15 = scmp.ge.s32.totalorder %s14, 4
      %s24 = sphi 0, %s26
      %s27 = sphi 0, %s24
      %s28 = sphi 0, %s27
      %s44 = sphi 0, %s28
      %s48 = sphi 0, %s48
      %s50 = sphi 0, %s48
      %s51 = sphi 0, %s50
      %s65 = sphi 0, %s51
      %s69 = sphi 0, %s69
      %s71 = sphi 0, %s69
      %s72 = sphi 0, %s71
      %s86 = sphi 0, %s72
      %s90 = sphi 0, %s90
      %s92 = sphi 0, %s90
      %s93 = sphi 0, %s92
      %s107 = sphi 0, %s93
      %s111 = sphi 0, %s111
      %s113 = sphi 0, %s111
      %s114 = sphi 0, %s113
      %s128 = sphi 0, %s114
      %s134 = sphi 0, %s136
      %s137 = sphi 0, %s134
      %s138 = sphi 0, %s137
      %s154 = sphi 0, %s138
    $region4: #{servenet_forward.7} parent=1 // loop_header_branch
      %17 = sbr.rel (%p15) target = $region8
    $region5: #{servenet_forward.7} parent=1 // loop_body
      %s19 = ssub.s32 %s14, 1
      %s20 = ssub.s32 %s14, 2
      %s21 = sadd.s32 %s14, 1
      %s22 = ssub.s32 %s14, %s21
      %p23 = scmp.eq.s32.totalorder %s22, 0
      %s25 = sadd.s32 %s24, 1
      %s26 = scalar_select %p23, %s24, %s25
      %p29 = pneg %p23
      %p30 = scmp.eq.s32.totalorder %s14, 1
      %p31 = por %p29, %p30
      %p32 = scmp.ne.s32.totalorder %s24, %s27
      %p33 = scmp.eq.s32.totalorder %s14, 0
      %p34 = por %p32, %p33
      %p35 = scmp.ne.s32.totalorder %s24, %s27
      %p36 = scmp.eq.s32.totalorder %s19, 1
      %p37 = por %p35, %p36
      %p38 = scmp.ne.s32.totalorder %s27, %s28
      %p39 = scmp.eq.s32.totalorder %s19, 0
      %p40 = por %p38, %p39
      %p41 = scmp.ne.s32.totalorder %s27, %s28
      %p42 = scmp.eq.s32.totalorder %s20, 1
      %p43 = por %p41, %p42
      %p45 = scmp.ne.s32.totalorder %s28, %s44
      %p46 = scmp.eq.s32.totalorder %s20, 0
      %p47 = por %p45, %p46
      %s49 = sadd.s32 %s48, 1
      %p52 = scmp.eq.s32.totalorder %s14, 1
      %p53 = scmp.ne.s32.totalorder %s48, %s50
      %p54 = scmp.eq.s32.totalorder %s14, 0
      %p55 = por %p53, %p54
      %p56 = scmp.ne.s32.totalorder %s48, %s50
      %p57 = scmp.eq.s32.totalorder %s19, 1
      %p58 = por %p56, %p57
      %p59 = scmp.ne.s32.totalorder %s50, %s51
      %p60 = scmp.eq.s32.totalorder %s19, 0
      %p61 = por %p59, %p60
      %p62 = scmp.ne.s32.totalorder %s50, %s51
      %p63 = scmp.eq.s32.totalorder %s20, 1
      %p64 = por %p62, %p63
      %p66 = scmp.ne.s32.totalorder %s51, %s65
      %p67 = scmp.eq.s32.totalorder %s20, 0
      %p68 = por %p66, %p67
      %s70 = sadd.s32 %s69, 1
      %p73 = scmp.eq.s32.totalorder %s14, 1
      %p74 = scmp.ne.s32.totalorder %s69, %s71
      %p75 = scmp.eq.s32.totalorder %s14, 0
      %p76 = por %p74, %p75
      %p77 = scmp.ne.s32.totalorder %s69, %s71
      %p78 = scmp.eq.s32.totalorder %s19, 1
      %p79 = por %p77, %p78
      %p80 = scmp.ne.s32.totalorder %s71, %s72
      %p81 = scmp.eq.s32.totalorder %s19, 0
      %p82 = por %p80, %p81
      %p83 = scmp.ne.s32.totalorder %s71, %s72
      %p84 = scmp.eq.s32.totalorder %s20, 1
      %p85 = por %p83, %p84
      %p87 = scmp.ne.s32.totalorder %s72, %s86
      %p88 = scmp.eq.s32.totalorder %s20, 0
      %p89 = por %p87, %p88
      %s91 = sadd.s32 %s90, 1
      %p94 = scmp.eq.s32.totalorder %s14, 1
      %p95 = scmp.ne.s32.totalorder %s90, %s92
      %p96 = scmp.eq.s32.totalorder %s14, 0
      %p97 = por %p95, %p96
      %p98 = scmp.ne.s32.totalorder %s90, %s92
      %p99 = scmp.eq.s32.totalorder %s19, 1
      %p100 = por %p98, %p99
      %p101 = scmp.ne.s32.totalorder %s92, %s93
      %p102 = scmp.eq.s32.totalorder %s19, 0
      %p103 = por %p101, %p102
      %p104 = scmp.ne.s32.totalorder %s92, %s93
      %p105 = scmp.eq.s32.totalorder %s20, 1
      %p106 = por %p104, %p105
      %p108 = scmp.ne.s32.totalorder %s93, %s107
      %p109 = scmp.eq.s32.totalorder %s20, 0
      %p110 = por %p108, %p109
      %s112 = sadd.s32 %s111, 1
      %p115 = scmp.eq.s32.totalorder %s14, 1
      %p116 = scmp.ne.s32.totalorder %s111, %s113
      %p117 = scmp.eq.s32.totalorder %s14, 0
      %p118 = por %p116, %p117
      %p119 = scmp.ne.s32.totalorder %s111, %s113
      %p120 = scmp.eq.s32.totalorder %s19, 1
      %p121 = por %p119, %p120
      %p122 = scmp.ne.s32.totalorder %s113, %s114
      %p123 = scmp.eq.s32.totalorder %s19, 0
      %p124 = por %p122, %p123
      %p125 = scmp.ne.s32.totalorder %s113, %s114
      %p126 = scmp.eq.s32.totalorder %s20, 1
      %p127 = por %p125, %p126
      %p129 = scmp.ne.s32.totalorder %s114, %s128
      %p130 = scmp.eq.s32.totalorder %s20, 0
      %p131 = por %p129, %p130
      %s132 = ssub.s32 %s14, %s21
      %p133 = scmp.eq.s32.totalorder %s132, 0
      %s135 = sadd.s32 %s134, 1
      %s136 = scalar_select %p133, %s134, %s135
      %p139 = pneg %p133
      %p140 = scmp.eq.s32.totalorder %s14, 1
      %p141 = por %p139, %p140
      %p142 = scmp.ne.s32.totalorder %s134, %s137
      %p143 = scmp.eq.s32.totalorder %s14, 0
      %p144 = por %p142, %p143
      %p145 = scmp.ne.s32.totalorder %s134, %s137
      %p146 = scmp.eq.s32.totalorder %s19, 1
      %p147 = por %p145, %p146
      %p148 = scmp.ne.s32.totalorder %s137, %s138
      %p149 = scmp.eq.s32.totalorder %s19, 0
      %p150 = por %p148, %p149
      %p151 = scmp.ne.s32.totalorder %s137, %s138
      %p152 = scmp.eq.s32.totalorder %s20, 1
      %p153 = por %p151, %p152
      %p155 = scmp.ne.s32.totalorder %s138, %s154
      %p156 = scmp.eq.s32.totalorder %s20, 0
      %p157 = por %p155, %p156
      %p158 = scmp.le.s32.totalorder 1, %s14
      %p159 = scmp.lt.s32.totalorder %s14, 3
      %p160 = pnand %p158, %p159
      %p161 = pneg %p160
      // Predicated region
      $region9: #{servenet_forward.7} parent=5 // pred_check
        _
      $region10: #{servenet_forward.7} parent=5 // pred_check_branch
        %163 = sbr.rel (%p160) target = $region12
      $region11: #{servenet_forward.7} parent=5 // pred_region
        %s164 = ssub.s32 %s14, 1
        // Predicated region
        $region13: #{servenet_forward.7} parent=11 // pred_check
          %p165 = pneg %p61
        $region14: #{servenet_forward.7} parent=11 // pred_check_branch
          %167 = sbr.rel (%p165) target = $region16
        $region15: #{servenet_forward.7} parent=11 // pred_region
          _
        $region16: #{servenet_forward.7} parent=11 // pred_fallthru
          _
        // Predicated region
        $region17: #{servenet_forward.7} parent=11 // pred_check
          %p168 = pneg %p82
        $region18: #{servenet_forward.7} parent=11 // pred_check_branch
          %170 = sbr.rel (%p168) target = $region20
        $region19: #{servenet_forward.7} parent=11 // pred_region
          _
        $region20: #{servenet_forward.7} parent=11 // pred_fallthru
          _
        // Predicated region
        $region21: #{servenet_forward.7} parent=11 // pred_check
          %p171 = pneg %p103
        $region22: #{servenet_forward.7} parent=11 // pred_check_branch
          %173 = sbr.rel (%p171) target = $region24
        $region23: #{servenet_forward.7} parent=11 // pred_region
          _
        $region24: #{servenet_forward.7} parent=11 // pred_fallthru
          _
        // Predicated region
        $region25: #{servenet_forward.7} parent=11 // pred_check
          %p174 = pneg %p124
        $region26: #{servenet_forward.7} parent=11 // pred_check_branch
          %176 = sbr.rel (%p174) target = $region28
        $region27: #{servenet_forward.7} parent=11 // pred_region
          _
        $region28: #{servenet_forward.7} parent=11 // pred_fallthru
          _
      $region12: #{servenet_forward.7} parent=5 // pred_fallthru
        _
      %p177 = scmp.lt.s32.totalorder %s14, 2
      // Predicated region
      $region29: #{servenet_forward.7} parent=5 // pred_check
        %p178 = pneg %p177
      $region30: #{servenet_forward.7} parent=5 // pred_check_branch
        %180 = sbr.rel (%p178) target = $region32
      $region31: #{servenet_forward.7} parent=5 // pred_region
        // Predicated region
        $region33: #{servenet_forward.7} parent=31 // pred_check
          %p181 = pneg %p34
        $region34: #{servenet_forward.7} parent=31 // pred_check_branch
          %183 = sbr.rel (%p181) target = $region36
        $region35: #{servenet_forward.7} parent=31 // pred_region
          %p184 = scmp.lt.s32.totalorder %s14, 1
          %s185 = scalar_select %p184, %s14, 1
          %s186 = smul.addr %s185, 4
          %s187 = scalar_lea.vmem %s0, %s186
        $region36: #{servenet_forward.7} parent=31 // pred_fallthru
          _
      $region32: #{servenet_forward.7} parent=5 // pred_fallthru
        _
      %p188 = scmp.le.s32.totalorder 1, %s14
      %p189 = scmp.lt.s32.totalorder %s14, 3
      %p190 = pnand %p188, %p189
      %p191 = pneg %p190
      // Predicated region
      $region37: #{servenet_forward.7} parent=5 // pred_check
        _
      $region38: #{servenet_forward.7} parent=5 // pred_check_branch
        %193 = sbr.rel (%p190) target = $region40
      $region39: #{servenet_forward.7} parent=5 // pred_region
        %s194 = ssub.s32 %s14, 1
        %p195 = scmp.lt.s32.totalorder %s19, 1
        %s196 = scalar_select %p195, %s19, 1
        %s197 = smul.addr %s196, 4
        %s198 = scalar_lea.vmem %s0, %s197
        %p199 = pneg %p40
        %p200 = pneg %p37
        %p201 = pneg %p61
        %p202 = pneg %p58
        %p203 = pneg %p82
        %p204 = pneg %p79
        %p205 = pneg %p103
        %p206 = pneg %p100
        %p207 = pneg %p124
        %p208 = pneg %p121
        %p209 = pneg %p150
        %p210 = pneg %p147
        %s211 = sand.u32 %s137, 1
        %s212 = scalar_lea.sflag [#allocation3], %s211
        %s213 = sand.u32 %s137, 1
        %s214 = scalar_lea.vmem [#allocation2], %s213
        %p215 = scmp.lt.s32.totalorder %s19, 1
        %s216 = scalar_select %p215, %s19, 1
        %s217 = smul.addr %s216, 4
        %s218 = scalar_lea.vmem %s0, %s217
        %v220 = vld [vmem:[%s218] sm:$0xf]
        %v221 = vld [vmem:[%s1] sm:$0xf]
        %v222 = vld [vmem:[%s1 + $0x4] sm:$0xf]
        %v223 = vld [vmem:[%s1 + $0x8] sm:$0xf]
        %v224 = vld [vmem:[%s1 + $0xc] sm:$0xf]
        %v225 = vld [vmem:[%s2] sm:$0x1]
        %v230 = vunpack.c.l.b16 %v221
        %v231 = vunpack.c.l.b16 %v222
        %v232 = vunpack.c.l.b16 %v223
        %v233 = vunpack.c.l.b16 %v224
        %v234 = vpack.c.b16 %v231, %v230
        %v235 = vpack.c.b16 %v233, %v232
        %vm238 = vcmask 261120
        %v240 = vsel %vm238, %v220, 0
        %242 = vmatprep.subr.bf16.mxu0 0
        %243 = vmatpush1.bf16.msra.mxu0 %v234
        %244 = vmatprep.subr.bf16.mxu0 0
        %245 = vmatpush1.bf16.msra.mxu0 %v235
        %246 = vmatprep.subr.bf16.mxu0 0
        %247 = vmatpush1.bf16.msra.mxu0 0
        %248 = vmatprep.subr.bf16.mxu0 0
        %249 = vmatpush1.bf16.msra.mxu0 0
        %250 = vmatprep.subr.bf16.mxu0 0
        %251 = vmatpush1.bf16.msra.mxu0 0
        %252 = vmatprep.subr.bf16.mxu0 0
        %253 = vmatpush1.bf16.msra.mxu0 0
        %254 = vmatprep.subr.bf16.mxu0 0
        %255 = vmatpush1.bf16.msra.mxu0 0
        %256 = vmatprep.subr.bf16.mxu0 0
        %257 = vmatpush1.bf16.msra.mxu0 0
        %258 = vmatprep.subr.bf16.mxu0 0
        %259 = vmatpush1.bf16.msra.mxu0 0
        %260 = vmatprep.subr.bf16.mxu0 0
        %261 = vmatpush1.bf16.msra.mxu0 0
        %262 = vmatprep.subr.bf16.mxu0 0
        %263 = vmatpush1.bf16.msra.mxu0 0
        %264 = vmatprep.subr.bf16.mxu0 0
        %265 = vmatpush1.bf16.msra.mxu0 0
        %266 = vmatprep.subr.bf16.mxu0 0
        %267 = vmatpush1.bf16.msra.mxu0 0
        %268 = vmatprep.subr.bf16.mxu0 0
        %269 = vmatpush1.bf16.msra.mxu0 0
        %270 = vmatprep.subr.bf16.mxu0 0
        %271 = vmatpush1.bf16.msra.mxu0 0
        %272 = vmatprep.subr.bf16.mxu0 0
        %273 = vmatpush1.bf16.msra.mxu0 0
        %274 = vmatprep.mubr.bf16.mxu0 0
        %275 = vmatmul.mubr.bf16.gmra.mrb[0].mxu0 %v240
        %v276 = vpop.f32.mrb[0].mxu0
        %v277 = vadd.f32 %v225, %v276
        %v278 = vpop.f32.mrb[0].mxu0
        %v279 = vpop.f32.mrb[0].mxu0
        %v280 = vpop.f32.mrb[0].mxu0
        %281 = vdwg.mxu0
        %v282 = vtanh.pop %v277
        %v283 = vpack.c.bf16 %v282, %v282
        %v284 = vld [vmem:[%s3] sm:$0xf]
        %v285 = vld [vmem:[%s3 + $0x4] sm:$0xf]
        %v286 = vld [vmem:[%s3 + $0x8] sm:$0xf]
        %v287 = vld [vmem:[%s3 + $0xc] sm:$0xf]
        %v288 = vld [vmem:[%s4] sm:$0x1]
        %v293 = vunpack.c.l.b16 %v284
        %v294 = vunpack.c.l.b16 %v285
        %v295 = vunpack.c.l.b16 %v286
        %v296 = vunpack.c.l.b16 %v287
        %v297 = vpack.c.b16 %v294, %v293
        %v298 = vpack.c.b16 %v296, %v295
        %v302 = vsel %vm238, %v283, 0
        %304 = vmatprep.subr.bf16.mxu0 0
        %305 = vmatpush1.bf16.msra.mxu0 %v297
        %306 = vmatprep.subr.bf16.mxu0 0
        %307 = vmatpush1.bf16.msra.mxu0 %v298
        %308 = vmatprep.subr.bf16.mxu0 0
        %309 = vmatpush1.bf16.msra.mxu0 0
        %310 = vmatprep.subr.bf16.mxu0 0
        %311 = vmatpush1.bf16.msra.mxu0 0
        %312 = vmatprep.subr.bf16.mxu0 0
        %313 = vmatpush1.bf16.msra.mxu0 0
        %314 = vmatprep.subr.bf16.mxu0 0
        %315 = vmatpush1.bf16.msra.mxu0 0
        %316 = vmatprep.subr.bf16.mxu0 0
        %317 = vmatpush1.bf16.msra.mxu0 0
        %318 = vmatprep.subr.bf16.mxu0 0
        %319 = vmatpush1.bf16.msra.mxu0 0
        %320 = vmatprep.subr.bf16.mxu0 0
        %321 = vmatpush1.bf16.msra.mxu0 0
        %322 = vmatprep.subr.bf16.mxu0 0
        %323 = vmatpush1.bf16.msra.mxu0 0
        %324 = vmatprep.subr.bf16.mxu0 0
        %325 = vmatpush1.bf16.msra.mxu0 0
        %326 = vmatprep.subr.bf16.mxu0 0
        %327 = vmatpush1.bf16.msra.mxu0 0
        %328 = vmatprep.subr.bf16.mxu0 0
        %329 = vmatpush1.bf16.msra.mxu0 0
        %330 = vmatprep.subr.bf16.mxu0 0
        %331 = vmatpush1.bf16.msra.mxu0 0
        %332 = vmatprep.subr.bf16.mxu0 0
        %333 = vmatpush1.bf16.msra.mxu0 0
        %334 = vmatprep.subr.bf16.mxu0 0
        %335 = vmatpush1.bf16.msra.mxu0 0
        %336 = vmatprep.mubr.bf16.mxu0 0
        %337 = vmatmul.mubr.bf16.gmra.mrb[0].mxu0 %v302
        %v338 = vpop.f32.mrb[0].mxu0
        %v339 = vadd.f32 %v288, %v338
        %v340 = vpop.f32.mrb[0].mxu0
        %v341 = vpop.f32.mrb[0].mxu0
        %v342 = vpop.f32.mrb[0].mxu0
        %343 = vdwg.mxu0
        %vm344 = vcmask 73728
        %345 = vst.msk [vmem:[%s214] sm:$0x1] %vm344, %v339
        %s346 = sand.u32 %s137, 1
        %s347 = scalar_lea.sflag [#allocation3], %s346
        %s348 = sand.u32 %s137, 1
        %s349 = scalar_lea.vmem [#allocation2], %s348
        // Predicated region
        $region41: #{servenet_forward.7} parent=39 // pred_check
          %p350 = pneg %p147
        $region42: #{servenet_forward.7} parent=39 // pred_check_branch
          %352 = sbr.rel (%p350) target = $region44
        $region43: #{servenet_forward.7} parent=39 // pred_region
          %s354 = ssub.s32 16, 16
          %355 = vsyncadd %s347, %s354
          %s356 = smul.addr %s19, 16
          %s357 = scalar_lea.hbm %s5, %s356
          %s359 = sshll.u32 %s349, 4
          %s360 = int_to_ptr.vmem [resolvable:$true] %s359
          %362 = dma.vmem_to_hbm [thread:$0]  %s360, 16, %s357, %s347
        $region44: #{servenet_forward.7} parent=39 // pred_fallthru
          _
      $region40: #{servenet_forward.7} parent=5 // pred_fallthru
        _
      %p363 = scmp.le.s32.totalorder 2, %s14
      // Predicated region
      $region45: #{servenet_forward.7} parent=5 // pred_check
        %p364 = pneg %p363
      $region46: #{servenet_forward.7} parent=5 // pred_check_branch
        %366 = sbr.rel (%p364) target = $region48
      $region47: #{servenet_forward.7} parent=5 // pred_region
        %s367 = ssub.s32 %s14, 2
        // Predicated region
        $region49: #{servenet_forward.7} parent=47 // pred_check
          %p368 = pneg %p153
        $region50: #{servenet_forward.7} parent=47 // pred_check_branch
          %370 = sbr.rel (%p368) target = $region52
        $region51: #{servenet_forward.7} parent=47 // pred_region
          %s371 = sand.u32 %s138, 1
          %s372 = scalar_lea.sflag [#allocation3], %s371
          %s373 = sand.u32 %s138, 1
          %s374 = scalar_lea.vmem [#allocation2], %s373
          %375 = dma.done %s372, 16
        $region52: #{servenet_forward.7} parent=47 // pred_fallthru
          _
      $region48: #{servenet_forward.7} parent=5 // pred_fallthru
        _
    $region6: #{servenet_forward.7} parent=1 // loop_footer
      %s18 = sadd.s32 1, %s14
    $region7: #{servenet_forward.7} parent=1 // loop_footer_branch
      %13 = sbr.rel target = $region3
    $region8: #{servenet_forward.7} parent=1 // loop_exit
      _
    %376 = vsyncpa [#allocation3], 1
    %s377 = scalar_lea.sflag [#allocation3], 1
    %378 = vsyncpa %s377, 1

// kernel: servenet_forward.4
$region0: #{servenet_forward.4}
  #allocation0 [shape = 'u32[]', space=smem, size = 0x4, offset = 0x4, fixed_abs, tag = 'smem constant byte address 0x4 - core index']
  #allocation1 [shape = 'u32[144,128]{1,0:T(1,128)}', space=vmem, size = 0x12000, scoped, tag = 'internal scratch']
  %s0 = inlined_call_operand.vmem [shape: f32[2,8,32], index: 0, kind: input, shape index: {}]
  %s1 = inlined_call_operand.vmem [shape: f32[2,8,32], index: 1, kind: input, shape index: {}]
  %s2 = inlined_call_operand.vmem [shape: f32[1,8,32], index: 2, kind: input, shape index: {}]
  %s3 = inlined_call_operand.vmem [shape: f32[1,32], index: 3, kind: input, shape index: {}]
  %s4 = inlined_call_operand.vmem [shape: f32[1,32], index: 4, kind: input, shape index: {}]
  %s5 = inlined_call_operand.vmem [shape: bf16[2,8,32], index: 5, kind: output, shape index: {}]
  %s6 = sld [smem:[#allocation0]]
  $region53: #{servenet_forward.4} parent=0
    _
  %s8 = ssub.s32 1, %s6
  %s9 = scalar_select 0, %s8, %s6
  loop: start=0, step=1, limit=4
  $region2: #{servenet_forward.4} parent=0 // loop_pre_header
    _
  $region3: #{servenet_forward.4} parent=0 // loop_header
    %s11 = sphi 0, %s15
    %p12 = scmp.ge.s32.totalorder %s11, 4
    %s21 = sphi 0, %s23
    %s24 = sphi 0, %s21
    %s25 = sphi 0, %s24
    %s41 = sphi 0, %s25
    %s47 = sphi 0, %s49
    %s50 = sphi 0, %s47
    %s51 = sphi 0, %s50
    %s67 = sphi 0, %s51
    %s71 = sphi 0, %s71
    %s73 = sphi 0, %s71
    %s74 = sphi 0, %s73
    %s88 = sphi 0, %s74
    %s92 = sphi 0, %s92
    %s94 = sphi 0, %s92
    %s95 = sphi 0, %s94
    %s109 = sphi 0, %s95
    %s113 = sphi 0, %s113
    %s115 = sphi 0, %s113
    %s116 = sphi 0, %s115
    %s130 = sphi 0, %s116
    %s136 = sphi 0, %s138
    %s139 = sphi 0, %s136
    %s140 = sphi 0, %s139
    %s156 = sphi 0, %s140
  $region4: #{servenet_forward.4} parent=0 // loop_header_branch
    %14 = sbr.rel (%p12) target = $region8
  $region5: #{servenet_forward.4} parent=0 // loop_body
    %s16 = ssub.s32 %s11, 1
    %s17 = ssub.s32 %s11, 2
    %s18 = sadd.s32 %s11, 1
    %s19 = ssub.s32 %s11, %s18
    %p20 = scmp.eq.s32.totalorder %s19, 0
    %s22 = sadd.s32 %s21, 1
    %s23 = scalar_select %p20, %s21, %s22
    %p26 = pneg %p20
    %p27 = scmp.eq.s32.totalorder %s11, 1
    %p28 = por %p26, %p27
    %p29 = scmp.ne.s32.totalorder %s21, %s24
    %p30 = scmp.eq.s32.totalorder %s11, 0
    %p31 = por %p29, %p30
    %p32 = scmp.ne.s32.totalorder %s21, %s24
    %p33 = scmp.eq.s32.totalorder %s16, 1
    %p34 = por %p32, %p33
    %p35 = scmp.ne.s32.totalorder %s24, %s25
    %p36 = scmp.eq.s32.totalorder %s16, 0
    %p37 = por %p35, %p36
    %p38 = scmp.ne.s32.totalorder %s24, %s25
    %p39 = scmp.eq.s32.totalorder %s17, 1
    %p40 = por %p38, %p39
    %p42 = scmp.ne.s32.totalorder %s25, %s41
    %p43 = scmp.eq.s32.totalorder %s17, 0
    %p44 = por %p42, %p43
    %s45 = ssub.s32 %s11, %s18
    %p46 = scmp.eq.s32.totalorder %s45, 0
    %s48 = sadd.s32 %s47, 1
    %s49 = scalar_select %p46, %s47, %s48
    %p52 = pneg %p46
    %p53 = scmp.eq.s32.totalorder %s11, 1
    %p54 = por %p52, %p53
    %p55 = scmp.ne.s32.totalorder %s47, %s50
    %p56 = scmp.eq.s32.totalorder %s11, 0
    %p57 = por %p55, %p56
    %p58 = scmp.ne.s32.totalorder %s47, %s50
    %p59 = scmp.eq.s32.totalorder %s16, 1
    %p60 = por %p58, %p59
    %p61 = scmp.ne.s32.totalorder %s50, %s51
    %p62 = scmp.eq.s32.totalorder %s16, 0
    %p63 = por %p61, %p62
    %p64 = scmp.ne.s32.totalorder %s50, %s51
    %p65 = scmp.eq.s32.totalorder %s17, 1
    %p66 = por %p64, %p65
    %p68 = scmp.ne.s32.totalorder %s51, %s67
    %p69 = scmp.eq.s32.totalorder %s17, 0
    %p70 = por %p68, %p69
    %s72 = sadd.s32 %s71, 1
    %p75 = scmp.eq.s32.totalorder %s11, 1
    %p76 = scmp.ne.s32.totalorder %s71, %s73
    %p77 = scmp.eq.s32.totalorder %s11, 0
    %p78 = por %p76, %p77
    %p79 = scmp.ne.s32.totalorder %s71, %s73
    %p80 = scmp.eq.s32.totalorder %s16, 1
    %p81 = por %p79, %p80
    %p82 = scmp.ne.s32.totalorder %s73, %s74
    %p83 = scmp.eq.s32.totalorder %s16, 0
    %p84 = por %p82, %p83
    %p85 = scmp.ne.s32.totalorder %s73, %s74
    %p86 = scmp.eq.s32.totalorder %s17, 1
    %p87 = por %p85, %p86
    %p89 = scmp.ne.s32.totalorder %s74, %s88
    %p90 = scmp.eq.s32.totalorder %s17, 0
    %p91 = por %p89, %p90
    %s93 = sadd.s32 %s92, 1
    %p96 = scmp.eq.s32.totalorder %s11, 1
    %p97 = scmp.ne.s32.totalorder %s92, %s94
    %p98 = scmp.eq.s32.totalorder %s11, 0
    %p99 = por %p97, %p98
    %p100 = scmp.ne.s32.totalorder %s92, %s94
    %p101 = scmp.eq.s32.totalorder %s16, 1
    %p102 = por %p100, %p101
    %p103 = scmp.ne.s32.totalorder %s94, %s95
    %p104 = scmp.eq.s32.totalorder %s16, 0
    %p105 = por %p103, %p104
    %p106 = scmp.ne.s32.totalorder %s94, %s95
    %p107 = scmp.eq.s32.totalorder %s17, 1
    %p108 = por %p106, %p107
    %p110 = scmp.ne.s32.totalorder %s95, %s109
    %p111 = scmp.eq.s32.totalorder %s17, 0
    %p112 = por %p110, %p111
    %s114 = sadd.s32 %s113, 1
    %p117 = scmp.eq.s32.totalorder %s11, 1
    %p118 = scmp.ne.s32.totalorder %s113, %s115
    %p119 = scmp.eq.s32.totalorder %s11, 0
    %p120 = por %p118, %p119
    %p121 = scmp.ne.s32.totalorder %s113, %s115
    %p122 = scmp.eq.s32.totalorder %s16, 1
    %p123 = por %p121, %p122
    %p124 = scmp.ne.s32.totalorder %s115, %s116
    %p125 = scmp.eq.s32.totalorder %s16, 0
    %p126 = por %p124, %p125
    %p127 = scmp.ne.s32.totalorder %s115, %s116
    %p128 = scmp.eq.s32.totalorder %s17, 1
    %p129 = por %p127, %p128
    %p131 = scmp.ne.s32.totalorder %s116, %s130
    %p132 = scmp.eq.s32.totalorder %s17, 0
    %p133 = por %p131, %p132
    %s134 = ssub.s32 %s11, %s18
    %p135 = scmp.eq.s32.totalorder %s134, 0
    %s137 = sadd.s32 %s136, 1
    %s138 = scalar_select %p135, %s136, %s137
    %p141 = pneg %p135
    %p142 = scmp.eq.s32.totalorder %s11, 1
    %p143 = por %p141, %p142
    %p144 = scmp.ne.s32.totalorder %s136, %s139
    %p145 = scmp.eq.s32.totalorder %s11, 0
    %p146 = por %p144, %p145
    %p147 = scmp.ne.s32.totalorder %s136, %s139
    %p148 = scmp.eq.s32.totalorder %s16, 1
    %p149 = por %p147, %p148
    %p150 = scmp.ne.s32.totalorder %s139, %s140
    %p151 = scmp.eq.s32.totalorder %s16, 0
    %p152 = por %p150, %p151
    %p153 = scmp.ne.s32.totalorder %s139, %s140
    %p154 = scmp.eq.s32.totalorder %s17, 1
    %p155 = por %p153, %p154
    %p157 = scmp.ne.s32.totalorder %s140, %s156
    %p158 = scmp.eq.s32.totalorder %s17, 0
    %p159 = por %p157, %p158
    %p160 = scmp.le.s32.totalorder 1, %s11
    %p161 = scmp.lt.s32.totalorder %s11, 3
    %p162 = pnand %p160, %p161
    %p163 = pneg %p162
    // Predicated region
    $region9: #{servenet_forward.4} parent=5 // pred_check
      _
    $region10: #{servenet_forward.4} parent=5 // pred_check_branch
      %165 = sbr.rel (%p162) target = $region12
    $region11: #{servenet_forward.4} parent=5 // pred_region
      %s166 = ssub.s32 %s11, 1
      // Predicated region
      $region13: #{servenet_forward.4} parent=11 // pred_check
        %p167 = pneg %p84
      $region14: #{servenet_forward.4} parent=11 // pred_check_branch
        %169 = sbr.rel (%p167) target = $region16
      $region15: #{servenet_forward.4} parent=11 // pred_region
        _
      $region16: #{servenet_forward.4} parent=11 // pred_fallthru
        _
      // Predicated region
      $region17: #{servenet_forward.4} parent=11 // pred_check
        %p170 = pneg %p105
      $region18: #{servenet_forward.4} parent=11 // pred_check_branch
        %172 = sbr.rel (%p170) target = $region20
      $region19: #{servenet_forward.4} parent=11 // pred_region
        _
      $region20: #{servenet_forward.4} parent=11 // pred_fallthru
        _
      // Predicated region
      $region21: #{servenet_forward.4} parent=11 // pred_check
        %p173 = pneg %p126
      $region22: #{servenet_forward.4} parent=11 // pred_check_branch
        %175 = sbr.rel (%p173) target = $region24
      $region23: #{servenet_forward.4} parent=11 // pred_region
        _
      $region24: #{servenet_forward.4} parent=11 // pred_fallthru
        _
    $region12: #{servenet_forward.4} parent=5 // pred_fallthru
      _
    %p176 = scmp.lt.s32.totalorder %s11, 2
    // Predicated region
    $region25: #{servenet_forward.4} parent=5 // pred_check
      %p177 = pneg %p176
    $region26: #{servenet_forward.4} parent=5 // pred_check_branch
      %179 = sbr.rel (%p177) target = $region28
    $region27: #{servenet_forward.4} parent=5 // pred_region
      // Predicated region
      $region29: #{servenet_forward.4} parent=27 // pred_check
        %p180 = pneg %p31
      $region30: #{servenet_forward.4} parent=27 // pred_check_branch
        %182 = sbr.rel (%p180) target = $region32
      $region31: #{servenet_forward.4} parent=27 // pred_region
        %p183 = scmp.lt.s32.totalorder %s11, 1
        %s184 = scalar_select %p183, %s11, 1
        %s185 = smul.addr %s184, 8
        %s186 = scalar_lea.vmem %s0, %s185
      $region32: #{servenet_forward.4} parent=27 // pred_fallthru
        _
      // Predicated region
      $region33: #{servenet_forward.4} parent=27 // pred_check
        %p187 = pneg %p57
      $region34: #{servenet_forward.4} parent=27 // pred_check_branch
        %189 = sbr.rel (%p187) target = $region36
      $region35: #{servenet_forward.4} parent=27 // pred_region
        %p190 = scmp.lt.s32.totalorder %s11, 1
        %s191 = scalar_select %p190, %s11, 1
        %s192 = smul.addr %s191, 8
        %s193 = scalar_lea.vmem %s1, %s192
      $region36: #{servenet_forward.4} parent=27 // pred_fallthru
        _
    $region28: #{servenet_forward.4} parent=5 // pred_fallthru
      _
    %p194 = scmp.le.s32.totalorder 1, %s11
    %p195 = scmp.lt.s32.totalorder %s11, 3
    %p196 = pnand %p194, %p195
    %p197 = pneg %p196
    // Predicated region
    $region37: #{servenet_forward.4} parent=5 // pred_check
      _
    $region38: #{servenet_forward.4} parent=5 // pred_check_branch
      %199 = sbr.rel (%p196) target = $region40
    $region39: #{servenet_forward.4} parent=5 // pred_region
      %s200 = ssub.s32 %s11, 1
      %p201 = scmp.lt.s32.totalorder %s16, 1
      %s202 = scalar_select %p201, %s16, 1
      %s203 = smul.addr %s202, 8
      %s204 = scalar_lea.vmem %s0, %s203
      %p205 = pneg %p37
      %p206 = pneg %p34
      %p207 = scmp.lt.s32.totalorder %s16, 1
      %s208 = scalar_select %p207, %s16, 1
      %s209 = smul.addr %s208, 8
      %s210 = scalar_lea.vmem %s1, %s209
      %p211 = pneg %p63
      %p212 = pneg %p60
      %p213 = pneg %p84
      %p214 = pneg %p81
      %p215 = pneg %p105
      %p216 = pneg %p102
      %p217 = pneg %p126
      %p218 = pneg %p123
      %p219 = pneg %p152
      %p220 = pneg %p149
      %p221 = scmp.lt.s32.totalorder %s16, 1
      %s222 = scalar_select %p221, %s16, 1
      %s223 = smul.addr %s222, 4
      %s224 = scalar_lea.vmem %s5, %s223
      %p225 = scmp.lt.s32.totalorder %s16, 1
      %s226 = scalar_select %p225, %s16, 1
      %s227 = smul.addr %s226, 8
      %s228 = scalar_lea.vmem %s0, %s227
      %p229 = scmp.lt.s32.totalorder %s16, 1
      %s230 = scalar_select %p229, %s16, 1
      %s231 = smul.addr %s230, 8
      %s232 = scalar_lea.vmem %s1, %s231
      %p233 = scmp.lt.s32.totalorder %s16, 1
      %s234 = scalar_select %p233, %s16, 1
      %s235 = smul.addr %s234, 4
      %s236 = scalar_lea.vmem %s5, %s235
      %v237 = vld [vmem:[%s228] sm:$0xff]
      %v238 = vld [vmem:[%s232] sm:$0xff]
      %v239 = vadd.f32 %v237, %v238
      %v240 = vld [vmem:[%s2] sm:$0xff]
      %v241 = vadd.f32 %v239, %v240
      %v242 = vld [vmem:[%s3] sm:$0x1]
      %v243 = vld [vmem:[%s4] sm:$0x1]
      %vm244 = vcmask 261120
      %v245 = vsel %vm244, %v241, 0.0
      %246 = vadd.xlane.f32.xlu0 %v245
      %v247 = vpop.xlane.xlu0 %246
      %v248 = vrcp.pop 32.0
      %v249 = vmul.f32 %v247, %v248
      %v250 = vsub.f32 %v241, %v249
      %v251 = vmul.f32 %v250, %v250
      %v252 = vsel %vm244, %v251, 0.0
      %253 = vadd.xlane.f32.xlu0 %v252
      %v254 = vpop.xlane.xlu0 %253
      %v255 = vmul.f32 %v254, %v248
      %v256 = vadd.f32 %v255, 1e-12
      %v257 = vrsqrt.pop %v256
      %v258 = vmul.f32 %v250, %v257
      %v260 = vlaneseq
      %v261 = vshrl.u32 %v260, 7
      %v262 = vsub.s32 0, %v261
      %v263 = vrot.slane %v242, %v262
      %v265 = vmul.f32 %v258, %v263
      %v267 = vlaneseq
      %v268 = vshrl.u32 %v267, 7
      %v269 = vsub.s32 0, %v268
      %v270 = vrot.slane %v243, %v269
      %v272 = vadd.f32 %v265, %v270
      %v273 = vpack.c.bf16 %v272, %v272
      %vm274 = vcmask 257024
      %275 = vst.msk [vmem:[%s236] sm:$0xf] %vm274, %v273
      %p276 = scmp.lt.s32.totalorder %s16, 1
      %s277 = scalar_select %p276, %s16, 1
      %s278 = smul.addr %s277, 4
      %s279 = scalar_lea.vmem %s5, %s278
      // Predicated region
      $region41: #{servenet_forward.4} parent=39 // pred_check
        %p280 = pneg %p149
      $region42: #{servenet_forward.4} parent=39 // pred_check_branch
        %282 = sbr.rel (%p280) target = $region44
      $region43: #{servenet_forward.4} parent=39 // pred_region
        _
      $region44: #{servenet_forward.4} parent=39 // pred_fallthru
        _
    $region40: #{servenet_forward.4} parent=5 // pred_fallthru
      _
    %p283 = scmp.le.s32.totalorder 2, %s11
    // Predicated region
    $region45: #{servenet_forward.4} parent=5 // pred_check
      %p284 = pneg %p283
    $region46: #{servenet_forward.4} parent=5 // pred_check_branch
      %286 = sbr.rel (%p284) target = $region48
    $region47: #{servenet_forward.4} parent=5 // pred_region
      %s287 = ssub.s32 %s11, 2
      // Predicated region
      $region49: #{servenet_forward.4} parent=47 // pred_check
        %p288 = pneg %p155
      $region50: #{servenet_forward.4} parent=47 // pred_check_branch
        %290 = sbr.rel (%p288) target = $region52
      $region51: #{servenet_forward.4} parent=47 // pred_region
        %p291 = scmp.lt.s32.totalorder %s17, 1
        %s292 = scalar_select %p291, %s17, 1
        %s293 = smul.addr %s292, 4
        %s294 = scalar_lea.vmem %s5, %s293
      $region52: #{servenet_forward.4} parent=47 // pred_fallthru
        _
    $region48: #{servenet_forward.4} parent=5 // pred_fallthru
      _
  $region6: #{servenet_forward.4} parent=0 // loop_footer
    %s15 = sadd.s32 1, %s11
  $region7: #{servenet_forward.4} parent=0 // loop_footer_branch
    %10 = sbr.rel target = $region3
  $region8: #{servenet_forward.4} parent=0 // loop_exit
    _

// kernel: servenet_forward.5
$region0: #{servenet_forward.5}
  #allocation0 [shape = 'u32[]', space=smem, size = 0x4, offset = 0x4, fixed_abs, tag = 'smem constant byte address 0x4 - core index']
  #allocation1 [shape = 'u32[144,128]{1,0:T(1,128)}', space=vmem, size = 0x12000, scoped, tag = 'internal scratch']
  %s0 = inlined_call_operand.vmem [shape: bf16[2,8,32], index: 0, kind: input, shape index: {}]
  %s1 = inlined_call_operand.vmem [shape: f32[2,1,8], index: 1, kind: input, shape index: {}]
  %s2 = inlined_call_operand.vmem [shape: bf16[32,96], index: 2, kind: input, shape index: {}]
  %s3 = inlined_call_operand.vmem [shape: f32[1,96], index: 3, kind: input, shape index: {}]
  %s4 = inlined_call_operand.vmem [shape: f32[32,32], index: 4, kind: input, shape index: {}]
  %s5 = inlined_call_operand.vmem [shape: f32[1,32], index: 5, kind: input, shape index: {}]
  %s6 = inlined_call_operand.vmem [shape: f32[1,32], index: 6, kind: input, shape index: {}]
  %s7 = inlined_call_operand.vmem [shape: f32[1,32], index: 7, kind: input, shape index: {}]
  %s8 = inlined_call_operand.vmem [shape: bf16[32,64], index: 8, kind: input, shape index: {}]
  %s9 = inlined_call_operand.vmem [shape: f32[1,64], index: 9, kind: input, shape index: {}]
  %s10 = inlined_call_operand.vmem [shape: bf16[64,32], index: 10, kind: input, shape index: {}]
  %s11 = inlined_call_operand.vmem [shape: f32[1,32], index: 11, kind: input, shape index: {}]
  %s12 = inlined_call_operand.vmem [shape: f32[1,32], index: 12, kind: input, shape index: {}]
  %s13 = inlined_call_operand.vmem [shape: f32[1,32], index: 13, kind: input, shape index: {}]
  %s14 = inlined_call_operand.vmem [shape: bf16[2,8,32], index: 14, kind: output, shape index: {}]
  %s15 = sld [smem:[#allocation0]]
  $region89: #{servenet_forward.5} parent=0
    _
  %s17 = ssub.s32 1, %s15
  %s18 = scalar_select 0, %s17, %s15
  loop: start=0, step=1, limit=4
  $region2: #{servenet_forward.5} parent=0 // loop_pre_header
    _
  $region3: #{servenet_forward.5} parent=0 // loop_header
    %s20 = sphi 0, %s24
    %p21 = scmp.ge.s32.totalorder %s20, 4
    %s30 = sphi 0, %s32
    %s33 = sphi 0, %s30
    %s34 = sphi 0, %s33
    %s50 = sphi 0, %s34
    %s56 = sphi 0, %s58
    %s59 = sphi 0, %s56
    %s60 = sphi 0, %s59
    %s76 = sphi 0, %s60
    %s80 = sphi 0, %s80
    %s82 = sphi 0, %s80
    %s83 = sphi 0, %s82
    %s97 = sphi 0, %s83
    %s101 = sphi 0, %s101
    %s103 = sphi 0, %s101
    %s104 = sphi 0, %s103
    %s118 = sphi 0, %s104
    %s122 = sphi 0, %s122
    %s124 = sphi 0, %s122
    %s125 = sphi 0, %s124
    %s139 = sphi 0, %s125
    %s143 = sphi 0, %s143
    %s145 = sphi 0, %s143
    %s146 = sphi 0, %s145
    %s160 = sphi 0, %s146
    %s164 = sphi 0, %s164
    %s166 = sphi 0, %s164
    %s167 = sphi 0, %s166
    %s181 = sphi 0, %s167
    %s185 = sphi 0, %s185
    %s187 = sphi 0, %s185
    %s188 = sphi 0, %s187
    %s202 = sphi 0, %s188
    %s206 = sphi 0, %s206
    %s208 = sphi 0, %s206
    %s209 = sphi 0, %s208
    %s223 = sphi 0, %s209
    %s227 = sphi 0, %s227
    %s229 = sphi 0, %s227
    %s230 = sphi 0, %s229
    %s244 = sphi 0, %s230
    %s248 = sphi 0, %s248
    %s250 = sphi 0, %s248
    %s251 = sphi 0, %s250
    %s265 = sphi 0, %s251
    %s269 = sphi 0, %s269
    %s271 = sphi 0, %s269
    %s272 = sphi 0, %s271
    %s286 = sphi 0, %s272
    %s290 = sphi 0, %s290
    %s292 = sphi 0, %s290
    %s293 = sphi 0, %s292
    %s307 = sphi 0, %s293
    %s311 = sphi 0, %s311
    %s313 = sphi 0, %s311
    %s314 = sphi 0, %s313
    %s328 = sphi 0, %s314
    %s334 = sphi 0, %s336
    %s337 = sphi 0, %s334
    %s338 = sphi 0, %s337
    %s354 = sphi 0, %s338
  $region4: #{servenet_forward.5} parent=0 // loop_header_branch
    %23 = sbr.rel (%p21) target = $region8
  $region5: #{servenet_forward.5} parent=0 // loop_body
    %s25 = ssub.s32 %s20, 1
    %s26 = ssub.s32 %s20, 2
    %s27 = sadd.s32 %s20, 1
    %s28 = ssub.s32 %s20, %s27
    %p29 = scmp.eq.s32.totalorder %s28, 0
    %s31 = sadd.s32 %s30, 1
    %s32 = scalar_select %p29, %s30, %s31
    %p35 = pneg %p29
    %p36 = scmp.eq.s32.totalorder %s20, 1
    %p37 = por %p35, %p36
    %p38 = scmp.ne.s32.totalorder %s30, %s33
    %p39 = scmp.eq.s32.totalorder %s20, 0
    %p40 = por %p38, %p39
    %p41 = scmp.ne.s32.totalorder %s30, %s33
    %p42 = scmp.eq.s32.totalorder %s25, 1
    %p43 = por %p41, %p42
    %p44 = scmp.ne.s32.totalorder %s33, %s34
    %p45 = scmp.eq.s32.totalorder %s25, 0
    %p46 = por %p44, %p45
    %p47 = scmp.ne.s32.totalorder %s33, %s34
    %p48 = scmp.eq.s32.totalorder %s26, 1
    %p49 = por %p47, %p48
    %p51 = scmp.ne.s32.totalorder %s34, %s50
    %p52 = scmp.eq.s32.totalorder %s26, 0
    %p53 = por %p51, %p52
    %s54 = ssub.s32 %s20, %s27
    %p55 = scmp.eq.s32.totalorder %s54, 0
    %s57 = sadd.s32 %s56, 1
    %s58 = scalar_select %p55, %s56, %s57
    %p61 = pneg %p55
    %p62 = scmp.eq.s32.totalorder %s20, 1
    %p63 = por %p61, %p62
    %p64 = scmp.ne.s32.totalorder %s56, %s59
    %p65 = scmp.eq.s32.totalorder %s20, 0
    %p66 = por %p64, %p65
    %p67 = scmp.ne.s32.totalorder %s56, %s59
    %p68 = scmp.eq.s32.totalorder %s25, 1
    %p69 = por %p67, %p68
    %p70 = scmp.ne.s32.totalorder %s59, %s60
    %p71 = scmp.eq.s32.totalorder %s25, 0
    %p72 = por %p70, %p71
    %p73 = scmp.ne.s32.totalorder %s59, %s60
    %p74 = scmp.eq.s32.totalorder %s26, 1
    %p75 = por %p73, %p74
    %p77 = scmp.ne.s32.totalorder %s60, %s76
    %p78 = scmp.eq.s32.totalorder %s26, 0
    %p79 = por %p77, %p78
    %s81 = sadd.s32 %s80, 1
    %p84 = scmp.eq.s32.totalorder %s20, 1
    %p85 = scmp.ne.s32.totalorder %s80, %s82
    %p86 = scmp.eq.s32.totalorder %s20, 0
    %p87 = por %p85, %p86
    %p88 = scmp.ne.s32.totalorder %s80, %s82
    %p89 = scmp.eq.s32.totalorder %s25, 1
    %p90 = por %p88, %p89
    %p91 = scmp.ne.s32.totalorder %s82, %s83
    %p92 = scmp.eq.s32.totalorder %s25, 0
    %p93 = por %p91, %p92
    %p94 = scmp.ne.s32.totalorder %s82, %s83
    %p95 = scmp.eq.s32.totalorder %s26, 1
    %p96 = por %p94, %p95
    %p98 = scmp.ne.s32.totalorder %s83, %s97
    %p99 = scmp.eq.s32.totalorder %s26, 0
    %p100 = por %p98, %p99
    %s102 = sadd.s32 %s101, 1
    %p105 = scmp.eq.s32.totalorder %s20, 1
    %p106 = scmp.ne.s32.totalorder %s101, %s103
    %p107 = scmp.eq.s32.totalorder %s20, 0
    %p108 = por %p106, %p107
    %p109 = scmp.ne.s32.totalorder %s101, %s103
    %p110 = scmp.eq.s32.totalorder %s25, 1
    %p111 = por %p109, %p110
    %p112 = scmp.ne.s32.totalorder %s103, %s104
    %p113 = scmp.eq.s32.totalorder %s25, 0
    %p114 = por %p112, %p113
    %p115 = scmp.ne.s32.totalorder %s103, %s104
    %p116 = scmp.eq.s32.totalorder %s26, 1
    %p117 = por %p115, %p116
    %p119 = scmp.ne.s32.totalorder %s104, %s118
    %p120 = scmp.eq.s32.totalorder %s26, 0
    %p121 = por %p119, %p120
    %s123 = sadd.s32 %s122, 1
    %p126 = scmp.eq.s32.totalorder %s20, 1
    %p127 = scmp.ne.s32.totalorder %s122, %s124
    %p128 = scmp.eq.s32.totalorder %s20, 0
    %p129 = por %p127, %p128
    %p130 = scmp.ne.s32.totalorder %s122, %s124
    %p131 = scmp.eq.s32.totalorder %s25, 1
    %p132 = por %p130, %p131
    %p133 = scmp.ne.s32.totalorder %s124, %s125
    %p134 = scmp.eq.s32.totalorder %s25, 0
    %p135 = por %p133, %p134
    %p136 = scmp.ne.s32.totalorder %s124, %s125
    %p137 = scmp.eq.s32.totalorder %s26, 1
    %p138 = por %p136, %p137
    %p140 = scmp.ne.s32.totalorder %s125, %s139
    %p141 = scmp.eq.s32.totalorder %s26, 0
    %p142 = por %p140, %p141
    %s144 = sadd.s32 %s143, 1
    %p147 = scmp.eq.s32.totalorder %s20, 1
    %p148 = scmp.ne.s32.totalorder %s143, %s145
    %p149 = scmp.eq.s32.totalorder %s20, 0
    %p150 = por %p148, %p149
    %p151 = scmp.ne.s32.totalorder %s143, %s145
    %p152 = scmp.eq.s32.totalorder %s25, 1
    %p153 = por %p151, %p152
    %p154 = scmp.ne.s32.totalorder %s145, %s146
    %p155 = scmp.eq.s32.totalorder %s25, 0
    %p156 = por %p154, %p155
    %p157 = scmp.ne.s32.totalorder %s145, %s146
    %p158 = scmp.eq.s32.totalorder %s26, 1
    %p159 = por %p157, %p158
    %p161 = scmp.ne.s32.totalorder %s146, %s160
    %p162 = scmp.eq.s32.totalorder %s26, 0
    %p163 = por %p161, %p162
    %s165 = sadd.s32 %s164, 1
    %p168 = scmp.eq.s32.totalorder %s20, 1
    %p169 = scmp.ne.s32.totalorder %s164, %s166
    %p170 = scmp.eq.s32.totalorder %s20, 0
    %p171 = por %p169, %p170
    %p172 = scmp.ne.s32.totalorder %s164, %s166
    %p173 = scmp.eq.s32.totalorder %s25, 1
    %p174 = por %p172, %p173
    %p175 = scmp.ne.s32.totalorder %s166, %s167
    %p176 = scmp.eq.s32.totalorder %s25, 0
    %p177 = por %p175, %p176
    %p178 = scmp.ne.s32.totalorder %s166, %s167
    %p179 = scmp.eq.s32.totalorder %s26, 1
    %p180 = por %p178, %p179
    %p182 = scmp.ne.s32.totalorder %s167, %s181
    %p183 = scmp.eq.s32.totalorder %s26, 0
    %p184 = por %p182, %p183
    %s186 = sadd.s32 %s185, 1
    %p189 = scmp.eq.s32.totalorder %s20, 1
    %p190 = scmp.ne.s32.totalorder %s185, %s187
    %p191 = scmp.eq.s32.totalorder %s20, 0
    %p192 = por %p190, %p191
    %p193 = scmp.ne.s32.totalorder %s185, %s187
    %p194 = scmp.eq.s32.totalorder %s25, 1
    %p195 = por %p193, %p194
    %p196 = scmp.ne.s32.totalorder %s187, %s188
    %p197 = scmp.eq.s32.totalorder %s25, 0
    %p198 = por %p196, %p197
    %p199 = scmp.ne.s32.totalorder %s187, %s188
    %p200 = scmp.eq.s32.totalorder %s26, 1
    %p201 = por %p199, %p200
    %p203 = scmp.ne.s32.totalorder %s188, %s202
    %p204 = scmp.eq.s32.totalorder %s26, 0
    %p205 = por %p203, %p204
    %s207 = sadd.s32 %s206, 1
    %p210 = scmp.eq.s32.totalorder %s20, 1
    %p211 = scmp.ne.s32.totalorder %s206, %s208
    %p212 = scmp.eq.s32.totalorder %s20, 0
    %p213 = por %p211, %p212
    %p214 = scmp.ne.s32.totalorder %s206, %s208
    %p215 = scmp.eq.s32.totalorder %s25, 1
    %p216 = por %p214, %p215
    %p217 = scmp.ne.s32.totalorder %s208, %s209
    %p218 = scmp.eq.s32.totalorder %s25, 0
    %p219 = por %p217, %p218
    %p220 = scmp.ne.s32.totalorder %s208, %s209
    %p221 = scmp.eq.s32.totalorder %s26, 1
    %p222 = por %p220, %p221
    %p224 = scmp.ne.s32.totalorder %s209, %s223
    %p225 = scmp.eq.s32.totalorder %s26, 0
    %p226 = por %p224, %p225
    %s228 = sadd.s32 %s227, 1
    %p231 = scmp.eq.s32.totalorder %s20, 1
    %p232 = scmp.ne.s32.totalorder %s227, %s229
    %p233 = scmp.eq.s32.totalorder %s20, 0
    %p234 = por %p232, %p233
    %p235 = scmp.ne.s32.totalorder %s227, %s229
    %p236 = scmp.eq.s32.totalorder %s25, 1
    %p237 = por %p235, %p236
    %p238 = scmp.ne.s32.totalorder %s229, %s230
    %p239 = scmp.eq.s32.totalorder %s25, 0
    %p240 = por %p238, %p239
    %p241 = scmp.ne.s32.totalorder %s229, %s230
    %p242 = scmp.eq.s32.totalorder %s26, 1
    %p243 = por %p241, %p242
    %p245 = scmp.ne.s32.totalorder %s230, %s244
    %p246 = scmp.eq.s32.totalorder %s26, 0
    %p247 = por %p245, %p246
    %s249 = sadd.s32 %s248, 1
    %p252 = scmp.eq.s32.totalorder %s20, 1
    %p253 = scmp.ne.s32.totalorder %s248, %s250
    %p254 = scmp.eq.s32.totalorder %s20, 0
    %p255 = por %p253, %p254
    %p256 = scmp.ne.s32.totalorder %s248, %s250
    %p257 = scmp.eq.s32.totalorder %s25, 1
    %p258 = por %p256, %p257
    %p259 = scmp.ne.s32.totalorder %s250, %s251
    %p260 = scmp.eq.s32.totalorder %s25, 0
    %p261 = por %p259, %p260
    %p262 = scmp.ne.s32.totalorder %s250, %s251
    %p263 = scmp.eq.s32.totalorder %s26, 1
    %p264 = por %p262, %p263
    %p266 = scmp.ne.s32.totalorder %s251, %s265
    %p267 = scmp.eq.s32.totalorder %s26, 0
    %p268 = por %p266, %p267
    %s270 = sadd.s32 %s269, 1
    %p273 = scmp.eq.s32.totalorder %s20, 1
    %p274 = scmp.ne.s32.totalorder %s269, %s271
    %p275 = scmp.eq.s32.totalorder %s20, 0
    %p276 = por %p274, %p275
    %p277 = scmp.ne.s32.totalorder %s269, %s271
    %p278 = scmp.eq.s32.totalorder %s25, 1
    %p279 = por %p277, %p278
    %p280 = scmp.ne.s32.totalorder %s271, %s272
    %p281 = scmp.eq.s32.totalorder %s25, 0
    %p282 = por %p280, %p281
    %p283 = scmp.ne.s32.totalorder %s271, %s272
    %p284 = scmp.eq.s32.totalorder %s26, 1
    %p285 = por %p283, %p284
    %p287 = scmp.ne.s32.totalorder %s272, %s286
    %p288 = scmp.eq.s32.totalorder %s26, 0
    %p289 = por %p287, %p288
    %s291 = sadd.s32 %s290, 1
    %p294 = scmp.eq.s32.totalorder %s20, 1
    %p295 = scmp.ne.s32.totalorder %s290, %s292
    %p296 = scmp.eq.s32.totalorder %s20, 0
    %p297 = por %p295, %p296
    %p298 = scmp.ne.s32.totalorder %s290, %s292
    %p299 = scmp.eq.s32.totalorder %s25, 1
    %p300 = por %p298, %p299
    %p301 = scmp.ne.s32.totalorder %s292, %s293
    %p302 = scmp.eq.s32.totalorder %s25, 0
    %p303 = por %p301, %p302
    %p304 = scmp.ne.s32.totalorder %s292, %s293
    %p305 = scmp.eq.s32.totalorder %s26, 1
    %p306 = por %p304, %p305
    %p308 = scmp.ne.s32.totalorder %s293, %s307
    %p309 = scmp.eq.s32.totalorder %s26, 0
    %p310 = por %p308, %p309
    %s312 = sadd.s32 %s311, 1
    %p315 = scmp.eq.s32.totalorder %s20, 1
    %p316 = scmp.ne.s32.totalorder %s311, %s313
    %p317 = scmp.eq.s32.totalorder %s20, 0
    %p318 = por %p316, %p317
    %p319 = scmp.ne.s32.totalorder %s311, %s313
    %p320 = scmp.eq.s32.totalorder %s25, 1
    %p321 = por %p319, %p320
    %p322 = scmp.ne.s32.totalorder %s313, %s314
    %p323 = scmp.eq.s32.totalorder %s25, 0
    %p324 = por %p322, %p323
    %p325 = scmp.ne.s32.totalorder %s313, %s314
    %p326 = scmp.eq.s32.totalorder %s26, 1
    %p327 = por %p325, %p326
    %p329 = scmp.ne.s32.totalorder %s314, %s328
    %p330 = scmp.eq.s32.totalorder %s26, 0
    %p331 = por %p329, %p330
    %s332 = ssub.s32 %s20, %s27
    %p333 = scmp.eq.s32.totalorder %s332, 0
    %s335 = sadd.s32 %s334, 1
    %s336 = scalar_select %p333, %s334, %s335
    %p339 = pneg %p333
    %p340 = scmp.eq.s32.totalorder %s20, 1
    %p341 = por %p339, %p340
    %p342 = scmp.ne.s32.totalorder %s334, %s337
    %p343 = scmp.eq.s32.totalorder %s20, 0
    %p344 = por %p342, %p343
    %p345 = scmp.ne.s32.totalorder %s334, %s337
    %p346 = scmp.eq.s32.totalorder %s25, 1
    %p347 = por %p345, %p346
    %p348 = scmp.ne.s32.totalorder %s337, %s338
    %p349 = scmp.eq.s32.totalorder %s25, 0
    %p350 = por %p348, %p349
    %p351 = scmp.ne.s32.totalorder %s337, %s338
    %p352 = scmp.eq.s32.totalorder %s26, 1
    %p353 = por %p351, %p352
    %p355 = scmp.ne.s32.totalorder %s338, %s354
    %p356 = scmp.eq.s32.totalorder %s26, 0
    %p357 = por %p355, %p356
    %p358 = scmp.le.s32.totalorder 1, %s20
    %p359 = scmp.lt.s32.totalorder %s20, 3
    %p360 = pnand %p358, %p359
    %p361 = pneg %p360
    // Predicated region
    $region9: #{servenet_forward.5} parent=5 // pred_check
      _
    $region10: #{servenet_forward.5} parent=5 // pred_check_branch
      %363 = sbr.rel (%p360) target = $region12
    $region11: #{servenet_forward.5} parent=5 // pred_region
      %s364 = ssub.s32 %s20, 1
      // Predicated region
      $region13: #{servenet_forward.5} parent=11 // pred_check
        %p365 = pneg %p93
      $region14: #{servenet_forward.5} parent=11 // pred_check_branch
        %367 = sbr.rel (%p365) target = $region16
      $region15: #{servenet_forward.5} parent=11 // pred_region
        _
      $region16: #{servenet_forward.5} parent=11 // pred_fallthru
        _
      // Predicated region
      $region17: #{servenet_forward.5} parent=11 // pred_check
        %p368 = pneg %p114
      $region18: #{servenet_forward.5} parent=11 // pred_check_branch
        %370 = sbr.rel (%p368) target = $region20
      $region19: #{servenet_forward.5} parent=11 // pred_region
        _
      $region20: #{servenet_forward.5} parent=11 // pred_fallthru
        _
      // Predicated region
      $region21: #{servenet_forward.5} parent=11 // pred_check
        %p371 = pneg %p135
      $region22: #{servenet_forward.5} parent=11 // pred_check_branch
        %373 = sbr.rel (%p371) target = $region24
      $region23: #{servenet_forward.5} parent=11 // pred_region
        _
      $region24: #{servenet_forward.5} parent=11 // pred_fallthru
        _
      // Predicated region
      $region25: #{servenet_forward.5} parent=11 // pred_check
        %p374 = pneg %p156
      $region26: #{servenet_forward.5} parent=11 // pred_check_branch
        %376 = sbr.rel (%p374) target = $region28
      $region27: #{servenet_forward.5} parent=11 // pred_region
        _
      $region28: #{servenet_forward.5} parent=11 // pred_fallthru
        _
      // Predicated region
      $region29: #{servenet_forward.5} parent=11 // pred_check
        %p377 = pneg %p177
      $region30: #{servenet_forward.5} parent=11 // pred_check_branch
        %379 = sbr.rel (%p377) target = $region32
      $region31: #{servenet_forward.5} parent=11 // pred_region
        _
      $region32: #{servenet_forward.5} parent=11 // pred_fallthru
        _
      // Predicated region
      $region33: #{servenet_forward.5} parent=11 // pred_check
        %p380 = pneg %p198
      $region34: #{servenet_forward.5} parent=11 // pred_check_branch
        %382 = sbr.rel (%p380) target = $region36
      $region35: #{servenet_forward.5} parent=11 // pred_region
        _
      $region36: #{servenet_forward.5} parent=11 // pred_fallthru
        _
      // Predicated region
      $region37: #{servenet_forward.5} parent=11 // pred_check
        %p383 = pneg %p219
      $region38: #{servenet_forward.5} parent=11 // pred_check_branch
        %385 = sbr.rel (%p383) target = $region40
      $region39: #{servenet_forward.5} parent=11 // pred_region
        _
      $region40: #{servenet_forward.5} parent=11 // pred_fallthru
        _
      // Predicated region
      $region41: #{servenet_forward.5} parent=11 // pred_check
        %p386 = pneg %p240
      $region42: #{servenet_forward.5} parent=11 // pred_check_branch
        %388 = sbr.rel (%p386) target = $region44
      $region43: #{servenet_forward.5} parent=11 // pred_region
        _
      $region44: #{servenet_forward.5} parent=11 // pred_fallthru
        _
      // Predicated region
      $region45: #{servenet_forward.5} parent=11 // pred_check
        %p389 = pneg %p261
      $region46: #{servenet_forward.5} parent=11 // pred_check_branch
        %391 = sbr.rel (%p389) target = $region48
      $region47: #{servenet_forward.5} parent=11 // pred_region
        _
      $region48: #{servenet_forward.5} parent=11 // pred_fallthru
        _
      // Predicated region
      $region49: #{servenet_forward.5} parent=11 // pred_check
        %p392 = pneg %p282
      $region50: #{servenet_forward.5} parent=11 // pred_check_branch
        %394 = sbr.rel (%p392) target = $region52
      $region51: #{servenet_forward.5} parent=11 // pred_region
        _
      $region52: #{servenet_forward.5} parent=11 // pred_fallthru
        _
      // Predicated region
      $region53: #{servenet_forward.5} parent=11 // pred_check
        %p395 = pneg %p303
      $region54: #{servenet_forward.5} parent=11 // pred_check_branch
        %397 = sbr.rel (%p395) target = $region56
      $region55: #{servenet_forward.5} parent=11 // pred_region
        _
      $region56: #{servenet_forward.5} parent=11 // pred_fallthru
        _
      // Predicated region
      $region57: #{servenet_forward.5} parent=11 // pred_check
        %p398 = pneg %p324
      $region58: #{servenet_forward.5} parent=11 // pred_check_branch
        %400 = sbr.rel (%p398) target = $region60
      $region59: #{servenet_forward.5} parent=11 // pred_region
        _
      $region60: #{servenet_forward.5} parent=11 // pred_fallthru
        _
    $region12: #{servenet_forward.5} parent=5 // pred_fallthru
      _
    %p401 = scmp.lt.s32.totalorder %s20, 2
    // Predicated region
    $region61: #{servenet_forward.5} parent=5 // pred_check
      %p402 = pneg %p401
    $region62: #{servenet_forward.5} parent=5 // pred_check_branch
      %404 = sbr.rel (%p402) target = $region64
    $region63: #{servenet_forward.5} parent=5 // pred_region
      // Predicated region
      $region65: #{servenet_forward.5} parent=63 // pred_check
        %p405 = pneg %p40
      $region66: #{servenet_forward.5} parent=63 // pred_check_branch
        %407 = sbr.rel (%p405) target = $region68
      $region67: #{servenet_forward.5} parent=63 // pred_region
        %p408 = scmp.lt.s32.totalorder %s20, 1
        %s409 = scalar_select %p408, %s20, 1
        %s410 = smul.addr %s409, 4
        %s411 = scalar_lea.vmem %s0, %s410
      $region68: #{servenet_forward.5} parent=63 // pred_fallthru
        _
      // Predicated region
      $region69: #{servenet_forward.5} parent=63 // pred_check
        %p412 = pneg %p66
      $region70: #{servenet_forward.5} parent=63 // pred_check_branch
        %414 = sbr.rel (%p412) target = $region72
      $region71: #{servenet_forward.5} parent=63 // pred_region
        %p415 = scmp.lt.s32.totalorder %s20, 1
        %s416 = scalar_select %p415, %s20, 1
        %s417 = scalar_lea.vmem %s1, %s416
      $region72: #{servenet_forward.5} parent=63 // pred_fallthru
        _
    $region64: #{servenet_forward.5} parent=5 // pred_fallthru
      _
    %p418 = scmp.le.s32.totalorder 1, %s20
    %p419 = scmp.lt.s32.totalorder %s20, 3
    %p420 = pnand %p418, %p419
    %p421 = pneg %p420
    // Predicated region
    $region73: #{servenet_forward.5} parent=5 // pred_check
      _
    $region74: #{servenet_forward.5} parent=5 // pred_check_branch
      %423 = sbr.rel (%p420) target = $region76
    $region75: #{servenet_forward.5} parent=5 // pred_region
      %s424 = ssub.s32 %s20, 1
      %p425 = scmp.lt.s32.totalorder %s25, 1
      %s426 = scalar_select %p425, %s25, 1
      %s427 = smul.addr %s426, 4
      %s428 = scalar_lea.vmem %s0, %s427
      %p429 = pneg %p46
      %p430 = pneg %p43
      %p431 = scmp.lt.s32.totalorder %s25, 1
      %s432 = scalar_select %p431, %s25, 1
      %s433 = scalar_lea.vmem %s1, %s432
      %p434 = pneg %p72
      %p435 = pneg %p69
      %p436 = pneg %p93
      %p437 = pneg %p90
      %p438 = pneg %p114
      %p439 = pneg %p111
      %p440 = pneg %p135
      %p441 = pneg %p132
      %p442 = pneg %p156
      %p443 = pneg %p153
      %p444 = pneg %p177
      %p445 = pneg %p174
      %p446 = pneg %p198
      %p447 = pneg %p195
      %p448 = pneg %p219
      %p449 = pneg %p216
      %p450 = pneg %p240
      %p451 = pneg %p237
      %p452 = pneg %p261
      %p453 = pneg %p258
      %p454 = pneg %p282
      %p455 = pneg %p279
      %p456 = pneg %p303
      %p457 = pneg %p300
      %p458 = pneg %p324
      %p459 = pneg %p321
      %p460 = pneg %p350
      %p461 = pneg %p347
      %p462 = scmp.lt.s32.totalorder %s25, 1
      %s463 = scalar_select %p462, %s25, 1
      %s464 = smul.addr %s463, 4
      %s465 = scalar_lea.vmem %s14, %s464
      %p466 = scmp.lt.s32.totalorder %s25, 1
      %s467 = scalar_select %p466, %s25, 1
      %s468 = smul.addr %s467, 4
      %s469 = scalar_lea.vmem %s0, %s468
      %p470 = scmp.lt.s32.totalorder %s25, 1
      %s471 = scalar_select %p470, %s25, 1
      %s472 = scalar_lea.vmem %s1, %s471
      %p473 = scmp.lt.s32.totalorder %s25, 1
      %s474 = scalar_select %p473, %s25, 1
      %s475 = smul.addr %s474, 4
      %s476 = scalar_lea.vmem %s14, %s475
      %v478 = vld [vmem:[%s469] sm:$0xf]
      %v479 = vld [vmem:[%s472] sm:$0x1]
      %v480 = vld [vmem:[%s2] sm:$0xf]
      %v481 = vld [vmem:[%s2 + $0x4] sm:$0xf]
      %v482 = vld [vmem:[%s2 + $0x8] sm:$0xf]
      %v483 = vld [vmem:[%s2 + $0xc] sm:$0xf]
      %v484 = vld [vmem:[%s3] sm:$0x1]
      %v486 = vlaneseq
      %v487 = vshrl.u32 %v486, 7
      %v488 = vsub.s32 0, %v487
      %v489 = vrot.slane %v484, %v488
      %v495 = vunpack.c.l.b16 %v480
      %v496 = vunpack.c.l.b16 %v481
      %v497 = vunpack.c.l.b16 %v482
      %v498 = vunpack.c.l.b16 %v483
      %v499 = vpack.c.b16 %v496, %v495
      %v500 = vpack.c.b16 %v498, %v497
      %vm503 = vcmask 261120
      %v505 = vsel %vm503, %v478, 0
      %507 = vmatprep.subr.bf16.mxu0 0
      %508 = vmatpush1.bf16.msra.mxu0 %v499
      %509 = vmatprep.subr.bf16.mxu0 0
      %510 = vmatpush1.bf16.msra.mxu0 %v500
      %511 = vmatprep.subr.bf16.mxu0 0
      %512 = vmatpush1.bf16.msra.mxu0 0
      %513 = vmatprep.subr.bf16.mxu0 0
      %514 = vmatpush1.bf16.msra.mxu0 0
      %515 = vmatprep.subr.bf16.mxu0 0
      %516 = vmatpush1.bf16.msra.mxu0 0
      %517 = vmatprep.subr.bf16.mxu0 0
      %518 = vmatpush1.bf16.msra.mxu0 0
      %519 = vmatprep.subr.bf16.mxu0 0
      %520 = vmatpush1.bf16.msra.mxu0 0
      %521 = vmatprep.subr.bf16.mxu0 0
      %522 = vmatpush1.bf16.msra.mxu0 0
      %523 = vmatprep.subr.bf16.mxu0 0
      %524 = vmatpush1.bf16.msra.mxu0 0
      %525 = vmatprep.subr.bf16.mxu0 0
      %526 = vmatpush1.bf16.msra.mxu0 0
      %527 = vmatprep.subr.bf16.mxu0 0
      %528 = vmatpush1.bf16.msra.mxu0 0
      %529 = vmatprep.subr.bf16.mxu0 0
      %530 = vmatpush1.bf16.msra.mxu0 0
      %531 = vmatprep.subr.bf16.mxu0 0
      %532 = vmatpush1.bf16.msra.mxu0 0
      %533 = vmatprep.subr.bf16.mxu0 0
      %534 = vmatpush1.bf16.msra.mxu0 0
      %535 = vmatprep.subr.bf16.mxu0 0
      %536 = vmatpush1.bf16.msra.mxu0 0
      %537 = vmatprep.subr.bf16.mxu0 0
      %538 = vmatpush1.bf16.msra.mxu0 0
      %539 = vmatprep.mubr.bf16.mxu0 0
      %540 = vmatmul.mubr.bf16.gmra.mrb[0].mxu0 %v505
      %v541 = vpop.f32.mrb[0].mxu0
      %v542 = vadd.f32 %v489, %v541
      %v543 = vpop.f32.mrb[0].mxu0
      %v544 = vpop.f32.mrb[0].mxu0
      %v545 = vpop.f32.mrb[0].mxu0
      %546 = vdwg.mxu0
      %547 = vxpose.xlu0.b32.start [1/16] %v542, 128
      %548 = vxpose.xlu0.b32.cont [2/16] 0.0, 128
      %549 = vxpose.xlu0.b32.cont [3/16] 0.0, 128
      %550 = vxpose.xlu0.b32.cont [4/16] 0.0, 128
      %551 = vxpose.xlu0.b32.cont [5/16] 0.0, 128
      %552 = vxpose.xlu0.b32.cont [6/16] 0.0, 128
      %553 = vxpose.xlu0.b32.cont [7/16] 0.0, 128
      %554 = vxpose.xlu0.b32.cont [8/16] 0.0, 128
      %555 = vxpose.xlu0.b32.cont [9/16] 0.0, 128
      %556 = vxpose.xlu0.b32.cont [10/16] 0.0, 128
      %557 = vxpose.xlu0.b32.cont [11/16] 0.0, 128
      %558 = vxpose.xlu0.b32.cont [12/16] 0.0, 128
      %559 = vxpose.xlu0.b32.cont [13/16] 0.0, 128
      %560 = vxpose.xlu0.b32.cont [14/16] 0.0, 128
      %561 = vxpose.xlu0.b32.cont [15/16] 0.0, 128
      %562 = vxpose.xlu0.b32.end [16/16] 0.0, 128
      %v563 = vpop.trf.xlu0
      %v564 = vpop.trf.xlu0
      %v565 = vpop.trf.xlu0
      %v566 = vpop.trf.xlu0
      %v567 = vpop.trf.xlu0
      %v568 = vpop.trf.xlu0
      %v569 = vpop.trf.xlu0
      %v570 = vpop.trf.xlu0
      %v571 = vpop.trf.xlu0
      %v572 = vpop.trf.xlu0
      %v573 = vpop.trf.xlu0
      %v574 = vpop.trf.xlu0
      %v575 = vpop.trf.xlu0
      %v576 = vpop.trf.xlu0
      %v577 = vpop.trf.xlu0
      %v578 = vpop.trf.xlu0
      %579 = vxpose.xlu0.b32.start [1/16] %v563, 128
      %580 = vxpose.xlu0.b32.cont [2/16] 0.0, 128
      %581 = vxpose.xlu0.b32.cont [3/16] 0.0, 128
      %582 = vxpose.xlu0.b32.cont [4/16] 0.0, 128
      %583 = vxpose.xlu0.b32.cont [5/16] 0.0, 128
      %584 = vxpose.xlu0.b32.cont [6/16] 0.0, 128
      %585 = vxpose.xlu0.b32.cont [7/16] 0.0, 128
      %586 = vxpose.xlu0.b32.cont [8/16] 0.0, 128
      %587 = vxpose.xlu0.b32.cont [9/16] 0.0, 128
      %588 = vxpose.xlu0.b32.cont [10/16] 0.0, 128
      %589 = vxpose.xlu0.b32.cont [11/16] 0.0, 128
      %590 = vxpose.xlu0.b32.cont [12/16] 0.0, 128
      %591 = vxpose.xlu0.b32.cont [13/16] 0.0, 128
      %592 = vxpose.xlu0.b32.cont [14/16] 0.0, 128
      %593 = vxpose.xlu0.b32.cont [15/16] 0.0, 128
      %594 = vxpose.xlu0.b32.end [16/16] 0.0, 128
      %v595 = vpop.trf.xlu0
      %v596 = vpop.trf.xlu0
      %v597 = vpop.trf.xlu0
      %v598 = vpop.trf.xlu0
      %v599 = vpop.trf.xlu0
      %v600 = vpop.trf.xlu0
      %v601 = vpop.trf.xlu0
      %v602 = vpop.trf.xlu0
      %v603 = vpop.trf.xlu0
      %v604 = vpop.trf.xlu0
      %v605 = vpop.trf.xlu0
      %v606 = vpop.trf.xlu0
      %v607 = vpop.trf.xlu0
      %v608 = vpop.trf.xlu0
      %v609 = vpop.trf.xlu0
      %v610 = vpop.trf.xlu0
      %vm611 = vcmask 64512
      %v613 = vsel %vm611, %v595, 0
      %615 = vmatprep.subr.mxu0 0.0
      %616 = vmatpush1.msra.mxu0 %v567
      %617 = vmatprep.subr.mxu0 0.0
      %618 = vmatpush1.msra.mxu0 0.0
      %619 = vmatprep.subr.mxu0 0.0
      %620 = vmatpush1.msra.mxu0 0.0
      %621 = vmatprep.subr.mxu0 0.0
      %622 = vmatpush1.msra.mxu0 0.0
      %623 = vmatprep.subr.mxu0 0.0
      %624 = vmatpush1.msra.mxu0 0.0
      %625 = vmatprep.subr.mxu0 0.0
      %626 = vmatpush1.msra.mxu0 0.0
      %627 = vmatprep.subr.mxu0 0.0
      %628 = vmatpush1.msra.mxu0 0.0
      %629 = vmatprep.subr.mxu0 0.0
      %630 = vmatpush1.msra.mxu0 0.0
      %631 = vmatprep.subr.mxu0 0.0
      %632 = vmatpush1.msra.mxu0 0.0
      %633 = vmatprep.subr.mxu0 0.0
      %634 = vmatpush1.msra.mxu0 0.0
      %635 = vmatprep.subr.mxu0 0.0
      %636 = vmatpush1.msra.mxu0 0.0
      %637 = vmatprep.subr.mxu0 0.0
      %638 = vmatpush1.msra.mxu0 0.0
      %639 = vmatprep.subr.mxu0 0.0
      %640 = vmatpush1.msra.mxu0 0.0
      %641 = vmatprep.subr.mxu0 0.0
      %642 = vmatpush1.msra.mxu0 0.0
      %643 = vmatprep.subr.mxu0 0.0
      %644 = vmatpush1.msra.mxu0 0.0
      %645 = vmatprep.subr.mxu0 0.0
      %646 = vmatpush1.msra.mxu0 0.0
      %647 = vmatprep.subr.mxu0 0.0
      %648 = vmatpush1.msra.mxu0 0.0
      %649 = vmatprep.subr.mxu0 0.0
      %650 = vmatpush1.msra.mxu0 0.0
      %651 = vmatprep.subr.mxu0 0.0
      %652 = vmatpush1.msra.mxu0 0.0
      %653 = vmatprep.subr.mxu0 0.0
      %654 = vmatpush1.msra.mxu0 0.0
      %655 = vmatprep.subr.mxu0 0.0
      %656 = vmatpush1.msra.mxu0 0.0
      %657 = vmatprep.subr.mxu0 0.0
      %658 = vmatpush1.msra.mxu0 0.0
      %659 = vmatprep.subr.mxu0 0.0
      %660 = vmatpush1.msra.mxu0 0.0
      %661 = vmatprep.subr.mxu0 0.0
      %662 = vmatpush1.msra.mxu0 0.0
      %663 = vmatprep.subr.mxu0 0.0
      %664 = vmatpush1.msra.mxu0 0.0
      %665 = vmatprep.subr.mxu0 0.0
      %666 = vmatpush1.msra.mxu0 0.0
      %667 = vmatprep.subr.mxu0 0.0
      %668 = vmatpush1.msra.mxu0 0.0
      %669 = vmatprep.subr.mxu0 0.0
      %670 = vmatpush1.msra.mxu0 0.0
      %671 = vmatprep.subr.mxu0 0.0
      %672 = vmatpush1.msra.mxu0 0.0
      %673 = vmatprep.subr.mxu0 0.0
      %674 = vmatpush1.msra.mxu0 0.0
      %675 = vmatprep.subr.mxu0 0.0
      %676 = vmatpush1.msra.mxu0 0.0
      %677 = vmatprep.subr.mxu0 0.0
      %678 = vmatpush1.msra.mxu0 0.0
      %679 = vmatprep.mubr.f32.mxu0 0.0
      %680 = vmatmul.mubr.f32.gmra.mrb[0].mxu0 %v613
      %v681 = vpop.f32.mrb[0].mxu0
      %v682 = vadd.f32 0.0, %v681
      %v683 = vpop.f32.mrb[0].mxu0
      %684 = vdwg.mxu0
      %v685 = vmul.f32 %v682, 0.35355338
      %v687 = vlaneseq
      %v688 = vshrl.u32 %v687, 7
      %v689 = vsub.s32 0, %v688
      %v690 = vrot.slane %v479, %v689
      %v692 = vadd.f32 %v685, %v690
      %v693 = vsel %vm611, %v692, -inf
      %694 = vmax.xlane.f32.xlu0 %v693
      %v695 = vpop.xlane.xlu0 %694
      %v696 = vsub.f32 %v692, %v695
      %v697 = vmul.f32 %v696, 1.442695
      %v698 = vpow.pop %v697
      %v699 = vsel %vm611, %v698, 0.0
      %700 = vadd.xlane.f32.xlu0 %v699
      %v701 = vpop.xlane.xlu0 %700
      %v702 = vrcp.pop %v701
      %v703 = vmul.f32 %v698, %v702
      %v705 = vsel %vm611, %v703, 0
      %v708 = vsel %vm611, %v571, 0
      %710 = vmatprep.subr.mxu0 0.0
      %711 = vmatpush1.xpose.msra.mxu0 %v708
      %712 = vmatprep.subr.mxu0 0.0
      %713 = vmatpush1.xpose.msra.mxu0 0.0
      %714 = vmatprep.subr.mxu0 0.0
      %715 = vmatpush1.xpose.msra.mxu0 0.0
      %716 = vmatprep.subr.mxu0 0.0
      %717 = vmatpush1.xpose.msra.mxu0 0.0
      %718 = vmatprep.subr.mxu0 0.0
      %719 = vmatpush1.xpose.msra.mxu0 0.0
      %720 = vmatprep.subr.mxu0 0.0
      %721 = vmatpush1.xpose.msra.mxu0 0.0
      %722 = vmatprep.subr.mxu0 0.0
      %723 = vmatpush1.xpose.msra.mxu0 0.0
      %724 = vmatprep.subr.mxu0 0.0
      %725 = vmatpush1.xpose.msra.mxu0 0.0
      %726 = vmatprep.subr.mxu0 0.0
      %727 = vmatpush1.xpose.msra.mxu0 0.0
      %728 = vmatprep.subr.mxu0 0.0
      %729 = vmatpush1.xpose.msra.mxu0 0.0
      %730 = vmatprep.subr.mxu0 0.0
      %731 = vmatpush1.xpose.msra.mxu0 0.0
      %732 = vmatprep.subr.mxu0 0.0
      %733 = vmatpush1.xpose.msra.mxu0 0.0
      %734 = vmatprep.subr.mxu0 0.0
      %735 = vmatpush1.xpose.msra.mxu0 0.0
      %736 = vmatprep.subr.mxu0 0.0
      %737 = vmatpush1.xpose.msra.mxu0 0.0
      %738 = vmatprep.subr.mxu0 0.0
      %739 = vmatpush1.xpose.msra.mxu0 0.0
      %740 = vmatprep.subr.mxu0 0.0
      %741 = vmatpush1.xpose.msra.mxu0 0.0
      %742 = vmatprep.subr.mxu0 0.0
      %743 = vmatpush1.xpose.msra.mxu0 0.0
      %744 = vmatprep.subr.mxu0 0.0
      %745 = vmatpush1.xpose.msra.mxu0 0.0
      %746 = vmatprep.subr.mxu0 0.0
      %747 = vmatpush1.xpose.msra.mxu0 0.0
      %748 = vmatprep.subr.mxu0 0.0
      %749 = vmatpush1.xpose.msra.mxu0 0.0
      %750 = vmatprep.subr.mxu0 0.0
      %751 = vmatpush1.xpose.msra.mxu0 0.0
      %752 = vmatprep.subr.mxu0 0.0
      %753 = vmatpush1.xpose.msra.mxu0 0.0
      %754 = vmatprep.subr.mxu0 0.0
      %755 = vmatpush1.xpose.msra.mxu0 0.0
      %756 = vmatprep.subr.mxu0 0.0
      %757 = vmatpush1.xpose.msra.mxu0 0.0
      %758 = vmatprep.subr.mxu0 0.0
      %759 = vmatpush1.xpose.msra.mxu0 0.0
      %760 = vmatprep.subr.mxu0 0.0
      %761 = vmatpush1.xpose.msra.mxu0 0.0
      %762 = vmatprep.subr.mxu0 0.0
      %763 = vmatpush1.xpose.msra.mxu0 0.0
      %764 = vmatprep.subr.mxu0 0.0
      %765 = vmatpush1.xpose.msra.mxu0 0.0
      %766 = vmatprep.subr.mxu0 0.0
      %767 = vmatpush1.xpose.msra.mxu0 0.0
      %768 = vmatprep.subr.mxu0 0.0
      %769 = vmatpush1.xpose.msra.mxu0 0.0
      %770 = vmatprep.subr.mxu0 0.0
      %771 = vmatpush1.xpose.msra.mxu0 0.0
      %772 = vmatprep.subr.mxu0 0.0
      %773 = vmatpush1.xpose.msra.mxu0 0.0
      %774 = vmatprep.mubr.f32.mxu0 0.0
      %775 = vmatmul.mubr.f32.gmra.mrb[0].mxu0 %v705
      %v776 = vpop.f32.mrb[0].mxu0
      %v777 = vadd.f32 0.0, %v776
      %v778 = vpop.f32.mrb[0].mxu0
      %779 = vdwg.mxu0
      %v780 = vld [vmem:[%s4] sm:$0xff]
      %781 = vxpose.xlu0.b32.start [1/16] %v564, 128
      %782 = vxpose.xlu0.b32.cont [2/16] 0.0, 128
      %783 = vxpose.xlu0.b32.cont [3/16] 0.0, 128
      %784 = vxpose.xlu0.b32.cont [4/16] 0.0, 128
      %785 = vxpose.xlu0.b32.cont [5/16] 0.0, 128
      %786 = vxpose.xlu0.b32.cont [6/16] 0.0, 128
      %787 = vxpose.xlu0.b32.cont [7/16] 0.0, 128
      %788 = vxpose.xlu0.b32.cont [8/16] 0.0, 128
      %789 = vxpose.xlu0.b32.cont [9/16] 0.0, 128
      %790 = vxpose.xlu0.b32.cont [10/16] 0.0, 128
      %791 = vxpose.xlu0.b32.cont [11/16] 0.0, 128
      %792 = vxpose.xlu0.b32.cont [12/16] 0.0, 128
      %793 = vxpose.xlu0.b32.cont [13/16] 0.0, 128
      %794 = vxpose.xlu0.b32.cont [14/16] 0.0, 128
      %795 = vxpose.xlu0.b32.cont [15/16] 0.0, 128
      %796 = vxpose.xlu0.b32.end [16/16] 0.0, 128
      %v797 = vpop.trf.xlu0
      %v798 = vpop.trf.xlu0
      %v799 = vpop.trf.xlu0
      %v800 = vpop.trf.xlu0
      %v801 = vpop.trf.xlu0
      %v802 = vpop.trf.xlu0
      %v803 = vpop.trf.xlu0
      %v804 = vpop.trf.xlu0
      %v805 = vpop.trf.xlu0
      %v806 = vpop.trf.xlu0
      %v807 = vpop.trf.xlu0
      %v808 = vpop.trf.xlu0
      %v809 = vpop.trf.xlu0
      %v810 = vpop.trf.xlu0
      %v811 = vpop.trf.xlu0
      %v812 = vpop.trf.xlu0
      %v814 = vsel %vm611, %v797, 0
      %816 = vmatprep.subr.mxu0 0.0
      %817 = vmatpush1.msra.mxu0 %v568
      %818 = vmatprep.subr.mxu0 0.0
      %819 = vmatpush1.msra.mxu0 0.0
      %820 = vmatprep.subr.mxu0 0.0
      %821 = vmatpush1.msra.mxu0 0.0
      %822 = vmatprep.subr.mxu0 0.0
      %823 = vmatpush1.msra.mxu0 0.0
      %824 = vmatprep.subr.mxu0 0.0
      %825 = vmatpush1.msra.mxu0 0.0
      %826 = vmatprep.subr.mxu0 0.0
      %827 = vmatpush1.msra.mxu0 0.0
      %828 = vmatprep.subr.mxu0 0.0
      %829 = vmatpush1.msra.mxu0 0.0
      %830 = vmatprep.subr.mxu0 0.0
      %831 = vmatpush1.msra.mxu0 0.0
      %832 = vmatprep.subr.mxu0 0.0
      %833 = vmatpush1.msra.mxu0 0.0
      %834 = vmatprep.subr.mxu0 0.0
      %835 = vmatpush1.msra.mxu0 0.0
      %836 = vmatprep.subr.mxu0 0.0
      %837 = vmatpush1.msra.mxu0 0.0
      %838 = vmatprep.subr.mxu0 0.0
      %839 = vmatpush1.msra.mxu0 0.0
      %840 = vmatprep.subr.mxu0 0.0
      %841 = vmatpush1.msra.mxu0 0.0
      %842 = vmatprep.subr.mxu0 0.0
      %843 = vmatpush1.msra.mxu0 0.0
      %844 = vmatprep.subr.mxu0 0.0
      %845 = vmatpush1.msra.mxu0 0.0
      %846 = vmatprep.subr.mxu0 0.0
      %847 = vmatpush1.msra.mxu0 0.0
      %848 = vmatprep.subr.mxu0 0.0
      %849 = vmatpush1.msra.mxu0 0.0
      %850 = vmatprep.subr.mxu0 0.0
      %851 = vmatpush1.msra.mxu0 0.0
      %852 = vmatprep.subr.mxu0 0.0
      %853 = vmatpush1.msra.mxu0 0.0
      %854 = vmatprep.subr.mxu0 0.0
      %855 = vmatpush1.msra.mxu0 0.0
      %856 = vmatprep.subr.mxu0 0.0
      %857 = vmatpush1.msra.mxu0 0.0
      %858 = vmatprep.subr.mxu0 0.0
      %859 = vmatpush1.msra.mxu0 0.0
      %860 = vmatprep.subr.mxu0 0.0
      %861 = vmatpush1.msra.mxu0 0.0
      %862 = vmatprep.subr.mxu0 0.0
      %863 = vmatpush1.msra.mxu0 0.0
      %864 = vmatprep.subr.mxu0 0.0
      %865 = vmatpush1.msra.mxu0 0.0
      %866 = vmatprep.subr.mxu0 0.0
      %867 = vmatpush1.msra.mxu0 0.0
      %868 = vmatprep.subr.mxu0 0.0
      %869 = vmatpush1.msra.mxu0 0.0
      %870 = vmatprep.subr.mxu0 0.0
      %871 = vmatpush1.msra.mxu0 0.0
      %872 = vmatprep.subr.mxu0 0.0
      %873 = vmatpush1.msra.mxu0 0.0
      %874 = vmatprep.subr.mxu0 0.0
      %875 = vmatpush1.msra.mxu0 0.0
      %876 = vmatprep.subr.mxu0 0.0
      %877 = vmatpush1.msra.mxu0 0.0
      %878 = vmatprep.subr.mxu0 0.0
      %879 = vmatpush1.msra.mxu0 0.0
      %880 = vmatprep.mubr.f32.mxu0 0.0
      %881 = vmatmul.mubr.f32.gmra.mrb[0].mxu0 %v814
      %v882 = vpop.f32.mrb[0].mxu0
      %v883 = vadd.f32 0.0, %v882
      %v884 = vpop.f32.mrb[0].mxu0
      %885 = vdwg.mxu0
      %v886 = vmul.f32 %v883, 0.35355338
      %v887 = vadd.f32 %v886, %v690
      %v888 = vsel %vm611, %v887, -inf
      %889 = vmax.xlane.f32.xlu0 %v888
      %v890 = vpop.xlane.xlu0 %889
      %v891 = vsub.f32 %v887, %v890
      %v892 = vmul.f32 %v891, 1.442695
      %v893 = vpow.pop %v892
      %v894 = vsel %vm611, %v893, 0.0
      %895 = vadd.xlane.f32.xlu0 %v894
      %v896 = vpop.xlane.xlu0 %895
      %v897 = vrcp.pop %v896
      %v898 = vmul.f32 %v893, %v897
      %v900 = vsel %vm611, %v898, 0
      %v903 = vsel %vm611, %v572, 0
      %905 = vmatprep.subr.mxu0 0.0
      %906 = vmatpush1.xpose.msra.mxu0 %v903
      %907 = vmatprep.subr.mxu0 0.0
      %908 = vmatpush1.xpose.msra.mxu0 0.0
      %909 = vmatprep.subr.mxu0 0.0
      %910 = vmatpush1.xpose.msra.mxu0 0.0
      %911 = vmatprep.subr.mxu0 0.0
      %912 = vmatpush1.xpose.msra.mxu0 0.0
      %913 = vmatprep.subr.mxu0 0.0
      %914 = vmatpush1.xpose.msra.mxu0 0.0
      %915 = vmatprep.subr.mxu0 0.0
      %916 = vmatpush1.xpose.msra.mxu0 0.0
      %917 = vmatprep.subr.mxu0 0.0
      %918 = vmatpush1.xpose.msra.mxu0 0.0
      %919 = vmatprep.subr.mxu0 0.0
      %920 = vmatpush1.xpose.msra.mxu0 0.0
      %921 = vmatprep.subr.mxu0 0.0
      %922 = vmatpush1.xpose.msra.mxu0 0.0
      %923 = vmatprep.subr.mxu0 0.0
      %924 = vmatpush1.xpose.msra.mxu0 0.0
      %925 = vmatprep.subr.mxu0 0.0
      %926 = vmatpush1.xpose.msra.mxu0 0.0
      %927 = vmatprep.subr.mxu0 0.0
      %928 = vmatpush1.xpose.msra.mxu0 0.0
      %929 = vmatprep.subr.mxu0 0.0
      %930 = vmatpush1.xpose.msra.mxu0 0.0
      %931 = vmatprep.subr.mxu0 0.0
      %932 = vmatpush1.xpose.msra.mxu0 0.0
      %933 = vmatprep.subr.mxu0 0.0
      %934 = vmatpush1.xpose.msra.mxu0 0.0
      %935 = vmatprep.subr.mxu0 0.0
      %936 = vmatpush1.xpose.msra.mxu0 0.0
      %937 = vmatprep.subr.mxu0 0.0
      %938 = vmatpush1.xpose.msra.mxu0 0.0
      %939 = vmatprep.subr.mxu0 0.0
      %940 = vmatpush1.xpose.msra.mxu0 0.0
      %941 = vmatprep.subr.mxu0 0.0
      %942 = vmatpush1.xpose.msra.mxu0 0.0
      %943 = vmatprep.subr.mxu0 0.0
      %944 = vmatpush1.xpose.msra.mxu0 0.0
      %945 = vmatprep.subr.mxu0 0.0
      %946 = vmatpush1.xpose.msra.mxu0 0.0
      %947 = vmatprep.subr.mxu0 0.0
      %948 = vmatpush1.xpose.msra.mxu0 0.0
      %949 = vmatprep.subr.mxu0 0.0
      %950 = vmatpush1.xpose.msra.mxu0 0.0
      %951 = vmatprep.subr.mxu0 0.0
      %952 = vmatpush1.xpose.msra.mxu0 0.0
      %953 = vmatprep.subr.mxu0 0.0
      %954 = vmatpush1.xpose.msra.mxu0 0.0
      %955 = vmatprep.subr.mxu0 0.0
      %956 = vmatpush1.xpose.msra.mxu0 0.0
      %957 = vmatprep.subr.mxu0 0.0
      %958 = vmatpush1.xpose.msra.mxu0 0.0
      %959 = vmatprep.subr.mxu0 0.0
      %960 = vmatpush1.xpose.msra.mxu0 0.0
      %961 = vmatprep.subr.mxu0 0.0
      %962 = vmatpush1.xpose.msra.mxu0 0.0
      %963 = vmatprep.subr.mxu0 0.0
      %964 = vmatpush1.xpose.msra.mxu0 0.0
      %965 = vmatprep.subr.mxu0 0.0
      %966 = vmatpush1.xpose.msra.mxu0 0.0
      %967 = vmatprep.subr.mxu0 0.0
      %968 = vmatpush1.xpose.msra.mxu0 0.0
      %969 = vmatprep.mubr.f32.mxu0 0.0
      %970 = vmatmul.mubr.f32.gmra.mrb[0].mxu0 %v900
      %v971 = vpop.f32.mrb[0].mxu0
      %v972 = vadd.f32 0.0, %v971
      %v973 = vpop.f32.mrb[0].mxu0
      %974 = vdwg.mxu0
      %v975 = vld [vmem:[%s4 + $0x8] sm:$0xff]
      %v977 = vsel %vm611, %v972, 0
      %979 = vmatprep.subr.mxu0 0.0
      %980 = vmatpush1.msra.mxu0 %v975
      %981 = vmatprep.subr.mxu0 0.0
      %982 = vmatpush1.msra.mxu0 0.0
      %983 = vmatprep.subr.mxu0 0.0
      %984 = vmatpush1.msra.mxu0 0.0
      %985 = vmatprep.subr.mxu0 0.0
      %986 = vmatpush1.msra.mxu0 0.0
      %987 = vmatprep.subr.mxu0 0.0
      %988 = vmatpush1.msra.mxu0 0.0
      %989 = vmatprep.subr.mxu0 0.0
      %990 = vmatpush1.msra.mxu0 0.0
      %991 = vmatprep.subr.mxu0 0.0
      %992 = vmatpush1.msra.mxu0 0.0
      %993 = vmatprep.subr.mxu0 0.0
      %994 = vmatpush1.msra.mxu0 0.0
      %995 = vmatprep.subr.mxu0 0.0
      %996 = vmatpush1.msra.mxu0 0.0
      %997 = vmatprep.subr.mxu0 0.0
      %998 = vmatpush1.msra.mxu0 0.0
      %999 = vmatprep.subr.mxu0 0.0
      %1000 = vmatpush1.msra.mxu0 0.0
      %1001 = vmatprep.subr.mxu0 0.0
      %1002 = vmatpush1.msra.mxu0 0.0
      %1003 = vmatprep.subr.mxu0 0.0
      %1004 = vmatpush1.msra.mxu0 0.0
      %1005 = vmatprep.subr.mxu0 0.0
      %1006 = vmatpush1.msra.mxu0 0.0
      %1007 = vmatprep.subr.mxu0 0.0
      %1008 = vmatpush1.msra.mxu0 0.0
      %1009 = vmatprep.subr.mxu0 0.0
      %1010 = vmatpush1.msra.mxu0 0.0
      %1011 = vmatprep.subr.mxu0 0.0
      %1012 = vmatpush1.msra.mxu0 0.0
      %1013 = vmatprep.subr.mxu0 0.0
      %1014 = vmatpush1.msra.mxu0 0.0
      %1015 = vmatprep.subr.mxu0 0.0
      %1016 = vmatpush1.msra.mxu0 0.0
      %1017 = vmatprep.subr.mxu0 0.0
      %1018 = vmatpush1.msra.mxu0 0.0
      %1019 = vmatprep.subr.mxu0 0.0
      %1020 = vmatpush1.msra.mxu0 0.0
      %1021 = vmatprep.subr.mxu0 0.0
      %1022 = vmatpush1.msra.mxu0 0.0
      %1023 = vmatprep.subr.mxu0 0.0
      %1024 = vmatpush1.msra.mxu0 0.0
      %1025 = vmatprep.subr.mxu0 0.0
      %1026 = vmatpush1.msra.mxu0 0.0
      %1027 = vmatprep.subr.mxu0 0.0
      %1028 = vmatpush1.msra.mxu0 0.0
      %1029 = vmatprep.subr.mxu0 0.0
      %1030 = vmatpush1.msra.mxu0 0.0
      %1031 = vmatprep.subr.mxu0 0.0
      %1032 = vmatpush1.msra.mxu0 0.0
      %1033 = vmatprep.subr.mxu0 0.0
      %1034 = vmatpush1.msra.mxu0 0.0
      %1035 = vmatprep.subr.mxu0 0.0
      %1036 = vmatpush1.msra.mxu0 0.0
      %1037 = vmatprep.subr.mxu0 0.0
      %1038 = vmatpush1.msra.mxu0 0.0
      %1039 = vmatprep.subr.mxu0 0.0
      %1040 = vmatpush1.msra.mxu0 0.0
      %1041 = vmatprep.subr.mxu0 0.0
      %1042 = vmatpush1.msra.mxu0 0.0
      %1043 = vmatprep.mubr.f32.mxu0 0.0
      %1044 = vmatmul.mubr.f32.gmra.mrb[0].mxu0 %v977
      %v1045 = vpop.f32.mrb[0].mxu0
      %v1046 = vadd.f32 0.0, %v1045
      %v1047 = vpop.f32.mrb[0].mxu0
      %1048 = vdwg.mxu0
      %v1050 = vsel %vm611, %v777, 0
      %1052 = vmatprep.subr.mxu0 0.0
      %1053 = vmatpush1.msra.mxu0 %v780
      %1054 = vmatprep.subr.mxu0 0.0
      %1055 = vmatpush1.msra.mxu0 0.0
      %1056 = vmatprep.subr.mxu0 0.0
      %1057 = vmatpush1.msra.mxu0 0.0
      %1058 = vmatprep.subr.mxu0 0.0
      %1059 = vmatpush1.msra.mxu0 0.0
      %1060 = vmatprep.subr.mxu0 0.0
      %1061 = vmatpush1.msra.mxu0 0.0
      %1062 = vmatprep.subr.mxu0 0.0
      %1063 = vmatpush1.msra.mxu0 0.0
      %1064 = vmatprep.subr.mxu0 0.0
      %1065 = vmatpush1.msra.mxu0 0.0
      %1066 = vmatprep.subr.mxu0 0.0
      %1067 = vmatpush1.msra.mxu0 0.0
      %1068 = vmatprep.subr.mxu0 0.0
      %1069 = vmatpush1.msra.mxu0 0.0
      %1070 = vmatprep.subr.mxu0 0.0
      %1071 = vmatpush1.msra.mxu0 0.0
      %1072 = vmatprep.subr.mxu0 0.0
      %1073 = vmatpush1.msra.mxu0 0.0
      %1074 = vmatprep.subr.mxu0 0.0
      %1075 = vmatpush1.msra.mxu0 0.0
      %1076 = vmatprep.subr.mxu0 0.0
      %1077 = vmatpush1.msra.mxu0 0.0
      %1078 = vmatprep.subr.mxu0 0.0
      %1079 = vmatpush1.msra.mxu0 0.0
      %1080 = vmatprep.subr.mxu0 0.0
      %1081 = vmatpush1.msra.mxu0 0.0
      %1082 = vmatprep.subr.mxu0 0.0
      %1083 = vmatpush1.msra.mxu0 0.0
      %1084 = vmatprep.subr.mxu0 0.0
      %1085 = vmatpush1.msra.mxu0 0.0
      %1086 = vmatprep.subr.mxu0 0.0
      %1087 = vmatpush1.msra.mxu0 0.0
      %1088 = vmatprep.subr.mxu0 0.0
      %1089 = vmatpush1.msra.mxu0 0.0
      %1090 = vmatprep.subr.mxu0 0.0
      %1091 = vmatpush1.msra.mxu0 0.0
      %1092 = vmatprep.subr.mxu0 0.0
      %1093 = vmatpush1.msra.mxu0 0.0
      %1094 = vmatprep.subr.mxu0 0.0
      %1095 = vmatpush1.msra.mxu0 0.0
      %1096 = vmatprep.subr.mxu0 0.0
      %1097 = vmatpush1.msra.mxu0 0.0
      %1098 = vmatprep.subr.mxu0 0.0
      %1099 = vmatpush1.msra.mxu0 0.0
      %1100 = vmatprep.subr.mxu0 0.0
      %1101 = vmatpush1.msra.mxu0 0.0
      %1102 = vmatprep.subr.mxu0 0.0
      %1103 = vmatpush1.msra.mxu0 0.0
      %1104 = vmatprep.subr.mxu0 0.0
      %1105 = vmatpush1.msra.mxu0 0.0
      %1106 = vmatprep.subr.mxu0 0.0
      %1107 = vmatpush1.msra.mxu0 0.0
      %1108 = vmatprep.subr.mxu0 0.0
      %1109 = vmatpush1.msra.mxu0 0.0
      %1110 = vmatprep.subr.mxu0 0.0
      %1111 = vmatpush1.msra.mxu0 0.0
      %1112 = vmatprep.subr.mxu0 0.0
      %1113 = vmatpush1.msra.mxu0 0.0
      %1114 = vmatprep.subr.mxu0 0.0
      %1115 = vmatpush1.msra.mxu0 0.0
      %1116 = vmatprep.mubr.f32.mxu0 0.0
      %1117 = vmatmul.mubr.f32.gmra.mrb[0].mxu0 %v1050
      %v1118 = vpop.f32.mrb[0].mxu0
      %v1119 = vadd.f32 %v1046, %v1118
      %v1120 = vpop.f32.mrb[0].mxu0
      %1121 = vdwg.mxu0
      %1122 = vxpose.xlu0.b32.start [1/16] %v565, 128
      %1123 = vxpose.xlu0.b32.cont [2/16] 0.0, 128
      %1124 = vxpose.xlu0.b32.cont [3/16] 0.0, 128
      %1125 = vxpose.xlu0.b32.cont [4/16] 0.0, 128
      %1126 = vxpose.xlu0.b32.cont [5/16] 0.0, 128
      %1127 = vxpose.xlu0.b32.cont [6/16] 0.0, 128
      %1128 = vxpose.xlu0.b32.cont [7/16] 0.0, 128
      %1129 = vxpose.xlu0.b32.cont [8/16] 0.0, 128
      %1130 = vxpose.xlu0.b32.cont [9/16] 0.0, 128
      %1131 = vxpose.xlu0.b32.cont [10/16] 0.0, 128
      %1132 = vxpose.xlu0.b32.cont [11/16] 0.0, 128
      %1133 = vxpose.xlu0.b32.cont [12/16] 0.0, 128
      %1134 = vxpose.xlu0.b32.cont [13/16] 0.0, 128
      %1135 = vxpose.xlu0.b32.cont [14/16] 0.0, 128
      %1136 = vxpose.xlu0.b32.cont [15/16] 0.0, 128
      %1137 = vxpose.xlu0.b32.end [16/16] 0.0, 128
      %v1138 = vpop.trf.xlu0
      %v1139 = vpop.trf.xlu0
      %v1140 = vpop.trf.xlu0
      %v1141 = vpop.trf.xlu0
      %v1142 = vpop.trf.xlu0
      %v1143 = vpop.trf.xlu0
      %v1144 = vpop.trf.xlu0
      %v1145 = vpop.trf.xlu0
      %v1146 = vpop.trf.xlu0
      %v1147 = vpop.trf.xlu0
      %v1148 = vpop.trf.xlu0
      %v1149 = vpop.trf.xlu0
      %v1150 = vpop.trf.xlu0
      %v1151 = vpop.trf.xlu0
      %v1152 = vpop.trf.xlu0
      %v1153 = vpop.trf.xlu0
      %v1155 = vsel %vm611, %v1138, 0
      %1157 = vmatprep.subr.mxu0 0.0
      %1158 = vmatpush1.msra.mxu0 %v569
      %1159 = vmatprep.subr.mxu0 0.0
      %1160 = vmatpush1.msra.mxu0 0.0
      %1161 = vmatprep.subr.mxu0 0.0
      %1162 = vmatpush1.msra.mxu0 0.0
      %1163 = vmatprep.subr.mxu0 0.0
      %1164 = vmatpush1.msra.mxu0 0.0
      %1165 = vmatprep.subr.mxu0 0.0
      %1166 = vmatpush1.msra.mxu0 0.0
      %1167 = vmatprep.subr.mxu0 0.0
      %1168 = vmatpush1.msra.mxu0 0.0
      %1169 = vmatprep.subr.mxu0 0.0
      %1170 = vmatpush1.msra.mxu0 0.0
      %1171 = vmatprep.subr.mxu0 0.0
      %1172 = vmatpush1.msra.mxu0 0.0
      %1173 = vmatprep.subr.mxu0 0.0
      %1174 = vmatpush1.msra.mxu0 0.0
      %1175 = vmatprep.subr.mxu0 0.0
      %1176 = vmatpush1.msra.mxu0 0.0
      %1177 = vmatprep.subr.mxu0 0.0
      %1178 = vmatpush1.msra.mxu0 0.0
      %1179 = vmatprep.subr.mxu0 0.0
      %1180 = vmatpush1.msra.mxu0 0.0
      %1181 = vmatprep.subr.mxu0 0.0
      %1182 = vmatpush1.msra.mxu0 0.0
      %1183 = vmatprep.subr.mxu0 0.0
      %1184 = vmatpush1.msra.mxu0 0.0
      %1185 = vmatprep.subr.mxu0 0.0
      %1186 = vmatpush1.msra.mxu0 0.0
      %1187 = vmatprep.subr.mxu0 0.0
      %1188 = vmatpush1.msra.mxu0 0.0
      %1189 = vmatprep.subr.mxu0 0.0
      %1190 = vmatpush1.msra.mxu0 0.0
      %1191 = vmatprep.subr.mxu0 0.0
      %1192 = vmatpush1.msra.mxu0 0.0
      %1193 = vmatprep.subr.mxu0 0.0
      %1194 = vmatpush1.msra.mxu0 0.0
      %1195 = vmatprep.subr.mxu0 0.0
      %1196 = vmatpush1.msra.mxu0 0.0
      %1197 = vmatprep.subr.mxu0 0.0
      %1198 = vmatpush1.msra.mxu0 0.0
      %1199 = vmatprep.subr.mxu0 0.0
      %1200 = vmatpush1.msra.mxu0 0.0
      %1201 = vmatprep.subr.mxu0 0.0
      %1202 = vmatpush1.msra.mxu0 0.0
      %1203 = vmatprep.subr.mxu0 0.0
      %1204 = vmatpush1.msra.mxu0 0.0
      %1205 = vmatprep.subr.mxu0 0.0
      %1206 = vmatpush1.msra.mxu0 0.0
      %1207 = vmatprep.subr.mxu0 0.0
      %1208 = vmatpush1.msra.mxu0 0.0
      %1209 = vmatprep.subr.mxu0 0.0
      %1210 = vmatpush1.msra.mxu0 0.0
      %1211 = vmatprep.subr.mxu0 0.0
      %1212 = vmatpush1.msra.mxu0 0.0
      %1213 = vmatprep.subr.mxu0 0.0
      %1214 = vmatpush1.msra.mxu0 0.0
      %1215 = vmatprep.subr.mxu0 0.0
      %1216 = vmatpush1.msra.mxu0 0.0
      %1217 = vmatprep.subr.mxu0 0.0
      %1218 = vmatpush1.msra.mxu0 0.0
      %1219 = vmatprep.subr.mxu0 0.0
      %1220 = vmatpush1.msra.mxu0 0.0
      %1221 = vmatprep.mubr.f32.mxu0 0.0
      %1222 = vmatmul.mubr.f32.gmra.mrb[0].mxu0 %v1155
      %v1223 = vpop.f32.mrb[0].mxu0
      %v1224 = vadd.f32 0.0, %v1223
      %v1225 = vpop.f32.mrb[0].mxu0
      %1226 = vdwg.mxu0
      %v1227 = vmul.f32 %v1224, 0.35355338
      %v1228 = vadd.f32 %v1227, %v690
      %v1229 = vsel %vm611, %v1228, -inf
      %1230 = vmax.xlane.f32.xlu0 %v1229
      %v1231 = vpop.xlane.xlu0 %1230
      %v1232 = vsub.f32 %v1228, %v1231
      %v1233 = vmul.f32 %v1232, 1.442695
      %v1234 = vpow.pop %v1233
      %v1235 = vsel %vm611, %v1234, 0.0
      %1236 = vadd.xlane.f32.xlu0 %v1235
      %v1237 = vpop.xlane.xlu0 %1236
      %v1238 = vrcp.pop %v1237
      %v1239 = vmul.f32 %v1234, %v1238
      %v1241 = vsel %vm611, %v1239, 0
      %v1244 = vsel %vm611, %v573, 0
      %1246 = vmatprep.subr.mxu0 0.0
      %1247 = vmatpush1.xpose.msra.mxu0 %v1244
      %1248 = vmatprep.subr.mxu0 0.0
      %1249 = vmatpush1.xpose.msra.mxu0 0.0
      %1250 = vmatprep.subr.mxu0 0.0
      %1251 = vmatpush1.xpose.msra.mxu0 0.0
      %1252 = vmatprep.subr.mxu0 0.0
      %1253 = vmatpush1.xpose.msra.mxu0 0.0
      %1254 = vmatprep.subr.mxu0 0.0
      %1255 = vmatpush1.xpose.msra.mxu0 0.0
      %1256 = vmatprep.subr.mxu0 0.0
      %1257 = vmatpush1.xpose.msra.mxu0 0.0
      %1258 = vmatprep.subr.mxu0 0.0
      %1259 = vmatpush1.xpose.msra.mxu0 0.0
      %1260 = vmatprep.subr.mxu0 0.0
      %1261 = vmatpush1.xpose.msra.mxu0 0.0
      %1262 = vmatprep.subr.mxu0 0.0
      %1263 = vmatpush1.xpose.msra.mxu0 0.0
      %1264 = vmatprep.subr.mxu0 0.0
      %1265 = vmatpush1.xpose.msra.mxu0 0.0
      %1266 = vmatprep.subr.mxu0 0.0
      %1267 = vmatpush1.xpose.msra.mxu0 0.0
      %1268 = vmatprep.subr.mxu0 0.0
      %1269 = vmatpush1.xpose.msra.mxu0 0.0
      %1270 = vmatprep.subr.mxu0 0.0
      %1271 = vmatpush1.xpose.msra.mxu0 0.0
      %1272 = vmatprep.subr.mxu0 0.0
      %1273 = vmatpush1.xpose.msra.mxu0 0.0
      %1274 = vmatprep.subr.mxu0 0.0
      %1275 = vmatpush1.xpose.msra.mxu0 0.0
      %1276 = vmatprep.subr.mxu0 0.0
      %1277 = vmatpush1.xpose.msra.mxu0 0.0
      %1278 = vmatprep.subr.mxu0 0.0
      %1279 = vmatpush1.xpose.msra.mxu0 0.0
      %1280 = vmatprep.subr.mxu0 0.0
      %1281 = vmatpush1.xpose.msra.mxu0 0.0
      %1282 = vmatprep.subr.mxu0 0.0
      %1283 = vmatpush1.xpose.msra.mxu0 0.0
      %1284 = vmatprep.subr.mxu0 0.0
      %1285 = vmatpush1.xpose.msra.mxu0 0.0
      %1286 = vmatprep.subr.mxu0 0.0
      %1287 = vmatpush1.xpose.msra.mxu0 0.0
      %1288 = vmatprep.subr.mxu0 0.0
      %1289 = vmatpush1.xpose.msra.mxu0 0.0
      %1290 = vmatprep.subr.mxu0 0.0
      %1291 = vmatpush1.xpose.msra.mxu0 0.0
      %1292 = vmatprep.subr.mxu0 0.0
      %1293 = vmatpush1.xpose.msra.mxu0 0.0
      %1294 = vmatprep.subr.mxu0 0.0
      %1295 = vmatpush1.xpose.msra.mxu0 0.0
      %1296 = vmatprep.subr.mxu0 0.0
      %1297 = vmatpush1.xpose.msra.mxu0 0.0
      %1298 = vmatprep.subr.mxu0 0.0
      %1299 = vmatpush1.xpose.msra.mxu0 0.0
      %1300 = vmatprep.subr.mxu0 0.0
      %1301 = vmatpush1.xpose.msra.mxu0 0.0
      %1302 = vmatprep.subr.mxu0 0.0
      %1303 = vmatpush1.xpose.msra.mxu0 0.0
      %1304 = vmatprep.subr.mxu0 0.0
      %1305 = vmatpush1.xpose.msra.mxu0 0.0
      %1306 = vmatprep.subr.mxu0 0.0
      %1307 = vmatpush1.xpose.msra.mxu0 0.0
      %1308 = vmatprep.subr.mxu0 0.0
      %1309 = vmatpush1.xpose.msra.mxu0 0.0
      %1310 = vmatprep.mubr.f32.mxu0 0.0
      %1311 = vmatmul.mubr.f32.gmra.mrb[0].mxu0 %v1241
      %v1312 = vpop.f32.mrb[0].mxu0
      %v1313 = vadd.f32 0.0, %v1312
      %v1314 = vpop.f32.mrb[0].mxu0
      %1315 = vdwg.mxu0
      %v1316 = vld [vmem:[%s4 + $0x10] sm:$0xff]
      %v1318 = vsel %vm611, %v1313, 0
      %1320 = vmatprep.subr.mxu0 0.0
      %1321 = vmatpush1.msra.mxu0 %v1316
      %1322 = vmatprep.subr.mxu0 0.0
      %1323 = vmatpush1.msra.mxu0 0.0
      %1324 = vmatprep.subr.mxu0 0.0
      %1325 = vmatpush1.msra.mxu0 0.0
      %1326 = vmatprep.subr.mxu0 0.0
      %1327 = vmatpush1.msra.mxu0 0.0
      %1328 = vmatprep.subr.mxu0 0.0
      %1329 = vmatpush1.msra.mxu0 0.0
      %1330 = vmatprep.subr.mxu0 0.0
      %1331 = vmatpush1.msra.mxu0 0.0
      %1332 = vmatprep.subr.mxu0 0.0
      %1333 = vmatpush1.msra.mxu0 0.0
      %1334 = vmatprep.subr.mxu0 0.0
      %1335 = vmatpush1.msra.mxu0 0.0
      %1336 = vmatprep.subr.mxu0 0.0
      %1337 = vmatpush1.msra.mxu0 0.0
      %1338 = vmatprep.subr.mxu0 0.0
      %1339 = vmatpush1.msra.mxu0 0.0
      %1340 = vmatprep.subr.mxu0 0.0
      %1341 = vmatpush1.msra.mxu0 0.0
      %1342 = vmatprep.subr.mxu0 0.0
      %1343 = vmatpush1.msra.mxu0 0.0
      %1344 = vmatprep.subr.mxu0 0.0
      %1345 = vmatpush1.msra.mxu0 0.0
      %1346 = vmatprep.subr.mxu0 0.0
      %1347 = vmatpush1.msra.mxu0 0.0
      %1348 = vmatprep.subr.mxu0 0.0
      %1349 = vmatpush1.msra.mxu0 0.0
      %1350 = vmatprep.subr.mxu0 0.0
      %1351 = vmatpush1.msra.mxu0 0.0
      %1352 = vmatprep.subr.mxu0 0.0
      %1353 = vmatpush1.msra.mxu0 0.0
      %1354 = vmatprep.subr.mxu0 0.0
      %1355 = vmatpush1.msra.mxu0 0.0
      %1356 = vmatprep.subr.mxu0 0.0
      %1357 = vmatpush1.msra.mxu0 0.0
      %1358 = vmatprep.subr.mxu0 0.0
      %1359 = vmatpush1.msra.mxu0 0.0
      %1360 = vmatprep.subr.mxu0 0.0
      %1361 = vmatpush1.msra.mxu0 0.0
      %1362 = vmatprep.subr.mxu0 0.0
      %1363 = vmatpush1.msra.mxu0 0.0
      %1364 = vmatprep.subr.mxu0 0.0
      %1365 = vmatpush1.msra.mxu0 0.0
      %1366 = vmatprep.subr.mxu0 0.0
      %1367 = vmatpush1.msra.mxu0 0.0
      %1368 = vmatprep.subr.mxu0 0.0
      %1369 = vmatpush1.msra.mxu0 0.0
      %1370 = vmatprep.subr.mxu0 0.0
      %1371 = vmatpush1.msra.mxu0 0.0
      %1372 = vmatprep.subr.mxu0 0.0
      %1373 = vmatpush1.msra.mxu0 0.0
      %1374 = vmatprep.subr.mxu0 0.0
      %1375 = vmatpush1.msra.mxu0 0.0
      %1376 = vmatprep.subr.mxu0 0.0
      %1377 = vmatpush1.msra.mxu0 0.0
      %1378 = vmatprep.subr.mxu0 0.0
      %1379 = vmatpush1.msra.mxu0 0.0
      %1380 = vmatprep.subr.mxu0 0.0
      %1381 = vmatpush1.msra.mxu0 0.0
      %1382 = vmatprep.subr.mxu0 0.0
      %1383 = vmatpush1.msra.mxu0 0.0
      %1384 = vmatprep.mubr.f32.mxu0 0.0
      %1385 = vmatmul.mubr.f32.gmra.mrb[0].mxu0 %v1318
      %v1386 = vpop.f32.mrb[0].mxu0
      %v1387 = vadd.f32 0.0, %v1386
      %v1388 = vpop.f32.mrb[0].mxu0
      %1389 = vdwg.mxu0
      %v1390 = vadd.f32 %v1119, %v1387
      %1391 = vxpose.xlu0.b32.start [1/16] %v566, 128
      %1392 = vxpose.xlu0.b32.cont [2/16] 0.0, 128
      %1393 = vxpose.xlu0.b32.cont [3/16] 0.0, 128
      %1394 = vxpose.xlu0.b32.cont [4/16] 0.0, 128
      %1395 = vxpose.xlu0.b32.cont [5/16] 0.0, 128
      %1396 = vxpose.xlu0.b32.cont [6/16] 0.0, 128
      %1397 = vxpose.xlu0.b32.cont [7/16] 0.0, 128
      %1398 = vxpose.xlu0.b32.cont [8/16] 0.0, 128
      %1399 = vxpose.xlu0.b32.cont [9/16] 0.0, 128
      %1400 = vxpose.xlu0.b32.cont [10/16] 0.0, 128
      %1401 = vxpose.xlu0.b32.cont [11/16] 0.0, 128
      %1402 = vxpose.xlu0.b32.cont [12/16] 0.0, 128
      %1403 = vxpose.xlu0.b32.cont [13/16] 0.0, 128
      %1404 = vxpose.xlu0.b32.cont [14/16] 0.0, 128
      %1405 = vxpose.xlu0.b32.cont [15/16] 0.0, 128
      %1406 = vxpose.xlu0.b32.end [16/16] 0.0, 128
      %v1407 = vpop.trf.xlu0
      %v1408 = vpop.trf.xlu0
      %v1409 = vpop.trf.xlu0
      %v1410 = vpop.trf.xlu0
      %v1411 = vpop.trf.xlu0
      %v1412 = vpop.trf.xlu0
      %v1413 = vpop.trf.xlu0
      %v1414 = vpop.trf.xlu0
      %v1415 = vpop.trf.xlu0
      %v1416 = vpop.trf.xlu0
      %v1417 = vpop.trf.xlu0
      %v1418 = vpop.trf.xlu0
      %v1419 = vpop.trf.xlu0
      %v1420 = vpop.trf.xlu0
      %v1421 = vpop.trf.xlu0
      %v1422 = vpop.trf.xlu0
      %v1424 = vsel %vm611, %v1407, 0
      %1426 = vmatprep.subr.mxu0 0.0
      %1427 = vmatpush1.msra.mxu0 %v570
      %1428 = vmatprep.subr.mxu0 0.0
      %1429 = vmatpush1.msra.mxu0 0.0
      %1430 = vmatprep.subr.mxu0 0.0
      %1431 = vmatpush1.msra.mxu0 0.0
      %1432 = vmatprep.subr.mxu0 0.0
      %1433 = vmatpush1.msra.mxu0 0.0
      %1434 = vmatprep.subr.mxu0 0.0
      %1435 = vmatpush1.msra.mxu0 0.0
      %1436 = vmatprep.subr.mxu0 0.0
      %1437 = vmatpush1.msra.mxu0 0.0
      %1438 = vmatprep.subr.mxu0 0.0
      %1439 = vmatpush1.msra.mxu0 0.0
      %1440 = vmatprep.subr.mxu0 0.0
      %1441 = vmatpush1.msra.mxu0 0.0
      %1442 = vmatprep.subr.mxu0 0.0
      %1443 = vmatpush1.msra.mxu0 0.0
      %1444 = vmatprep.subr.mxu0 0.0
      %1445 = vmatpush1.msra.mxu0 0.0
      %1446 = vmatprep.subr.mxu0 0.0
      %1447 = vmatpush1.msra.mxu0 0.0
      %1448 = vmatprep.subr.mxu0 0.0
      %1449 = vmatpush1.msra.mxu0 0.0
      %1450 = vmatprep.subr.mxu0 0.0
      %1451 = vmatpush1.msra.mxu0 0.0
      %1452 = vmatprep.subr.mxu0 0.0
      %1453 = vmatpush1.msra.mxu0 0.0
      %1454 = vmatprep.subr.mxu0 0.0
      %1455 = vmatpush1.msra.mxu0 0.0
      %1456 = vmatprep.subr.mxu0 0.0
      %1457 = vmatpush1.msra.mxu0 0.0
      %1458 = vmatprep.subr.mxu0 0.0
      %1459 = vmatpush1.msra.mxu0 0.0
      %1460 = vmatprep.subr.mxu0 0.0
      %1461 = vmatpush1.msra.mxu0 0.0
      %1462 = vmatprep.subr.mxu0 0.0
      %1463 = vmatpush1.msra.mxu0 0.0
      %1464 = vmatprep.subr.mxu0 0.0
      %1465 = vmatpush1.msra.mxu0 0.0
      %1466 = vmatprep.subr.mxu0 0.0
      %1467 = vmatpush1.msra.mxu0 0.0
      %1468 = vmatprep.subr.mxu0 0.0
      %1469 = vmatpush1.msra.mxu0 0.0
      %1470 = vmatprep.subr.mxu0 0.0
      %1471 = vmatpush1.msra.mxu0 0.0
      %1472 = vmatprep.subr.mxu0 0.0
      %1473 = vmatpush1.msra.mxu0 0.0
      %1474 = vmatprep.subr.mxu0 0.0
      %1475 = vmatpush1.msra.mxu0 0.0
      %1476 = vmatprep.subr.mxu0 0.0
      %1477 = vmatpush1.msra.mxu0 0.0
      %1478 = vmatprep.subr.mxu0 0.0
      %1479 = vmatpush1.msra.mxu0 0.0
      %1480 = vmatprep.subr.mxu0 0.0
      %1481 = vmatpush1.msra.mxu0 0.0
      %1482 = vmatprep.subr.mxu0 0.0
      %1483 = vmatpush1.msra.mxu0 0.0
      %1484 = vmatprep.subr.mxu0 0.0
      %1485 = vmatpush1.msra.mxu0 0.0
      %1486 = vmatprep.subr.mxu0 0.0
      %1487 = vmatpush1.msra.mxu0 0.0
      %1488 = vmatprep.subr.mxu0 0.0
      %1489 = vmatpush1.msra.mxu0 0.0
      %1490 = vmatprep.mubr.f32.mxu0 0.0
      %1491 = vmatmul.mubr.f32.gmra.mrb[0].mxu0 %v1424
      %v1492 = vpop.f32.mrb[0].mxu0
      %v1493 = vadd.f32 0.0, %v1492
      %v1494 = vpop.f32.mrb[0].mxu0
      %1495 = vdwg.mxu0
      %v1496 = vmul.f32 %v1493, 0.35355338
      %v1497 = vadd.f32 %v1496, %v690
      %v1498 = vsel %vm611, %v1497, -inf
      %1499 = vmax.xlane.f32.xlu0 %v1498
      %v1500 = vpop.xlane.xlu0 %1499
      %v1501 = vsub.f32 %v1497, %v1500
      %v1502 = vmul.f32 %v1501, 1.442695
      %v1503 = vpow.pop %v1502
      %v1504 = vsel %vm611, %v1503, 0.0
      %1505 = vadd.xlane.f32.xlu0 %v1504
      %v1506 = vpop.xlane.xlu0 %1505
      %v1507 = vrcp.pop %v1506
      %v1508 = vmul.f32 %v1503, %v1507
      %v1510 = vsel %vm611, %v1508, 0
      %v1513 = vsel %vm611, %v574, 0
      %1515 = vmatprep.subr.mxu0 0.0
      %1516 = vmatpush1.xpose.msra.mxu0 %v1513
      %1517 = vmatprep.subr.mxu0 0.0
      %1518 = vmatpush1.xpose.msra.mxu0 0.0
      %1519 = vmatprep.subr.mxu0 0.0
      %1520 = vmatpush1.xpose.msra.mxu0 0.0
      %1521 = vmatprep.subr.mxu0 0.0
      %1522 = vmatpush1.xpose.msra.mxu0 0.0
      %1523 = vmatprep.subr.mxu0 0.0
      %1524 = vmatpush1.xpose.msra.mxu0 0.0
      %1525 = vmatprep.subr.mxu0 0.0
      %1526 = vmatpush1.xpose.msra.mxu0 0.0
      %1527 = vmatprep.subr.mxu0 0.0
      %1528 = vmatpush1.xpose.msra.mxu0 0.0
      %1529 = vmatprep.subr.mxu0 0.0
      %1530 = vmatpush1.xpose.msra.mxu0 0.0
      %1531 = vmatprep.subr.mxu0 0.0
      %1532 = vmatpush1.xpose.msra.mxu0 0.0
      %1533 = vmatprep.subr.mxu0 0.0
      %1534 = vmatpush1.xpose.msra.mxu0 0.0
      %1535 = vmatprep.subr.mxu0 0.0
      %1536 = vmatpush1.xpose.msra.mxu0 0.0
      %1537 = vmatprep.subr.mxu0 0.0
      %1538 = vmatpush1.xpose.msra.mxu0 0.0
      %1539 = vmatprep.subr.mxu0 0.0
      %1540 = vmatpush1.xpose.msra.mxu0 0.0
      %1541 = vmatprep.subr.mxu0 0.0
      %1542 = vmatpush1.xpose.msra.mxu0 0.0
      %1543 = vmatprep.subr.mxu0 0.0
      %1544 = vmatpush1.xpose.msra.mxu0 0.0
      %1545 = vmatprep.subr.mxu0 0.0
      %1546 = vmatpush1.xpose.msra.mxu0 0.0
      %1547 = vmatprep.subr.mxu0 0.0
      %1548 = vmatpush1.xpose.msra.mxu0 0.0
      %1549 = vmatprep.subr.mxu0 0.0
      %1550 = vmatpush1.xpose.msra.mxu0 0.0
      %1551 = vmatprep.subr.mxu0 0.0
      %1552 = vmatpush1.xpose.msra.mxu0 0.0
      %1553 = vmatprep.subr.mxu0 0.0
      %1554 = vmatpush1.xpose.msra.mxu0 0.0
      %1555 = vmatprep.subr.mxu0 0.0
      %1556 = vmatpush1.xpose.msra.mxu0 0.0
      %1557 = vmatprep.subr.mxu0 0.0
      %1558 = vmatpush1.xpose.msra.mxu0 0.0
      %1559 = vmatprep.subr.mxu0 0.0
      %1560 = vmatpush1.xpose.msra.mxu0 0.0
      %1561 = vmatprep.subr.mxu0 0.0
      %1562 = vmatpush1.xpose.msra.mxu0 0.0
      %1563 = vmatprep.subr.mxu0 0.0
      %1564 = vmatpush1.xpose.msra.mxu0 0.0
      %1565 = vmatprep.subr.mxu0 0.0
      %1566 = vmatpush1.xpose.msra.mxu0 0.0
      %1567 = vmatprep.subr.mxu0 0.0
      %1568 = vmatpush1.xpose.msra.mxu0 0.0
      %1569 = vmatprep.subr.mxu0 0.0
      %1570 = vmatpush1.xpose.msra.mxu0 0.0
      %1571 = vmatprep.subr.mxu0 0.0
      %1572 = vmatpush1.xpose.msra.mxu0 0.0
      %1573 = vmatprep.subr.mxu0 0.0
      %1574 = vmatpush1.xpose.msra.mxu0 0.0
      %1575 = vmatprep.subr.mxu0 0.0
      %1576 = vmatpush1.xpose.msra.mxu0 0.0
      %1577 = vmatprep.subr.mxu0 0.0
      %1578 = vmatpush1.xpose.msra.mxu0 0.0
      %1579 = vmatprep.mubr.f32.mxu0 0.0
      %1580 = vmatmul.mubr.f32.gmra.mrb[0].mxu0 %v1510
      %v1581 = vpop.f32.mrb[0].mxu0
      %v1582 = vadd.f32 0.0, %v1581
      %v1583 = vpop.f32.mrb[0].mxu0
      %1584 = vdwg.mxu0
      %v1585 = vld [vmem:[%s4 + $0x18] sm:$0xff]
      %v1587 = vsel %vm611, %v1582, 0
      %1589 = vmatprep.subr.mxu0 0.0
      %1590 = vmatpush1.msra.mxu0 %v1585
      %1591 = vmatprep.subr.mxu0 0.0
      %1592 = vmatpush1.msra.mxu0 0.0
      %1593 = vmatprep.subr.mxu0 0.0
      %1594 = vmatpush1.msra.mxu0 0.0
      %1595 = vmatprep.subr.mxu0 0.0
      %1596 = vmatpush1.msra.mxu0 0.0
      %1597 = vmatprep.subr.mxu0 0.0
      %1598 = vmatpush1.msra.mxu0 0.0
      %1599 = vmatprep.subr.mxu0 0.0
      %1600 = vmatpush1.msra.mxu0 0.0
      %1601 = vmatprep.subr.mxu0 0.0
      %1602 = vmatpush1.msra.mxu0 0.0
      %1603 = vmatprep.subr.mxu0 0.0
      %1604 = vmatpush1.msra.mxu0 0.0
      %1605 = vmatprep.subr.mxu0 0.0
      %1606 = vmatpush1.msra.mxu0 0.0
      %1607 = vmatprep.subr.mxu0 0.0
      %1608 = vmatpush1.msra.mxu0 0.0
      %1609 = vmatprep.subr.mxu0 0.0
      %1610 = vmatpush1.msra.mxu0 0.0
      %1611 = vmatprep.subr.mxu0 0.0
      %1612 = vmatpush1.msra.mxu0 0.0
      %1613 = vmatprep.subr.mxu0 0.0
      %1614 = vmatpush1.msra.mxu0 0.0
      %1615 = vmatprep.subr.mxu0 0.0
      %1616 = vmatpush1.msra.mxu0 0.0
      %1617 = vmatprep.subr.mxu0 0.0
      %1618 = vmatpush1.msra.mxu0 0.0
      %1619 = vmatprep.subr.mxu0 0.0
      %1620 = vmatpush1.msra.mxu0 0.0
      %1621 = vmatprep.subr.mxu0 0.0
      %1622 = vmatpush1.msra.mxu0 0.0
      %1623 = vmatprep.subr.mxu0 0.0
      %1624 = vmatpush1.msra.mxu0 0.0
      %1625 = vmatprep.subr.mxu0 0.0
      %1626 = vmatpush1.msra.mxu0 0.0
      %1627 = vmatprep.subr.mxu0 0.0
      %1628 = vmatpush1.msra.mxu0 0.0
      %1629 = vmatprep.subr.mxu0 0.0
      %1630 = vmatpush1.msra.mxu0 0.0
      %1631 = vmatprep.subr.mxu0 0.0
      %1632 = vmatpush1.msra.mxu0 0.0
      %1633 = vmatprep.subr.mxu0 0.0
      %1634 = vmatpush1.msra.mxu0 0.0
      %1635 = vmatprep.subr.mxu0 0.0
      %1636 = vmatpush1.msra.mxu0 0.0
      %1637 = vmatprep.subr.mxu0 0.0
      %1638 = vmatpush1.msra.mxu0 0.0
      %1639 = vmatprep.subr.mxu0 0.0
      %1640 = vmatpush1.msra.mxu0 0.0
      %1641 = vmatprep.subr.mxu0 0.0
      %1642 = vmatpush1.msra.mxu0 0.0
      %1643 = vmatprep.subr.mxu0 0.0
      %1644 = vmatpush1.msra.mxu0 0.0
      %1645 = vmatprep.subr.mxu0 0.0
      %1646 = vmatpush1.msra.mxu0 0.0
      %1647 = vmatprep.subr.mxu0 0.0
      %1648 = vmatpush1.msra.mxu0 0.0
      %1649 = vmatprep.subr.mxu0 0.0
      %1650 = vmatpush1.msra.mxu0 0.0
      %1651 = vmatprep.subr.mxu0 0.0
      %1652 = vmatpush1.msra.mxu0 0.0
      %1653 = vmatprep.mubr.f32.mxu0 0.0
      %1654 = vmatmul.mubr.f32.gmra.mrb[0].mxu0 %v1587
      %v1655 = vpop.f32.mrb[0].mxu0
      %v1656 = vadd.f32 0.0, %v1655
      %v1657 = vpop.f32.mrb[0].mxu0
      %1658 = vdwg.mxu0
      %v1659 = vadd.f32 %v1390, %v1656
      %v1660 = vld [vmem:[%s5] sm:$0x1]
      %v1662 = vlaneseq
      %v1663 = vshrl.u32 %v1662, 7
      %v1664 = vsub.s32 0, %v1663
      %v1665 = vrot.slane %v1660, %v1664
      %v1667 = vadd.f32 %v1659, %v1665
      %v1668 = vunpack.c.l.bf16 %v478
      %v1669 = vadd.f32 %v1667, %v1668
      %v1670 = vld [vmem:[%s6] sm:$0x1]
      %v1671 = vld [vmem:[%s7] sm:$0x1]
      %v1672 = vsel %vm503, %v1669, 0.0
      %1673 = vadd.xlane.f32.xlu0 %v1672
      %v1674 = vpop.xlane.xlu0 %1673
      %v1675 = vrcp.pop 32.0
      %v1676 = vmul.f32 %v1674, %v1675
      %v1677 = vsub.f32 %v1669, %v1676
      %v1678 = vmul.f32 %v1677, %v1677
      %v1679 = vsel %vm503, %v1678, 0.0
      %1680 = vadd.xlane.f32.xlu0 %v1679
      %v1681 = vpop.xlane.xlu0 %1680
      %v1682 = vmul.f32 %v1681, %v1675
      %v1683 = vadd.f32 %v1682, 1e-12
      %v1684 = vrsqrt.pop %v1683
      %v1685 = vmul.f32 %v1677, %v1684
      %v1687 = vlaneseq
      %v1688 = vshrl.u32 %v1687, 7
      %v1689 = vsub.s32 0, %v1688
      %v1690 = vrot.slane %v1670, %v1689
      %v1692 = vmul.f32 %v1685, %v1690
      %v1694 = vlaneseq
      %v1695 = vshrl.u32 %v1694, 7
      %v1696 = vsub.s32 0, %v1695
      %v1697 = vrot.slane %v1671, %v1696
      %v1699 = vadd.f32 %v1692, %v1697
      %v1700 = vpack.c.bf16 %v1699, %v1699
      %v1701 = vld [vmem:[%s8] sm:$0xf]
      %v1702 = vld [vmem:[%s8 + $0x4] sm:$0xf]
      %v1703 = vld [vmem:[%s8 + $0x8] sm:$0xf]
      %v1704 = vld [vmem:[%s8 + $0xc] sm:$0xf]
      %v1705 = vld [vmem:[%s9] sm:$0x1]
      %v1707 = vlaneseq
      %v1708 = vshrl.u32 %v1707, 7
      %v1709 = vsub.s32 0, %v1708
      %v1710 = vrot.slane %v1705, %v1709
      %v1716 = vunpack.c.l.b16 %v1701
      %v1717 = vunpack.c.l.b16 %v1702
      %v1718 = vunpack.c.l.b16 %v1703
      %v1719 = vunpack.c.l.b16 %v1704
      %v1720 = vpack.c.b16 %v1717, %v1716
      %v1721 = vpack.c.b16 %v1719, %v1718
      %v1725 = vsel %vm503, %v1700, 0
      %1727 = vmatprep.subr.bf16.mxu0 0
      %1728 = vmatpush1.bf16.msra.mxu0 %v1720
      %1729 = vmatprep.subr.bf16.mxu0 0
      %1730 = vmatpush1.bf16.msra.mxu0 %v1721
      %1731 = vmatprep.subr.bf16.mxu0 0
      %1732 = vmatpush1.bf16.msra.mxu0 0
      %1733 = vmatprep.subr.bf16.mxu0 0
      %1734 = vmatpush1.bf16.msra.mxu0 0
      %1735 = vmatprep.subr.bf16.mxu0 0
      %1736 = vmatpush1.bf16.msra.mxu0 0
      %1737 = vmatprep.subr.bf16.mxu0 0
      %1738 = vmatpush1.bf16.msra.mxu0 0
      %1739 = vmatprep.subr.bf16.mxu0 0
      %1740 = vmatpush1.bf16.msra.mxu0 0
      %1741 = vmatprep.subr.bf16.mxu0 0
      %1742 = vmatpush1.bf16.msra.mxu0 0
      %1743 = vmatprep.subr.bf16.mxu0 0
      %1744 = vmatpush1.bf16.msra.mxu0 0
      %1745 = vmatprep.subr.bf16.mxu0 0
      %1746 = vmatpush1.bf16.msra.mxu0 0
      %1747 = vmatprep.subr.bf16.mxu0 0
      %1748 = vmatpush1.bf16.msra.mxu0 0
      %1749 = vmatprep.subr.bf16.mxu0 0
      %1750 = vmatpush1.bf16.msra.mxu0 0
      %1751 = vmatprep.subr.bf16.mxu0 0
      %1752 = vmatpush1.bf16.msra.mxu0 0
      %1753 = vmatprep.subr.bf16.mxu0 0
      %1754 = vmatpush1.bf16.msra.mxu0 0
      %1755 = vmatprep.subr.bf16.mxu0 0
      %1756 = vmatpush1.bf16.msra.mxu0 0
      %1757 = vmatprep.subr.bf16.mxu0 0
      %1758 = vmatpush1.bf16.msra.mxu0 0
      %1759 = vmatprep.mubr.bf16.mxu0 0
      %1760 = vmatmul.mubr.bf16.gmra.mrb[0].mxu0 %v1725
      %v1761 = vpop.f32.mrb[0].mxu0
      %v1762 = vadd.f32 %v1710, %v1761
      %v1763 = vpop.f32.mrb[0].mxu0
      %v1764 = vpop.f32.mrb[0].mxu0
      %v1765 = vpop.f32.mrb[0].mxu0
      %1766 = vdwg.mxu0
      %v1767 = vmul.f32 %v1762, 0.5
      %v1768 = vmul.f32 %v1762, 0.044715
      %v1769 = vmul.f32 %v1768, %v1762
      %v1770 = vmul.f32 %v1769, %v1762
      %v1771 = vadd.f32 %v1762, %v1770
      %v1772 = vmul.f32 %v1771, 0.7978846
      %v1773 = vtanh.pop %v1772
      %v1774 = vadd.f32 %v1773, 1.0
      %v1775 = vmul.f32 %v1767, %v1774
      %v1776 = vpack.c.bf16 %v1775, %v1775
      %v1777 = vld [vmem:[%s10] sm:$0xf]
      %v1778 = vld [vmem:[%s10 + $0x4] sm:$0xf]
      %v1779 = vld [vmem:[%s10 + $0x8] sm:$0xf]
      %v1780 = vld [vmem:[%s10 + $0xc] sm:$0xf]
      %v1781 = vld [vmem:[%s10 + $0x10] sm:$0xf]
      %v1782 = vld [vmem:[%s10 + $0x14] sm:$0xf]
      %v1783 = vld [vmem:[%s10 + $0x18] sm:$0xf]
      %v1784 = vld [vmem:[%s10 + $0x1c] sm:$0xf]
      %v1785 = vld [vmem:[%s11] sm:$0x1]
      %v1787 = vlaneseq
      %v1788 = vshrl.u32 %v1787, 7
      %v1789 = vsub.s32 0, %v1788
      %v1790 = vrot.slane %v1785, %v1789
      %v1800 = vunpack.c.l.b16 %v1777
      %v1801 = vunpack.c.l.b16 %v1778
      %v1802 = vunpack.c.l.b16 %v1779
      %v1803 = vunpack.c.l.b16 %v1780
      %v1804 = vunpack.c.l.b16 %v1781
      %v1805 = vunpack.c.l.b16 %v1782
      %v1806 = vunpack.c.l.b16 %v1783
      %v1807 = vunpack.c.l.b16 %v1784
      %v1808 = vpack.c.b16 %v1801, %v1800
      %v1809 = vpack.c.b16 %v1803, %v1802
      %v1810 = vpack.c.b16 %v1805, %v1804
      %v1811 = vpack.c.b16 %v1807, %v1806
      %vm1816 = vcmask 523264
      %v1818 = vsel %vm1816, %v1776, 0
      %1820 = vmatprep.subr.bf16.mxu0 0
      %1821 = vmatpush1.bf16.msra.mxu0 %v1808
      %1822 = vmatprep.subr.bf16.mxu0 0
      %1823 = vmatpush1.bf16.msra.mxu0 %v1809
      %1824 = vmatprep.subr.bf16.mxu0 0
      %1825 = vmatpush1.bf16.msra.mxu0 %v1810
      %1826 = vmatprep.subr.bf16.mxu0 0
      %1827 = vmatpush1.bf16.msra.mxu0 %v1811
      %1828 = vmatprep.subr.bf16.mxu0 0
      %1829 = vmatpush1.bf16.msra.mxu0 0
      %1830 = vmatprep.subr.bf16.mxu0 0
      %1831 = vmatpush1.bf16.msra.mxu0 0
      %1832 = vmatprep.subr.bf16.mxu0 0
      %1833 = vmatpush1.bf16.msra.mxu0 0
      %1834 = vmatprep.subr.bf16.mxu0 0
      %1835 = vmatpush1.bf16.msra.mxu0 0
      %1836 = vmatprep.subr.bf16.mxu0 0
      %1837 = vmatpush1.bf16.msra.mxu0 0
      %1838 = vmatprep.subr.bf16.mxu0 0
      %1839 = vmatpush1.bf16.msra.mxu0 0
      %1840 = vmatprep.subr.bf16.mxu0 0
      %1841 = vmatpush1.bf16.msra.mxu0 0
      %1842 = vmatprep.subr.bf16.mxu0 0
      %1843 = vmatpush1.bf16.msra.mxu0 0
      %1844 = vmatprep.subr.bf16.mxu0 0
      %1845 = vmatpush1.bf16.msra.mxu0 0
      %1846 = vmatprep.subr.bf16.mxu0 0
      %1847 = vmatpush1.bf16.msra.mxu0 0
      %1848 = vmatprep.subr.bf16.mxu0 0
      %1849 = vmatpush1.bf16.msra.mxu0 0
      %1850 = vmatprep.subr.bf16.mxu0 0
      %1851 = vmatpush1.bf16.msra.mxu0 0
      %1852 = vmatprep.mubr.bf16.mxu0 0
      %1853 = vmatmul.mubr.bf16.gmra.mrb[0].mxu0 %v1818
      %v1854 = vpop.f32.mrb[0].mxu0
      %v1855 = vadd.f32 %v1790, %v1854
      %v1856 = vpop.f32.mrb[0].mxu0
      %v1857 = vpop.f32.mrb[0].mxu0
      %v1858 = vpop.f32.mrb[0].mxu0
      %1859 = vdwg.mxu0
      %v1860 = vadd.f32 %v1855, %v1699
      %v1861 = vld [vmem:[%s12] sm:$0x1]
      %v1862 = vld [vmem:[%s13] sm:$0x1]
      %v1863 = vsel %vm503, %v1860, 0.0
      %1864 = vadd.xlane.f32.xlu0 %v1863
      %v1865 = vpop.xlane.xlu0 %1864
      %v1866 = vmul.f32 %v1865, %v1675
      %v1867 = vsub.f32 %v1860, %v1866
      %v1868 = vmul.f32 %v1867, %v1867
      %v1869 = vsel %vm503, %v1868, 0.0
      %1870 = vadd.xlane.f32.xlu0 %v1869
      %v1871 = vpop.xlane.xlu0 %1870
      %v1872 = vmul.f32 %v1871, %v1675
      %v1873 = vadd.f32 %v1872, 1e-12
      %v1874 = vrsqrt.pop %v1873
      %v1875 = vmul.f32 %v1867, %v1874
      %v1877 = vlaneseq
      %v1878 = vshrl.u32 %v1877, 7
      %v1879 = vsub.s32 0, %v1878
      %v1880 = vrot.slane %v1861, %v1879
      %v1882 = vmul.f32 %v1875, %v1880
      %v1884 = vlaneseq
      %v1885 = vshrl.u32 %v1884, 7
      %v1886 = vsub.s32 0, %v1885
      %v1887 = vrot.slane %v1862, %v1886
      %v1889 = vadd.f32 %v1882, %v1887
      %v1890 = vpack.c.bf16 %v1889, %v1889
      %vm1891 = vcmask 257024
      %1892 = vst.msk [vmem:[%s476] sm:$0xf] %vm1891, %v1890
      %p1893 = scmp.lt.s32.totalorder %s25, 1
      %s1894 = scalar_select %p1893, %s25, 1
      %s1895 = smul.addr %s1894, 4
      %s1896 = scalar_lea.vmem %s14, %s1895
      // Predicated region
      $region77: #{servenet_forward.5} parent=75 // pred_check
        %p1897 = pneg %p347
      $region78: #{servenet_forward.5} parent=75 // pred_check_branch
        %1899 = sbr.rel (%p1897) target = $region80
      $region79: #{servenet_forward.5} parent=75 // pred_region
        _
      $region80: #{servenet_forward.5} parent=75 // pred_fallthru
        _
    $region76: #{servenet_forward.5} parent=5 // pred_fallthru
      _
    %p1900 = scmp.le.s32.totalorder 2, %s20
    // Predicated region
    $region81: #{servenet_forward.5} parent=5 // pred_check
      %p1901 = pneg %p1900
    $region82: #{servenet_forward.5} parent=5 // pred_check_branch
      %1903 = sbr.rel (%p1901) target = $region84
    $region83: #{servenet_forward.5} parent=5 // pred_region
      %s1904 = ssub.s32 %s20, 2
      // Predicated region
      $region85: #{servenet_forward.5} parent=83 // pred_check
        %p1905 = pneg %p353
      $region86: #{servenet_forward.5} parent=83 // pred_check_branch
        %1907 = sbr.rel (%p1905) target = $region88
      $region87: #{servenet_forward.5} parent=83 // pred_region
        %p1908 = scmp.lt.s32.totalorder %s26, 1
        %s1909 = scalar_select %p1908, %s26, 1
        %s1910 = smul.addr %s1909, 4
        %s1911 = scalar_lea.vmem %s14, %s1910
      $region88: #{servenet_forward.5} parent=83 // pred_fallthru
        _
    $region84: #{servenet_forward.5} parent=5 // pred_fallthru
      _
  $region6: #{servenet_forward.5} parent=0 // loop_footer
    %s24 = sadd.s32 1, %s20
  $region7: #{servenet_forward.5} parent=0 // loop_footer_branch
    %19 = sbr.rel target = $region3
  $region8: #{servenet_forward.5} parent=0 // loop_exit
    _

</llo_original>
